<compile_context>
chip_gen: v7x
topology: tpu7x:2x2x1
jax: 0.10.0
libtpu: 0.0.40
codegen_flags: <defaults>
</compile_context>

<pallas_src>
import math

import jax
import jax.numpy as jnp
from jax import lax
from jax.experimental import pallas as pl
from jax.experimental.pallas import tpu as pltpu

# ---------------------------------------------------------------------------
# Hyper-parameters (TransAm defaults; `vector_size` is undefined in the original
# script, so we pick a small feature size).
# ---------------------------------------------------------------------------
FEATURE_SIZE = 8          # d_model == nhead  ->  head_dim == 1
NUM_LAYERS = 2
HIDDEN_SIZE = 64
DIM_FF = 2048             # nn.TransformerEncoderLayer default dim_feedforward
LN_EPS = 1e-5
MAX_LEN = 500

BATCH = 2
SEQ = 8


def _layer_norm(x, w, b):
    mu = jnp.mean(x, axis=-1, keepdims=True)
    var = jnp.mean((x - mu) ** 2, axis=-1, keepdims=True)   # biased, like torch LayerNorm
    return (x - mu) * lax.rsqrt(var + LN_EPS) * w + b


# ---------------------------------------------------------------------------
# Pallas kernel: single invocation, whole batch processed in VMEM.
# All weights are passed pre-transposed (x @ W form) and stacked over layers.
# ---------------------------------------------------------------------------
def transam_kernel(src_ref, pe_ref,
                   qkv_w_ref, qkv_b_ref,
                   out_w_ref, out_b_ref,
                   l1_w_ref, l1_b_ref, l2_w_ref, l2_b_ref,
                   n1_w_ref, n1_b_ref, n2_w_ref, n2_b_ref,
                   fc_w_ref, fc_b_ref, o_ref):
    B, S, D = src_ref.shape
    L = qkv_w_ref.shape[0]
    M = B * S

    # positional encoding (indexed by batch, broadcast over seq -- see header note)
    x3 = src_ref[...] + pe_ref[...]                          # (B, S, D)
    x = x3.reshape(M, D)                                     # batch fused into matmul M dim

    for l in range(L):                                       # statically unrolled
        # ---- fused QKV projection: one MXU matmul instead of three ----
        qkv = jnp.dot(x, qkv_w_ref[l],
                      preferred_element_type=jnp.float32) + qkv_b_ref[l]   # (M, 3D)
        q = qkv[:, 0 * D:1 * D].reshape(B, S, D)
        k = qkv[:, 1 * D:2 * D].reshape(B, S, D)
        v = qkv[:, 2 * D:3 * D].reshape(B, S, D)

        # ---- multi-head self-attention (nhead == D => head_dim == 1, scale == 1) ----
        # scores[b, i, j, h] = q[b, i, h] * k[b, j, h]   (per-batch, per-head outer product)
        s = q[:, :, None, :] * k[:, None, :, :]             # (B, S, S, D)
        m = jnp.max(s, axis=2, keepdims=True)
        p = jnp.exp(s - m)
        denom = jnp.sum(p, axis=2, keepdims=True)
        p = p * pl.reciprocal(denom, approx=False)           # EUP slot, no vector divide
        attn = jnp.sum(p * v[:, None, :, :], axis=2)         # (B, S, D)
        attn = attn.reshape(M, D)
        attn = jnp.dot(attn, out_w_ref[l],
                       preferred_element_type=jnp.float32) + out_b_ref[l]
        # residual + layernorm1
        x = _layer_norm(x + attn, n1_w_ref[l], n1_b_ref[l])

        # ---- feed-forward ----
        h = jnp.dot(x, l1_w_ref[l], preferred_element_type=jnp.float32) + l1_b_ref[l]
        h = jnp.maximum(h, 0.0)                               # relu
        ff = jnp.dot(h, l2_w_ref[l], preferred_element_type=jnp.float32) + l2_b_ref[l]
        # residual + layernorm2
        x = _layer_norm(x + ff, n2_w_ref[l], n2_b_ref[l])

    # ---- fc head: (M, D) @ (D, H) + (1, H) ----
    out = jnp.dot(x, fc_w_ref[...], preferred_element_type=jnp.float32) + fc_b_ref[...]
    o_ref[...] = out.reshape(B, S, o_ref.shape[-1]).astype(o_ref.dtype)


# ---------------------------------------------------------------------------
# Glue: parameter init, positional-encoding buffer, one-time prep, pallas_call.
# ---------------------------------------------------------------------------
def make_pe(d_model, max_len=MAX_LEN):
    position = jnp.arange(max_len, dtype=jnp.float32)[:, None]
    div_term = jnp.exp(jnp.arange(0, d_model, 2, dtype=jnp.float32)
                       * (-math.log(10000.0) / d_model))
    pe = jnp.zeros((max_len, d_model), jnp.float32)
    pe = pe.at[:, 0::2].set(jnp.sin(position * div_term))
    if d_model > 1:
        n_odd = pe[:, 1::2].shape[1]
        pe = pe.at[:, 1::2].set(jnp.cos(position * div_term[:n_odd]))
    return pe[:, None, :]                                    # (max_len, 1, d_model)


def init_params(key):
    L, D, FF, H = NUM_LAYERS, FEATURE_SIZE, DIM_FF, HIDDEN_SIZE
    ks = jax.random.split(key, 10)

    def u(k, shape, scale=0.1):
        return jax.random.uniform(k, shape, jnp.float32, minval=-scale, maxval=scale)

    return dict(
        in_proj_w=u(ks[0], (L, 3 * D, D)),   # stacked (Wq; Wk; Wv) like torch MHA
        in_proj_b=u(ks[1], (L, 3 * D)),
        out_proj_w=u(ks[2], (L, D, D)),
        out_proj_b=u(ks[3], (L, D)),
        lin1_w=u(ks[4], (L, FF, D)),
        lin1_b=u(ks[5], (L, FF)),
        lin2_w=u(ks[6], (L, D, FF)),
        lin2_b=u(ks[7], (L, D)),
        norm1_w=jnp.ones((L, D), jnp.float32),
        norm1_b=jnp.zeros((L, D), jnp.float32),
        norm2_w=jnp.ones((L, D), jnp.float32),
        norm2_b=jnp.zeros((L, D), jnp.float32),
        fc_w=u(ks[8], (H, D)),
        fc_b=u(ks[9], (H,)),
    )


def prepare_inputs(params, pe, batch):
    """One-time parameter prep: QKV fusion, transposes, pe slicing (NOT per call)."""
    return (
        pe[:batch],                                           # (B, 1, D)  (batch-indexed!)
        jnp.transpose(params['in_proj_w'], (0, 2, 1)),        # (L, D, 3D), cols = [q | k | v]
        params['in_proj_b'],                                  # (L, 3D)
        jnp.transpose(params['out_proj_w'], (0, 2, 1)),       # (L, D, D)
        params['out_proj_b'],                                 # (L, D)
        jnp.transpose(params['lin1_w'], (0, 2, 1)),           # (L, D, FF)
        params['lin1_b'],                                     # (L, FF)
        jnp.transpose(params['lin2_w'], (0, 2, 1)),           # (L, FF, D)
        params['lin2_b'],                                     # (L, D)
        params['norm1_w'], params['norm1_b'],
        params['norm2_w'], params['norm2_b'],
        params['fc_w'].T,                                     # (D, H)
        params['fc_b'][None, :],                              # (1, H)
    )


def transam_forward(src, prepped):
    B, S, D = src.shape
    L = prepped[1].shape[0]
    FF = prepped[5].shape[-1]
    H = prepped[-1].shape[-1]
    M = B * S

    flops = int(L * (2 * M * D * (3 * D) + 2 * M * D * D + 4 * M * D * FF)
                + 2 * M * D * H)
    transcendentals = int(L * B * S * S * D)                  # exp() in softmax
    bytes_accessed = int(src.size * src.dtype.itemsize
                         + sum(a.size * a.dtype.itemsize for a in prepped)
                         + M * H * 4)

    vmem = pltpu.MemorySpace.VMEM
    return pl.pallas_call(
        transam_kernel,
        out_shape=jax.ShapeDtypeStruct((B, S, H), jnp.float32),
        in_specs=[pl.BlockSpec(memory_space=vmem)] * (1 + len(prepped)),
        out_specs=pl.BlockSpec(memory_space=vmem),
        cost_estimate=pl.CostEstimate(flops=flops,
                                      transcendentals=transcendentals,
                                      bytes_accessed=bytes_accessed),
    )(src, *prepped)


# ---------------------------------------------------------------------------
# Pure-JAX reference (mirrors the PyTorch eval-mode forward).
# ---------------------------------------------------------------------------
def transam_reference(src, params, pe):
    B, S, D = src.shape
    x = src + pe[:B]                                         # (B,S,D) + (B,1,D)
    for l in range(NUM_LAYERS):
        qkv = x @ params['in_proj_w'][l].T + params['in_proj_b'][l]
        q, k, v = qkv[..., :D], qkv[..., D:2 * D], qkv[..., 2 * D:]
        s = q[:, :, None, :] * k[:, None, :, :]              # (B,S,S,D)
        p = jax.nn.softmax(s, axis=2)
        attn = jnp.sum(p * v[:, None, :, :], axis=2)
        attn = attn @ params['out_proj_w'][l].T + params['out_proj_b'][l]
        x = _layer_norm(x + attn, params['norm1_w'][l], params['norm1_b'][l])
        h = jnp.maximum(x @ params['lin1_w'][l].T + params['lin1_b'][l], 0.0)
        ff = h @ params['lin2_w'][l].T + params['lin2_b'][l]
        x = _layer_norm(x + ff, params['norm2_w'][l], params['norm2_b'][l])
    return x @ params['fc_w'].T + params['fc_b']


if __name__ == "__main__":
    key = jax.random.PRNGKey(0)
    kp, kx = jax.random.split(key)
    params = init_params(kp)
    src = jax.random.normal(kx, (BATCH, SEQ, FEATURE_SIZE), jnp.float32)
    pe = make_pe(FEATURE_SIZE)

    prepped = prepare_inputs(params, pe, BATCH)              # one-time weight prep
    out = jax.block_until_ready(transam_forward(src, prepped))
    ref = transam_reference(src, params, pe)

    assert out.shape == (BATCH, SEQ, HIDDEN_SIZE), out.shape
    max_err = float(jnp.max(jnp.abs(out - ref)))
    assert jnp.allclose(out, ref, atol=1e-3, rtol=1e-3), f"max abs err {max_err}"
    print("KERNEL_OK")
</pallas_src>

<mosaic_0001>
module attributes {stable_mosaic.version = 11 : i64} {
  func.func @transam_kernel(%arg0: memref<2x8x8xf32, #tpu.memory_space<vmem>>, %arg1: memref<2x1x8xf32, #tpu.memory_space<vmem>>, %arg2: memref<2x8x24xf32, #tpu.memory_space<vmem>>, %arg3: memref<2x24xf32, #tpu.memory_space<vmem>>, %arg4: memref<2x8x8xf32, #tpu.memory_space<vmem>>, %arg5: memref<2x8xf32, #tpu.memory_space<vmem>>, %arg6: memref<2x8x2048xf32, #tpu.memory_space<vmem>>, %arg7: memref<2x2048xf32, #tpu.memory_space<vmem>>, %arg8: memref<2x2048x8xf32, #tpu.memory_space<vmem>>, %arg9: memref<2x8xf32, #tpu.memory_space<vmem>>, %arg10: memref<2x8xf32, #tpu.memory_space<vmem>>, %arg11: memref<2x8xf32, #tpu.memory_space<vmem>>, %arg12: memref<2x8xf32, #tpu.memory_space<vmem>>, %arg13: memref<2x8xf32, #tpu.memory_space<vmem>>, %arg14: memref<8x64xf32, #tpu.memory_space<vmem>>, %arg15: memref<1x64xf32, #tpu.memory_space<vmem>>, %arg16: memref<2x8x64xf32, #tpu.memory_space<vmem>>) attributes {dimension_semantics = [], scalar_prefetch = 0 : i64, scratch_operands = 0 : i64, tpu.core_type = #tpu.core_type<tc>} {
    %c0 = arith.constant 0 : index
    %c0_0 = arith.constant 0 : index
    %c0_1 = arith.constant 0 : index
    %0 = vector.load %arg0[%c0, %c0_0, %c0_1] : memref<2x8x8xf32, #tpu.memory_space<vmem>>, vector<2x8x8xf32>
    %c0_2 = arith.constant 0 : index
    %c0_3 = arith.constant 0 : index
    %c0_4 = arith.constant 0 : index
    %1 = vector.load %arg1[%c0_2, %c0_3, %c0_4] : memref<2x1x8xf32, #tpu.memory_space<vmem>>, vector<2x1x8xf32>
    %2 = vector.broadcast %1 : vector<2x1x8xf32> to vector<2x8x8xf32>
    %3 = arith.addf %0, %2 : vector<2x8x8xf32>
    %4 = vector.shape_cast %3 : vector<2x8x8xf32> to vector<16x8xf32>
    %c0_5 = arith.constant 0 : index
    %c0_6 = arith.constant 0 : index
    %c0_7 = arith.constant 0 : index
    %5 = vector.load %arg2[%c0_5, %c0_6, %c0_7] : memref<2x8x24xf32, #tpu.memory_space<vmem>>, vector<1x8x24xf32>
    %6 = vector.shape_cast %5 : vector<1x8x24xf32> to vector<8x24xf32>
    %cst = arith.constant dense<0.000000e+00> : vector<16x24xf32>
    %7 = tpu.matmul %4, %6, %cst {dimension_numbers = #tpu.dot_dimension_numbers<[1], [0], [0], [1], [0, 0, 1, 1], [], []>} : vector<16x8xf32>, vector<8x24xf32>, vector<16x24xf32> -> vector<16x24xf32>
    %c0_8 = arith.constant 0 : index
    %c0_9 = arith.constant 0 : index
    %8 = vector.load %arg3[%c0_8, %c0_9] : memref<2x24xf32, #tpu.memory_space<vmem>>, vector<1x24xf32>
    %9 = vector.shape_cast %8 : vector<1x24xf32> to vector<24xf32>
    %10 = vector.shape_cast %9 : vector<24xf32> to vector<1x24xf32>
    %11 = vector.broadcast %10 : vector<1x24xf32> to vector<16x24xf32>
    %12 = arith.addf %7, %11 : vector<16x24xf32>
    %13 = vector.extract_strided_slice %12 {offsets = [0, 0], sizes = [16, 8], strides = [1, 1]} : vector<16x24xf32> to vector<16x8xf32>
    %14 = vector.shape_cast %13 : vector<16x8xf32> to vector<2x8x8xf32>
    %15 = vector.extract_strided_slice %12 {offsets = [0, 8], sizes = [16, 8], strides = [1, 1]} : vector<16x24xf32> to vector<16x8xf32>
    %16 = vector.shape_cast %15 : vector<16x8xf32> to vector<2x8x8xf32>
    %17 = vector.extract_strided_slice %12 {offsets = [0, 16], sizes = [16, 8], strides = [1, 1]} : vector<16x24xf32> to vector<16x8xf32>
    %18 = vector.shape_cast %17 : vector<16x8xf32> to vector<2x8x8xf32>
    %19 = vector.shape_cast %14 : vector<2x8x8xf32> to vector<2x8x1x8xf32>
    %20 = vector.shape_cast %16 : vector<2x8x8xf32> to vector<2x1x8x8xf32>
    %21 = vector.broadcast %19 : vector<2x8x1x8xf32> to vector<2x8x8x8xf32>
    %22 = vector.broadcast %20 : vector<2x1x8x8xf32> to vector<2x8x8x8xf32>
    %23 = arith.mulf %21, %22 : vector<2x8x8x8xf32>
    %cst_10 = arith.constant dense<0xFF800000> : vector<2x8x8xf32>
    %24 = vector.multi_reduction <maximumf>, %23, %cst_10 [2] : vector<2x8x8x8xf32> to vector<2x8x8xf32>
    %25 = vector.shape_cast %24 : vector<2x8x8xf32> to vector<2x8x1x8xf32>
    %26 = vector.broadcast %25 : vector<2x8x1x8xf32> to vector<2x8x8x8xf32>
    %27 = arith.subf %23, %26 : vector<2x8x8x8xf32>
    %28 = math.exp %27 : vector<2x8x8x8xf32>
    %cst_11 = arith.constant dense<0.000000e+00> : vector<2x8x8xf32>
    %29 = vector.multi_reduction <add>, %28, %cst_11 [2] : vector<2x8x8x8xf32> to vector<2x8x8xf32>
    %30 = vector.shape_cast %29 : vector<2x8x8xf32> to vector<2x8x1x8xf32>
    %31 = tpu.reciprocal %30 : vector<2x8x1x8xf32> -> vector<2x8x1x8xf32>
    %32 = vector.broadcast %31 : vector<2x8x1x8xf32> to vector<2x8x8x8xf32>
    %33 = arith.mulf %28, %32 : vector<2x8x8x8xf32>
    %34 = vector.shape_cast %18 : vector<2x8x8xf32> to vector<2x1x8x8xf32>
    %35 = vector.broadcast %34 : vector<2x1x8x8xf32> to vector<2x8x8x8xf32>
    %36 = arith.mulf %33, %35 : vector<2x8x8x8xf32>
    %cst_12 = arith.constant dense<0.000000e+00> : vector<2x8x8xf32>
    %37 = vector.multi_reduction <add>, %36, %cst_12 [2] : vector<2x8x8x8xf32> to vector<2x8x8xf32>
    %38 = vector.shape_cast %37 : vector<2x8x8xf32> to vector<16x8xf32>
    %c0_13 = arith.constant 0 : index
    %c0_14 = arith.constant 0 : index
    %c0_15 = arith.constant 0 : index
    %39 = vector.load %arg4[%c0_13, %c0_14, %c0_15] : memref<2x8x8xf32, #tpu.memory_space<vmem>>, vector<1x8x8xf32>
    %40 = vector.shape_cast %39 : vector<1x8x8xf32> to vector<8x8xf32>
    %cst_16 = arith.constant dense<0.000000e+00> : vector<16x8xf32>
    %41 = tpu.matmul %38, %40, %cst_16 {dimension_numbers = #tpu.dot_dimension_numbers<[1], [0], [0], [1], [0, 0, 1, 1], [], []>} : vector<16x8xf32>, vector<8x8xf32>, vector<16x8xf32> -> vector<16x8xf32>
    %c0_17 = arith.constant 0 : index
    %c0_18 = arith.constant 0 : index
    %42 = vector.load %arg5[%c0_17, %c0_18] : memref<2x8xf32, #tpu.memory_space<vmem>>, vector<1x8xf32>
    %43 = vector.shape_cast %42 : vector<1x8xf32> to vector<8xf32>
    %44 = vector.shape_cast %43 : vector<8xf32> to vector<1x8xf32>
    %45 = vector.broadcast %44 : vector<1x8xf32> to vector<16x8xf32>
    %46 = arith.addf %41, %45 : vector<16x8xf32>
    %47 = arith.addf %4, %46 : vector<16x8xf32>
    %c0_19 = arith.constant 0 : index
    %c0_20 = arith.constant 0 : index
    %48 = vector.load %arg10[%c0_19, %c0_20] : memref<2x8xf32, #tpu.memory_space<vmem>>, vector<1x8xf32>
    %49 = vector.shape_cast %48 : vector<1x8xf32> to vector<8xf32>
    %c0_21 = arith.constant 0 : index
    %c0_22 = arith.constant 0 : index
    %50 = vector.load %arg11[%c0_21, %c0_22] : memref<2x8xf32, #tpu.memory_space<vmem>>, vector<1x8xf32>
    %51 = vector.shape_cast %50 : vector<1x8xf32> to vector<8xf32>
    %cst_23 = arith.constant dense<0.000000e+00> : vector<16xf32>
    %52 = vector.multi_reduction <add>, %47, %cst_23 [1] : vector<16x8xf32> to vector<16xf32>
    %53 = vector.shape_cast %52 : vector<16xf32> to vector<16x1xf32>
    %cst_24 = arith.constant 8.000000e+00 : f32
    %54 = vector.broadcast %cst_24 : f32 to vector<16x1xf32>
    %55 = arith.divf %53, %54 : vector<16x1xf32>
    %56 = vector.broadcast %55 : vector<16x1xf32> to vector<16x8xf32>
    %57 = arith.subf %47, %56 : vector<16x8xf32>
    %58 = arith.mulf %57, %57 : vector<16x8xf32>
    %cst_25 = arith.constant dense<0.000000e+00> : vector<16xf32>
    %59 = vector.multi_reduction <add>, %58, %cst_25 [1] : vector<16x8xf32> to vector<16xf32>
    %60 = vector.shape_cast %59 : vector<16xf32> to vector<16x1xf32>
    %cst_26 = arith.constant 8.000000e+00 : f32
    %61 = vector.broadcast %cst_26 : f32 to vector<16x1xf32>
    %62 = arith.divf %60, %61 : vector<16x1xf32>
    %63 = vector.broadcast %55 : vector<16x1xf32> to vector<16x8xf32>
    %64 = arith.subf %47, %63 : vector<16x8xf32>
    %cst_27 = arith.constant 9.99999974E-6 : f32
    %65 = vector.broadcast %cst_27 : f32 to vector<16x1xf32>
    %66 = arith.addf %62, %65 : vector<16x1xf32>
    %67 = math.rsqrt %66 : vector<16x1xf32>
    %68 = vector.broadcast %67 : vector<16x1xf32> to vector<16x8xf32>
    %69 = arith.mulf %64, %68 : vector<16x8xf32>
    %70 = vector.shape_cast %49 : vector<8xf32> to vector<1x8xf32>
    %71 = vector.broadcast %70 : vector<1x8xf32> to vector<16x8xf32>
    %72 = arith.mulf %69, %71 : vector<16x8xf32>
    %73 = vector.shape_cast %51 : vector<8xf32> to vector<1x8xf32>
    %74 = vector.broadcast %73 : vector<1x8xf32> to vector<16x8xf32>
    %75 = arith.addf %72, %74 : vector<16x8xf32>
    %c0_28 = arith.constant 0 : index
    %c0_29 = arith.constant 0 : index
    %c0_30 = arith.constant 0 : index
    %76 = vector.load %arg6[%c0_28, %c0_29, %c0_30] : memref<2x8x2048xf32, #tpu.memory_space<vmem>>, vector<1x8x2048xf32>
    %77 = vector.shape_cast %76 : vector<1x8x2048xf32> to vector<8x2048xf32>
    %cst_31 = arith.constant dense<0.000000e+00> : vector<16x2048xf32>
    %78 = tpu.matmul %75, %77, %cst_31 {dimension_numbers = #tpu.dot_dimension_numbers<[1], [0], [0], [1], [0, 0, 1, 1], [], []>} : vector<16x8xf32>, vector<8x2048xf32>, vector<16x2048xf32> -> vector<16x2048xf32>
    %c0_32 = arith.constant 0 : index
    %c0_33 = arith.constant 0 : index
    %79 = vector.load %arg7[%c0_32, %c0_33] : memref<2x2048xf32, #tpu.memory_space<vmem>>, vector<1x2048xf32>
    %80 = vector.shape_cast %79 : vector<1x2048xf32> to vector<2048xf32>
    %81 = vector.shape_cast %80 : vector<2048xf32> to vector<1x2048xf32>
    %82 = vector.broadcast %81 : vector<1x2048xf32> to vector<16x2048xf32>
    %83 = arith.addf %78, %82 : vector<16x2048xf32>
    %cst_34 = arith.constant 0.000000e+00 : f32
    %84 = vector.broadcast %cst_34 : f32 to vector<16x2048xf32>
    %85 = arith.maximumf %83, %84 : vector<16x2048xf32>
    %c0_35 = arith.constant 0 : index
    %c0_36 = arith.constant 0 : index
    %c0_37 = arith.constant 0 : index
    %86 = vector.load %arg8[%c0_35, %c0_36, %c0_37] : memref<2x2048x8xf32, #tpu.memory_space<vmem>>, vector<1x2048x8xf32>
    %87 = vector.shape_cast %86 : vector<1x2048x8xf32> to vector<2048x8xf32>
    %cst_38 = arith.constant dense<0.000000e+00> : vector<16x8xf32>
    %88 = tpu.matmul %85, %87, %cst_38 {dimension_numbers = #tpu.dot_dimension_numbers<[1], [0], [0], [1], [0, 0, 1, 1], [], []>} : vector<16x2048xf32>, vector<2048x8xf32>, vector<16x8xf32> -> vector<16x8xf32>
    %c0_39 = arith.constant 0 : index
    %c0_40 = arith.constant 0 : index
    %89 = vector.load %arg9[%c0_39, %c0_40] : memref<2x8xf32, #tpu.memory_space<vmem>>, vector<1x8xf32>
    %90 = vector.shape_cast %89 : vector<1x8xf32> to vector<8xf32>
    %91 = vector.shape_cast %90 : vector<8xf32> to vector<1x8xf32>
    %92 = vector.broadcast %91 : vector<1x8xf32> to vector<16x8xf32>
    %93 = arith.addf %88, %92 : vector<16x8xf32>
    %94 = arith.addf %75, %93 : vector<16x8xf32>
    %c0_41 = arith.constant 0 : index
    %c0_42 = arith.constant 0 : index
    %95 = vector.load %arg12[%c0_41, %c0_42] : memref<2x8xf32, #tpu.memory_space<vmem>>, vector<1x8xf32>
    %96 = vector.shape_cast %95 : vector<1x8xf32> to vector<8xf32>
    %c0_43 = arith.constant 0 : index
    %c0_44 = arith.constant 0 : index
    %97 = vector.load %arg13[%c0_43, %c0_44] : memref<2x8xf32, #tpu.memory_space<vmem>>, vector<1x8xf32>
    %98 = vector.shape_cast %97 : vector<1x8xf32> to vector<8xf32>
    %cst_45 = arith.constant dense<0.000000e+00> : vector<16xf32>
    %99 = vector.multi_reduction <add>, %94, %cst_45 [1] : vector<16x8xf32> to vector<16xf32>
    %100 = vector.shape_cast %99 : vector<16xf32> to vector<16x1xf32>
    %cst_46 = arith.constant 8.000000e+00 : f32
    %101 = vector.broadcast %cst_46 : f32 to vector<16x1xf32>
    %102 = arith.divf %100, %101 : vector<16x1xf32>
    %103 = vector.broadcast %102 : vector<16x1xf32> to vector<16x8xf32>
    %104 = arith.subf %94, %103 : vector<16x8xf32>
    %105 = arith.mulf %104, %104 : vector<16x8xf32>
    %cst_47 = arith.constant dense<0.000000e+00> : vector<16xf32>
    %106 = vector.multi_reduction <add>, %105, %cst_47 [1] : vector<16x8xf32> to vector<16xf32>
    %107 = vector.shape_cast %106 : vector<16xf32> to vector<16x1xf32>
    %cst_48 = arith.constant 8.000000e+00 : f32
    %108 = vector.broadcast %cst_48 : f32 to vector<16x1xf32>
    %109 = arith.divf %107, %108 : vector<16x1xf32>
    %110 = vector.broadcast %102 : vector<16x1xf32> to vector<16x8xf32>
    %111 = arith.subf %94, %110 : vector<16x8xf32>
    %cst_49 = arith.constant 9.99999974E-6 : f32
    %112 = vector.broadcast %cst_49 : f32 to vector<16x1xf32>
    %113 = arith.addf %109, %112 : vector<16x1xf32>
    %114 = math.rsqrt %113 : vector<16x1xf32>
    %115 = vector.broadcast %114 : vector<16x1xf32> to vector<16x8xf32>
    %116 = arith.mulf %111, %115 : vector<16x8xf32>
    %117 = vector.shape_cast %96 : vector<8xf32> to vector<1x8xf32>
    %118 = vector.broadcast %117 : vector<1x8xf32> to vector<16x8xf32>
    %119 = arith.mulf %116, %118 : vector<16x8xf32>
    %120 = vector.shape_cast %98 : vector<8xf32> to vector<1x8xf32>
    %121 = vector.broadcast %120 : vector<1x8xf32> to vector<16x8xf32>
    %122 = arith.addf %119, %121 : vector<16x8xf32>
    %c1 = arith.constant 1 : index
    %c0_50 = arith.constant 0 : index
    %c0_51 = arith.constant 0 : index
    %123 = vector.load %arg2[%c1, %c0_50, %c0_51] : memref<2x8x24xf32, #tpu.memory_space<vmem>>, vector<1x8x24xf32>
    %124 = vector.shape_cast %123 : vector<1x8x24xf32> to vector<8x24xf32>
    %cst_52 = arith.constant dense<0.000000e+00> : vector<16x24xf32>
    %125 = tpu.matmul %122, %124, %cst_52 {dimension_numbers = #tpu.dot_dimension_numbers<[1], [0], [0], [1], [0, 0, 1, 1], [], []>} : vector<16x8xf32>, vector<8x24xf32>, vector<16x24xf32> -> vector<16x24xf32>
    %c1_53 = arith.constant 1 : index
    %c0_54 = arith.constant 0 : index
    %126 = vector.load %arg3[%c1_53, %c0_54] : memref<2x24xf32, #tpu.memory_space<vmem>>, vector<1x24xf32>
    %127 = vector.shape_cast %126 : vector<1x24xf32> to vector<24xf32>
    %128 = vector.shape_cast %127 : vector<24xf32> to vector<1x24xf32>
    %129 = vector.broadcast %128 : vector<1x24xf32> to vector<16x24xf32>
    %130 = arith.addf %125, %129 : vector<16x24xf32>
    %131 = vector.extract_strided_slice %130 {offsets = [0, 0], sizes = [16, 8], strides = [1, 1]} : vector<16x24xf32> to vector<16x8xf32>
    %132 = vector.shape_cast %131 : vector<16x8xf32> to vector<2x8x8xf32>
    %133 = vector.extract_strided_slice %130 {offsets = [0, 8], sizes = [16, 8], strides = [1, 1]} : vector<16x24xf32> to vector<16x8xf32>
    %134 = vector.shape_cast %133 : vector<16x8xf32> to vector<2x8x8xf32>
    %135 = vector.extract_strided_slice %130 {offsets = [0, 16], sizes = [16, 8], strides = [1, 1]} : vector<16x24xf32> to vector<16x8xf32>
    %136 = vector.shape_cast %135 : vector<16x8xf32> to vector<2x8x8xf32>
    %137 = vector.shape_cast %132 : vector<2x8x8xf32> to vector<2x8x1x8xf32>
    %138 = vector.shape_cast %134 : vector<2x8x8xf32> to vector<2x1x8x8xf32>
    %139 = vector.broadcast %137 : vector<2x8x1x8xf32> to vector<2x8x8x8xf32>
    %140 = vector.broadcast %138 : vector<2x1x8x8xf32> to vector<2x8x8x8xf32>
    %141 = arith.mulf %139, %140 : vector<2x8x8x8xf32>
    %cst_55 = arith.constant dense<0xFF800000> : vector<2x8x8xf32>
    %142 = vector.multi_reduction <maximumf>, %141, %cst_55 [2] : vector<2x8x8x8xf32> to vector<2x8x8xf32>
    %143 = vector.shape_cast %142 : vector<2x8x8xf32> to vector<2x8x1x8xf32>
    %144 = vector.broadcast %143 : vector<2x8x1x8xf32> to vector<2x8x8x8xf32>
    %145 = arith.subf %141, %144 : vector<2x8x8x8xf32>
    %146 = math.exp %145 : vector<2x8x8x8xf32>
    %cst_56 = arith.constant dense<0.000000e+00> : vector<2x8x8xf32>
    %147 = vector.multi_reduction <add>, %146, %cst_56 [2] : vector<2x8x8x8xf32> to vector<2x8x8xf32>
    %148 = vector.shape_cast %147 : vector<2x8x8xf32> to vector<2x8x1x8xf32>
    %149 = tpu.reciprocal %148 : vector<2x8x1x8xf32> -> vector<2x8x1x8xf32>
    %150 = vector.broadcast %149 : vector<2x8x1x8xf32> to vector<2x8x8x8xf32>
    %151 = arith.mulf %146, %150 : vector<2x8x8x8xf32>
    %152 = vector.shape_cast %136 : vector<2x8x8xf32> to vector<2x1x8x8xf32>
    %153 = vector.broadcast %152 : vector<2x1x8x8xf32> to vector<2x8x8x8xf32>
    %154 = arith.mulf %151, %153 : vector<2x8x8x8xf32>
    %cst_57 = arith.constant dense<0.000000e+00> : vector<2x8x8xf32>
    %155 = vector.multi_reduction <add>, %154, %cst_57 [2] : vector<2x8x8x8xf32> to vector<2x8x8xf32>
    %156 = vector.shape_cast %155 : vector<2x8x8xf32> to vector<16x8xf32>
    %c1_58 = arith.constant 1 : index
    %c0_59 = arith.constant 0 : index
    %c0_60 = arith.constant 0 : index
    %157 = vector.load %arg4[%c1_58, %c0_59, %c0_60] : memref<2x8x8xf32, #tpu.memory_space<vmem>>, vector<1x8x8xf32>
    %158 = vector.shape_cast %157 : vector<1x8x8xf32> to vector<8x8xf32>
    %cst_61 = arith.constant dense<0.000000e+00> : vector<16x8xf32>
    %159 = tpu.matmul %156, %158, %cst_61 {dimension_numbers = #tpu.dot_dimension_numbers<[1], [0], [0], [1], [0, 0, 1, 1], [], []>} : vector<16x8xf32>, vector<8x8xf32>, vector<16x8xf32> -> vector<16x8xf32>
    %c1_62 = arith.constant 1 : index
    %c0_63 = arith.constant 0 : index
    %160 = vector.load %arg5[%c1_62, %c0_63] : memref<2x8xf32, #tpu.memory_space<vmem>>, vector<1x8xf32>
    %161 = vector.shape_cast %160 : vector<1x8xf32> to vector<8xf32>
    %162 = vector.shape_cast %161 : vector<8xf32> to vector<1x8xf32>
    %163 = vector.broadcast %162 : vector<1x8xf32> to vector<16x8xf32>
    %164 = arith.addf %159, %163 : vector<16x8xf32>
    %165 = arith.addf %122, %164 : vector<16x8xf32>
    %c1_64 = arith.constant 1 : index
    %c0_65 = arith.constant 0 : index
    %166 = vector.load %arg10[%c1_64, %c0_65] : memref<2x8xf32, #tpu.memory_space<vmem>>, vector<1x8xf32>
    %167 = vector.shape_cast %166 : vector<1x8xf32> to vector<8xf32>
    %c1_66 = arith.constant 1 : index
    %c0_67 = arith.constant 0 : index
    %168 = vector.load %arg11[%c1_66, %c0_67] : memref<2x8xf32, #tpu.memory_space<vmem>>, vector<1x8xf32>
    %169 = vector.shape_cast %168 : vector<1x8xf32> to vector<8xf32>
    %cst_68 = arith.constant dense<0.000000e+00> : vector<16xf32>
    %170 = vector.multi_reduction <add>, %165, %cst_68 [1] : vector<16x8xf32> to vector<16xf32>
    %171 = vector.shape_cast %170 : vector<16xf32> to vector<16x1xf32>
    %cst_69 = arith.constant 8.000000e+00 : f32
    %172 = vector.broadcast %cst_69 : f32 to vector<16x1xf32>
    %173 = arith.divf %171, %172 : vector<16x1xf32>
    %174 = vector.broadcast %173 : vector<16x1xf32> to vector<16x8xf32>
    %175 = arith.subf %165, %174 : vector<16x8xf32>
    %176 = arith.mulf %175, %175 : vector<16x8xf32>
    %cst_70 = arith.constant dense<0.000000e+00> : vector<16xf32>
    %177 = vector.multi_reduction <add>, %176, %cst_70 [1] : vector<16x8xf32> to vector<16xf32>
    %178 = vector.shape_cast %177 : vector<16xf32> to vector<16x1xf32>
    %cst_71 = arith.constant 8.000000e+00 : f32
    %179 = vector.broadcast %cst_71 : f32 to vector<16x1xf32>
    %180 = arith.divf %178, %179 : vector<16x1xf32>
    %181 = vector.broadcast %173 : vector<16x1xf32> to vector<16x8xf32>
    %182 = arith.subf %165, %181 : vector<16x8xf32>
    %cst_72 = arith.constant 9.99999974E-6 : f32
    %183 = vector.broadcast %cst_72 : f32 to vector<16x1xf32>
    %184 = arith.addf %180, %183 : vector<16x1xf32>
    %185 = math.rsqrt %184 : vector<16x1xf32>
    %186 = vector.broadcast %185 : vector<16x1xf32> to vector<16x8xf32>
    %187 = arith.mulf %182, %186 : vector<16x8xf32>
    %188 = vector.shape_cast %167 : vector<8xf32> to vector<1x8xf32>
    %189 = vector.broadcast %188 : vector<1x8xf32> to vector<16x8xf32>
    %190 = arith.mulf %187, %189 : vector<16x8xf32>
    %191 = vector.shape_cast %169 : vector<8xf32> to vector<1x8xf32>
    %192 = vector.broadcast %191 : vector<1x8xf32> to vector<16x8xf32>
    %193 = arith.addf %190, %192 : vector<16x8xf32>
    %c1_73 = arith.constant 1 : index
    %c0_74 = arith.constant 0 : index
    %c0_75 = arith.constant 0 : index
    %194 = vector.load %arg6[%c1_73, %c0_74, %c0_75] : memref<2x8x2048xf32, #tpu.memory_space<vmem>>, vector<1x8x2048xf32>
    %195 = vector.shape_cast %194 : vector<1x8x2048xf32> to vector<8x2048xf32>
    %cst_76 = arith.constant dense<0.000000e+00> : vector<16x2048xf32>
    %196 = tpu.matmul %193, %195, %cst_76 {dimension_numbers = #tpu.dot_dimension_numbers<[1], [0], [0], [1], [0, 0, 1, 1], [], []>} : vector<16x8xf32>, vector<8x2048xf32>, vector<16x2048xf32> -> vector<16x2048xf32>
    %c1_77 = arith.constant 1 : index
    %c0_78 = arith.constant 0 : index
    %197 = vector.load %arg7[%c1_77, %c0_78] : memref<2x2048xf32, #tpu.memory_space<vmem>>, vector<1x2048xf32>
    %198 = vector.shape_cast %197 : vector<1x2048xf32> to vector<2048xf32>
    %199 = vector.shape_cast %198 : vector<2048xf32> to vector<1x2048xf32>
    %200 = vector.broadcast %199 : vector<1x2048xf32> to vector<16x2048xf32>
    %201 = arith.addf %196, %200 : vector<16x2048xf32>
    %cst_79 = arith.constant 0.000000e+00 : f32
    %202 = vector.broadcast %cst_79 : f32 to vector<16x2048xf32>
    %203 = arith.maximumf %201, %202 : vector<16x2048xf32>
    %c1_80 = arith.constant 1 : index
    %c0_81 = arith.constant 0 : index
    %c0_82 = arith.constant 0 : index
    %204 = vector.load %arg8[%c1_80, %c0_81, %c0_82] : memref<2x2048x8xf32, #tpu.memory_space<vmem>>, vector<1x2048x8xf32>
    %205 = vector.shape_cast %204 : vector<1x2048x8xf32> to vector<2048x8xf32>
    %cst_83 = arith.constant dense<0.000000e+00> : vector<16x8xf32>
    %206 = tpu.matmul %203, %205, %cst_83 {dimension_numbers = #tpu.dot_dimension_numbers<[1], [0], [0], [1], [0, 0, 1, 1], [], []>} : vector<16x2048xf32>, vector<2048x8xf32>, vector<16x8xf32> -> vector<16x8xf32>
    %c1_84 = arith.constant 1 : index
    %c0_85 = arith.constant 0 : index
    %207 = vector.load %arg9[%c1_84, %c0_85] : memref<2x8xf32, #tpu.memory_space<vmem>>, vector<1x8xf32>
    %208 = vector.shape_cast %207 : vector<1x8xf32> to vector<8xf32>
    %209 = vector.shape_cast %208 : vector<8xf32> to vector<1x8xf32>
    %210 = vector.broadcast %209 : vector<1x8xf32> to vector<16x8xf32>
    %211 = arith.addf %206, %210 : vector<16x8xf32>
    %212 = arith.addf %193, %211 : vector<16x8xf32>
    %c1_86 = arith.constant 1 : index
    %c0_87 = arith.constant 0 : index
    %213 = vector.load %arg12[%c1_86, %c0_87] : memref<2x8xf32, #tpu.memory_space<vmem>>, vector<1x8xf32>
    %214 = vector.shape_cast %213 : vector<1x8xf32> to vector<8xf32>
    %c1_88 = arith.constant 1 : index
    %c0_89 = arith.constant 0 : index
    %215 = vector.load %arg13[%c1_88, %c0_89] : memref<2x8xf32, #tpu.memory_space<vmem>>, vector<1x8xf32>
    %216 = vector.shape_cast %215 : vector<1x8xf32> to vector<8xf32>
    %cst_90 = arith.constant dense<0.000000e+00> : vector<16xf32>
    %217 = vector.multi_reduction <add>, %212, %cst_90 [1] : vector<16x8xf32> to vector<16xf32>
    %218 = vector.shape_cast %217 : vector<16xf32> to vector<16x1xf32>
    %cst_91 = arith.constant 8.000000e+00 : f32
    %219 = vector.broadcast %cst_91 : f32 to vector<16x1xf32>
    %220 = arith.divf %218, %219 : vector<16x1xf32>
    %221 = vector.broadcast %220 : vector<16x1xf32> to vector<16x8xf32>
    %222 = arith.subf %212, %221 : vector<16x8xf32>
    %223 = arith.mulf %222, %222 : vector<16x8xf32>
    %cst_92 = arith.constant dense<0.000000e+00> : vector<16xf32>
    %224 = vector.multi_reduction <add>, %223, %cst_92 [1] : vector<16x8xf32> to vector<16xf32>
    %225 = vector.shape_cast %224 : vector<16xf32> to vector<16x1xf32>
    %cst_93 = arith.constant 8.000000e+00 : f32
    %226 = vector.broadcast %cst_93 : f32 to vector<16x1xf32>
    %227 = arith.divf %225, %226 : vector<16x1xf32>
    %228 = vector.broadcast %220 : vector<16x1xf32> to vector<16x8xf32>
    %229 = arith.subf %212, %228 : vector<16x8xf32>
    %cst_94 = arith.constant 9.99999974E-6 : f32
    %230 = vector.broadcast %cst_94 : f32 to vector<16x1xf32>
    %231 = arith.addf %227, %230 : vector<16x1xf32>
    %232 = math.rsqrt %231 : vector<16x1xf32>
    %233 = vector.broadcast %232 : vector<16x1xf32> to vector<16x8xf32>
    %234 = arith.mulf %229, %233 : vector<16x8xf32>
    %235 = vector.shape_cast %214 : vector<8xf32> to vector<1x8xf32>
    %236 = vector.broadcast %235 : vector<1x8xf32> to vector<16x8xf32>
    %237 = arith.mulf %234, %236 : vector<16x8xf32>
    %238 = vector.shape_cast %216 : vector<8xf32> to vector<1x8xf32>
    %239 = vector.broadcast %238 : vector<1x8xf32> to vector<16x8xf32>
    %240 = arith.addf %237, %239 : vector<16x8xf32>
    %c0_95 = arith.constant 0 : index
    %c0_96 = arith.constant 0 : index
    %241 = vector.load %arg14[%c0_95, %c0_96] : memref<8x64xf32, #tpu.memory_space<vmem>>, vector<8x64xf32>
    %cst_97 = arith.constant dense<0.000000e+00> : vector<16x64xf32>
    %242 = tpu.matmul %240, %241, %cst_97 {dimension_numbers = #tpu.dot_dimension_numbers<[1], [0], [0], [1], [0, 0, 1, 1], [], []>} : vector<16x8xf32>, vector<8x64xf32>, vector<16x64xf32> -> vector<16x64xf32>
    %c0_98 = arith.constant 0 : index
    %c0_99 = arith.constant 0 : index
    %243 = vector.load %arg15[%c0_98, %c0_99] : memref<1x64xf32, #tpu.memory_space<vmem>>, vector<1x64xf32>
    %244 = vector.broadcast %243 : vector<1x64xf32> to vector<16x64xf32>
    %245 = arith.addf %242, %244 : vector<16x64xf32>
    %246 = vector.shape_cast %245 : vector<16x64xf32> to vector<2x8x64xf32>
    %c0_100 = arith.constant 0 : index
    %c0_101 = arith.constant 0 : index
    %c0_102 = arith.constant 0 : index
    %247 = vector.load %arg16[%c0_100, %c0_101, %c0_102] : memref<2x8x64xf32, #tpu.memory_space<vmem>>, vector<2x8x64xf32>
    tpu.vector_store %arg16[%c0_100, %c0_101, %c0_102], %246 {strides = array<i32>} : memref<2x8x64xf32, #tpu.memory_space<vmem>>, vector<2x8x64xf32>,
    return
  }
}

</mosaic_0001>

<llo_original>
// kernel: tpu_custom_call.1
$region0: #{tpu_custom_call.1}
  #allocation0 [shape = 'u32[]', space=smem, size = 0x4, offset = 0x4, fixed_abs, tag = 'smem constant byte address 0x4 - core index']
  #allocation1 [shape = 'u32[144,128]{1,0:T(1,128)}', space=vmem, size = 0x12000, scoped, tag = 'internal scratch']
  %s0 = inlined_call_operand.vmem [shape: f32[2,8,8], index: 0, kind: input, shape index: {}]
  %s1 = inlined_call_operand.vmem [shape: f32[2,1,8], index: 1, kind: input, shape index: {}]
  %s2 = inlined_call_operand.vmem [shape: f32[2,8,24], index: 2, kind: input, shape index: {}]
  %s3 = inlined_call_operand.vmem [shape: f32[2,24], index: 3, kind: input, shape index: {}]
  %s4 = inlined_call_operand.vmem [shape: f32[2,8,8], index: 4, kind: input, shape index: {}]
  %s5 = inlined_call_operand.vmem [shape: f32[2,8], index: 5, kind: input, shape index: {}]
  %s6 = inlined_call_operand.vmem [shape: f32[2,8,2048], index: 6, kind: input, shape index: {}]
  %s7 = inlined_call_operand.vmem [shape: f32[2,2048], index: 7, kind: input, shape index: {}]
  %s8 = inlined_call_operand.vmem [shape: f32[2,2048,8], index: 8, kind: input, shape index: {}]
  %s9 = inlined_call_operand.vmem [shape: f32[2,8], index: 9, kind: input, shape index: {}]
  %s10 = inlined_call_operand.vmem [shape: f32[2,8], index: 10, kind: input, shape index: {}]
  %s11 = inlined_call_operand.vmem [shape: f32[2,8], index: 11, kind: input, shape index: {}]
  %s12 = inlined_call_operand.vmem [shape: f32[2,8], index: 12, kind: input, shape index: {}]
  %s13 = inlined_call_operand.vmem [shape: f32[2,8], index: 13, kind: input, shape index: {}]
  %s14 = inlined_call_operand.vmem [shape: f32[8,64], index: 14, kind: input, shape index: {}]
  %s15 = inlined_call_operand.vmem [shape: f32[1,64], index: 15, kind: input, shape index: {}]
  %s16 = inlined_call_operand.hbm [shape: f32[2,8,64], index: 16, kind: output, shape index: {}]
  %s17 = sld [smem:[#allocation0]]
  $region74: #{tpu_custom_call.1} parent=0
    _
  %s19 = ssub.s32 1, %s17
  %s20 = scalar_select 0, %s19, %s17
  $region1: #{tpu_custom_call.1} parent=0
    #allocation2 [shape = 'u8[8192]{0}', space=vmem, size = 0x2000, scoped, tag = 'output window, operand 0, single buffered']
    #allocation3 [shape = 's32[1]{0}', space=sflag, size = 0x4, scoped, tag = 'scoped memory for tpu_custom_call.1']
    %21 = vsyncpa [#allocation3], 0
    // Predicated region
    $region2: #{tpu_custom_call.1} parent=1 // pred_check
      _
    $region3: #{tpu_custom_call.1} parent=1 // pred_check_branch
      %23 = sbr.rel (0) target = $region5
    $region4: #{tpu_custom_call.1} parent=1 // pred_region
      _
    $region5: #{tpu_custom_call.1} parent=1 // pred_fallthru
      _
    // Predicated region
    $region6: #{tpu_custom_call.1} parent=1 // pred_check
      _
    $region7: #{tpu_custom_call.1} parent=1 // pred_check_branch
      %25 = sbr.rel (0) target = $region9
    $region8: #{tpu_custom_call.1} parent=1 // pred_region
      _
    $region9: #{tpu_custom_call.1} parent=1 // pred_fallthru
      _
    // Predicated region
    $region10: #{tpu_custom_call.1} parent=1 // pred_check
      _
    $region11: #{tpu_custom_call.1} parent=1 // pred_check_branch
      %27 = sbr.rel (0) target = $region13
    $region12: #{tpu_custom_call.1} parent=1 // pred_region
      _
    $region13: #{tpu_custom_call.1} parent=1 // pred_fallthru
      _
    // Predicated region
    $region14: #{tpu_custom_call.1} parent=1 // pred_check
      _
    $region15: #{tpu_custom_call.1} parent=1 // pred_check_branch
      %29 = sbr.rel (0) target = $region17
    $region16: #{tpu_custom_call.1} parent=1 // pred_region
      _
    $region17: #{tpu_custom_call.1} parent=1 // pred_fallthru
      _
    // Predicated region
    $region18: #{tpu_custom_call.1} parent=1 // pred_check
      _
    $region19: #{tpu_custom_call.1} parent=1 // pred_check_branch
      %31 = sbr.rel (0) target = $region21
    $region20: #{tpu_custom_call.1} parent=1 // pred_region
      _
    $region21: #{tpu_custom_call.1} parent=1 // pred_fallthru
      _
    // Predicated region
    $region22: #{tpu_custom_call.1} parent=1 // pred_check
      _
    $region23: #{tpu_custom_call.1} parent=1 // pred_check_branch
      %33 = sbr.rel (0) target = $region25
    $region24: #{tpu_custom_call.1} parent=1 // pred_region
      _
    $region25: #{tpu_custom_call.1} parent=1 // pred_fallthru
      _
    // Predicated region
    $region26: #{tpu_custom_call.1} parent=1 // pred_check
      _
    $region27: #{tpu_custom_call.1} parent=1 // pred_check_branch
      %35 = sbr.rel (0) target = $region29
    $region28: #{tpu_custom_call.1} parent=1 // pred_region
      _
    $region29: #{tpu_custom_call.1} parent=1 // pred_fallthru
      _
    // Predicated region
    $region30: #{tpu_custom_call.1} parent=1 // pred_check
      _
    $region31: #{tpu_custom_call.1} parent=1 // pred_check_branch
      %37 = sbr.rel (0) target = $region33
    $region32: #{tpu_custom_call.1} parent=1 // pred_region
      _
    $region33: #{tpu_custom_call.1} parent=1 // pred_fallthru
      _
    // Predicated region
    $region34: #{tpu_custom_call.1} parent=1 // pred_check
      _
    $region35: #{tpu_custom_call.1} parent=1 // pred_check_branch
      %39 = sbr.rel (0) target = $region37
    $region36: #{tpu_custom_call.1} parent=1 // pred_region
      _
    $region37: #{tpu_custom_call.1} parent=1 // pred_fallthru
      _
    // Predicated region
    $region38: #{tpu_custom_call.1} parent=1 // pred_check
      _
    $region39: #{tpu_custom_call.1} parent=1 // pred_check_branch
      %41 = sbr.rel (0) target = $region41
    $region40: #{tpu_custom_call.1} parent=1 // pred_region
      _
    $region41: #{tpu_custom_call.1} parent=1 // pred_fallthru
      _
    // Predicated region
    $region42: #{tpu_custom_call.1} parent=1 // pred_check
      _
    $region43: #{tpu_custom_call.1} parent=1 // pred_check_branch
      %43 = sbr.rel (0) target = $region45
    $region44: #{tpu_custom_call.1} parent=1 // pred_region
      _
    $region45: #{tpu_custom_call.1} parent=1 // pred_fallthru
      _
    // Predicated region
    $region46: #{tpu_custom_call.1} parent=1 // pred_check
      _
    $region47: #{tpu_custom_call.1} parent=1 // pred_check_branch
      %45 = sbr.rel (0) target = $region49
    $region48: #{tpu_custom_call.1} parent=1 // pred_region
      _
    $region49: #{tpu_custom_call.1} parent=1 // pred_fallthru
      _
    // Predicated region
    $region50: #{tpu_custom_call.1} parent=1 // pred_check
      _
    $region51: #{tpu_custom_call.1} parent=1 // pred_check_branch
      %47 = sbr.rel (0) target = $region53
    $region52: #{tpu_custom_call.1} parent=1 // pred_region
      _
    $region53: #{tpu_custom_call.1} parent=1 // pred_fallthru
      _
    // Predicated region
    $region54: #{tpu_custom_call.1} parent=1 // pred_check
      _
    $region55: #{tpu_custom_call.1} parent=1 // pred_check_branch
      %49 = sbr.rel (0) target = $region57
    $region56: #{tpu_custom_call.1} parent=1 // pred_region
      _
    $region57: #{tpu_custom_call.1} parent=1 // pred_fallthru
      _
    // Predicated region
    $region58: #{tpu_custom_call.1} parent=1 // pred_check
      _
    $region59: #{tpu_custom_call.1} parent=1 // pred_check_branch
      %51 = sbr.rel (0) target = $region61
    $region60: #{tpu_custom_call.1} parent=1 // pred_region
      _
    $region61: #{tpu_custom_call.1} parent=1 // pred_fallthru
      _
    // Predicated region
    $region62: #{tpu_custom_call.1} parent=1 // pred_check
      _
    $region63: #{tpu_custom_call.1} parent=1 // pred_check_branch
      %53 = sbr.rel (0) target = $region65
    $region64: #{tpu_custom_call.1} parent=1 // pred_region
      _
    $region65: #{tpu_custom_call.1} parent=1 // pred_fallthru
      _
    %v54 = vld [vmem:[%s0] sm:$0xff]
    %v55 = vld [vmem:[%s0 + $0x8] sm:$0xff]
    %v56 = vld [vmem:[%s1] sm:$0x1]
    %v57 = vld [vmem:[%s1 + $0x1] sm:$0x1]
    %v60 = vlaneseq
    %v61 = vshrl.u32 %v60, 7
    %v62 = vsub.s32 0, %v61
    %v63 = vrot.slane %v56, %v62
    %v64 = vlaneseq
    %v65 = vshrl.u32 %v64, 7
    %v66 = vsub.s32 0, %v65
    %v67 = vrot.slane %v57, %v66
    %v70 = vadd.f32 %v54, %v63
    %v71 = vadd.f32 %v55, %v67
    %v72 = vld [vmem:[%s2] sm:$0xff]
    %v73 = vld [vmem:[%s3] sm:$0x1]
    %v74 = vlaneseq
    %v75 = vshrl.u32 %v74, 7
    %v76 = vsub.s32 0, %v75
    %v77 = vrot.slane %v73, %v76
    %vm78 = vcmask 64512
    %v80 = vsel %vm78, %v70, 0
    %v83 = vsel %vm78, %v71, 0
    %85 = vmatprep.subr.mxu0 0.0
    %86 = vmatpush1.msra.mxu0 %v72
    %87 = vmatprep.subr.mxu0 0.0
    %88 = vmatpush1.msra.mxu0 0.0
    %89 = vmatprep.subr.mxu0 0.0
    %90 = vmatpush1.msra.mxu0 0.0
    %91 = vmatprep.subr.mxu0 0.0
    %92 = vmatpush1.msra.mxu0 0.0
    %93 = vmatprep.subr.mxu0 0.0
    %94 = vmatpush1.msra.mxu0 0.0
    %95 = vmatprep.subr.mxu0 0.0
    %96 = vmatpush1.msra.mxu0 0.0
    %97 = vmatprep.subr.mxu0 0.0
    %98 = vmatpush1.msra.mxu0 0.0
    %99 = vmatprep.subr.mxu0 0.0
    %100 = vmatpush1.msra.mxu0 0.0
    %101 = vmatprep.subr.mxu0 0.0
    %102 = vmatpush1.msra.mxu0 0.0
    %103 = vmatprep.subr.mxu0 0.0
    %104 = vmatpush1.msra.mxu0 0.0
    %105 = vmatprep.subr.mxu0 0.0
    %106 = vmatpush1.msra.mxu0 0.0
    %107 = vmatprep.subr.mxu0 0.0
    %108 = vmatpush1.msra.mxu0 0.0
    %109 = vmatprep.subr.mxu0 0.0
    %110 = vmatpush1.msra.mxu0 0.0
    %111 = vmatprep.subr.mxu0 0.0
    %112 = vmatpush1.msra.mxu0 0.0
    %113 = vmatprep.subr.mxu0 0.0
    %114 = vmatpush1.msra.mxu0 0.0
    %115 = vmatprep.subr.mxu0 0.0
    %116 = vmatpush1.msra.mxu0 0.0
    %117 = vmatprep.subr.mxu0 0.0
    %118 = vmatpush1.msra.mxu0 0.0
    %119 = vmatprep.subr.mxu0 0.0
    %120 = vmatpush1.msra.mxu0 0.0
    %121 = vmatprep.subr.mxu0 0.0
    %122 = vmatpush1.msra.mxu0 0.0
    %123 = vmatprep.subr.mxu0 0.0
    %124 = vmatpush1.msra.mxu0 0.0
    %125 = vmatprep.subr.mxu0 0.0
    %126 = vmatpush1.msra.mxu0 0.0
    %127 = vmatprep.subr.mxu0 0.0
    %128 = vmatpush1.msra.mxu0 0.0
    %129 = vmatprep.subr.mxu0 0.0
    %130 = vmatpush1.msra.mxu0 0.0
    %131 = vmatprep.subr.mxu0 0.0
    %132 = vmatpush1.msra.mxu0 0.0
    %133 = vmatprep.subr.mxu0 0.0
    %134 = vmatpush1.msra.mxu0 0.0
    %135 = vmatprep.subr.mxu0 0.0
    %136 = vmatpush1.msra.mxu0 0.0
    %137 = vmatprep.subr.mxu0 0.0
    %138 = vmatpush1.msra.mxu0 0.0
    %139 = vmatprep.subr.mxu0 0.0
    %140 = vmatpush1.msra.mxu0 0.0
    %141 = vmatprep.subr.mxu0 0.0
    %142 = vmatpush1.msra.mxu0 0.0
    %143 = vmatprep.subr.mxu0 0.0
    %144 = vmatpush1.msra.mxu0 0.0
    %145 = vmatprep.subr.mxu0 0.0
    %146 = vmatpush1.msra.mxu0 0.0
    %147 = vmatprep.subr.mxu0 0.0
    %148 = vmatpush1.msra.mxu0 0.0
    %149 = vmatprep.mubr.f32.mxu0 0.0
    %150 = vmatmul.mubr.f32.gmra.mrb[0].mxu0 %v80
    %v151 = vpop.f32.mrb[0].mxu0
    %v152 = vadd.f32 %v77, %v151
    %v153 = vpop.f32.mrb[0].mxu0
    %154 = vmatprep.mubr.f32.mxu0 0.0
    %155 = vmatmul.mubr.f32.gmra.mrb[0].mxu0 %v83
    %v156 = vpop.f32.mrb[0].mxu0
    %v157 = vadd.f32 %v77, %v156
    %v158 = vpop.f32.mrb[0].mxu0
    %159 = vdwg.mxu0
    %v162 = vcombine.high %v152, %v152
    %v164 = vunpack.c.l.s4 1966171168
    %v165 = vunpack.c.0.s8 %v164
    %v166 = vlaneseq
    %v167 = vshrl.u32 %v166, 7
    %v168 = vsub.s32 %v165, %v167
    %v169 = vrot.slane %v152, %v168
    %v171 = vunpack.c.l.s4 1966171168
    %v172 = vunpack.c.0.s8 %v171
    %v173 = vlaneseq
    %v174 = vshrl.u32 %v173, 7
    %v175 = vsub.s32 %v172, %v174
    %v176 = vrot.slane %v162, %v175
    %v177 = vcombine.high %v169, %v169
    %v178 = vcombine.high %v176, %v176
    %v180 = vunpack.c.l.s4 1966171168
    %v181 = vunpack.c.0.s8 %v180
    %v182 = vlaneseq
    %v183 = vshrl.u32 %v182, 7
    %v184 = vsub.s32 %v181, %v183
    %v185 = vrot.slane %v169, %v184
    %v187 = vunpack.c.l.s4 1966171168
    %v188 = vunpack.c.0.s8 %v187
    %v189 = vlaneseq
    %v190 = vshrl.u32 %v189, 7
    %v191 = vsub.s32 %v188, %v190
    %v192 = vrot.slane %v176, %v191
    %v194 = vunpack.c.l.s4 1966171168
    %v195 = vunpack.c.0.s8 %v194
    %v196 = vlaneseq
    %v197 = vshrl.u32 %v196, 7
    %v198 = vsub.s32 %v195, %v197
    %v199 = vrot.slane %v177, %v198
    %v201 = vunpack.c.l.s4 1966171168
    %v202 = vunpack.c.0.s8 %v201
    %v203 = vlaneseq
    %v204 = vshrl.u32 %v203, 7
    %v205 = vsub.s32 %v202, %v204
    %v206 = vrot.slane %v178, %v205
    %v207 = vcombine.high %v185, %v185
    %v208 = vcombine.high %v192, %v192
    %v209 = vcombine.high %v199, %v199
    %v210 = vcombine.high %v206, %v206
    %v211 = vcombine.high %v157, %v157
    %v213 = vunpack.c.l.s4 1966171168
    %v214 = vunpack.c.0.s8 %v213
    %v215 = vlaneseq
    %v216 = vshrl.u32 %v215, 7
    %v217 = vsub.s32 %v214, %v216
    %v218 = vrot.slane %v157, %v217
    %v220 = vunpack.c.l.s4 1966171168
    %v221 = vunpack.c.0.s8 %v220
    %v222 = vlaneseq
    %v223 = vshrl.u32 %v222, 7
    %v224 = vsub.s32 %v221, %v223
    %v225 = vrot.slane %v211, %v224
    %v226 = vcombine.high %v218, %v218
    %v227 = vcombine.high %v225, %v225
    %v229 = vunpack.c.l.s4 1966171168
    %v230 = vunpack.c.0.s8 %v229
    %v231 = vlaneseq
    %v232 = vshrl.u32 %v231, 7
    %v233 = vsub.s32 %v230, %v232
    %v234 = vrot.slane %v218, %v233
    %v236 = vunpack.c.l.s4 1966171168
    %v237 = vunpack.c.0.s8 %v236
    %v238 = vlaneseq
    %v239 = vshrl.u32 %v238, 7
    %v240 = vsub.s32 %v237, %v239
    %v241 = vrot.slane %v225, %v240
    %v243 = vunpack.c.l.s4 1966171168
    %v244 = vunpack.c.0.s8 %v243
    %v245 = vlaneseq
    %v246 = vshrl.u32 %v245, 7
    %v247 = vsub.s32 %v244, %v246
    %v248 = vrot.slane %v226, %v247
    %v250 = vunpack.c.l.s4 1966171168
    %v251 = vunpack.c.0.s8 %v250
    %v252 = vlaneseq
    %v253 = vshrl.u32 %v252, 7
    %v254 = vsub.s32 %v251, %v253
    %v255 = vrot.slane %v227, %v254
    %v256 = vcombine.high %v234, %v234
    %v257 = vcombine.high %v241, %v241
    %v258 = vcombine.high %v248, %v248
    %v259 = vcombine.high %v255, %v255
    %v260 = vlaneseq
    %v261 = vshrl.u32 %v260, 7
    %v262 = vsub.s32 0, %v261
    %v263 = vrot.slane %v185, %v262
    %v264 = vlaneseq
    %v265 = vshrl.u32 %v264, 7
    %v266 = vsub.s32 0, %v265
    %v267 = vrot.slane %v199, %v266
    %v268 = vlaneseq
    %v269 = vshrl.u32 %v268, 7
    %v270 = vsub.s32 0, %v269
    %v271 = vrot.slane %v207, %v270
    %v272 = vlaneseq
    %v273 = vshrl.u32 %v272, 7
    %v274 = vsub.s32 0, %v273
    %v275 = vrot.slane %v209, %v274
    %v276 = vlaneseq
    %v277 = vshrl.u32 %v276, 7
    %v278 = vsub.s32 0, %v277
    %v279 = vrot.slane %v192, %v278
    %v280 = vlaneseq
    %v281 = vshrl.u32 %v280, 7
    %v282 = vsub.s32 0, %v281
    %v283 = vrot.slane %v206, %v282
    %v284 = vlaneseq
    %v285 = vshrl.u32 %v284, 7
    %v286 = vsub.s32 0, %v285
    %v287 = vrot.slane %v208, %v286
    %v288 = vlaneseq
    %v289 = vshrl.u32 %v288, 7
    %v290 = vsub.s32 0, %v289
    %v291 = vrot.slane %v210, %v290
    %v292 = vlaneseq
    %v293 = vshrl.u32 %v292, 7
    %v294 = vsub.s32 0, %v293
    %v295 = vrot.slane %v234, %v294
    %v296 = vlaneseq
    %v297 = vshrl.u32 %v296, 7
    %v298 = vsub.s32 0, %v297
    %v299 = vrot.slane %v248, %v298
    %v300 = vlaneseq
    %v301 = vshrl.u32 %v300, 7
    %v302 = vsub.s32 0, %v301
    %v303 = vrot.slane %v256, %v302
    %v304 = vlaneseq
    %v305 = vshrl.u32 %v304, 7
    %v306 = vsub.s32 0, %v305
    %v307 = vrot.slane %v258, %v306
    %v308 = vlaneseq
    %v309 = vshrl.u32 %v308, 7
    %v310 = vsub.s32 0, %v309
    %v311 = vrot.slane %v241, %v310
    %v312 = vlaneseq
    %v313 = vshrl.u32 %v312, 7
    %v314 = vsub.s32 0, %v313
    %v315 = vrot.slane %v255, %v314
    %v316 = vlaneseq
    %v317 = vshrl.u32 %v316, 7
    %v318 = vsub.s32 0, %v317
    %v319 = vrot.slane %v257, %v318
    %v320 = vlaneseq
    %v321 = vshrl.u32 %v320, 7
    %v322 = vsub.s32 0, %v321
    %v323 = vrot.slane %v259, %v322
    %340 = vrot.lane.b32.xlu0 %v152, 120
    %v341 = vpop.permute.xlu0 %340
    %342 = vrot.lane.b32.xlu0 %v157, 120
    %v343 = vpop.permute.xlu0 %342
    %v346 = vmul.f32 %v263, %v341
    %v347 = vmul.f32 %v267, %v341
    %v348 = vmul.f32 %v271, %v341
    %v349 = vmul.f32 %v275, %v341
    %v350 = vmul.f32 %v279, %v341
    %v351 = vmul.f32 %v283, %v341
    %v352 = vmul.f32 %v287, %v341
    %v353 = vmul.f32 %v291, %v341
    %v354 = vmul.f32 %v295, %v343
    %v355 = vmul.f32 %v299, %v343
    %v356 = vmul.f32 %v303, %v343
    %v357 = vmul.f32 %v307, %v343
    %v358 = vmul.f32 %v311, %v343
    %v359 = vmul.f32 %v315, %v343
    %v360 = vmul.f32 %v319, %v343
    %v361 = vmul.f32 %v323, %v343
    %v362 = vsel %vm78, %v346, -inf
    %v363 = vrot.slane %v362, 4
    %v364 = vmax.f32 %v362, %v363
    %v365 = vrot.slane %v364, 2
    %v366 = vmax.f32 %v364, %v365
    %v367 = vrot.slane %v366, 1
    %v368 = vmax.f32 %v366, %v367
    %v369 = vsel %vm78, %v347, -inf
    %v370 = vrot.slane %v369, 4
    %v371 = vmax.f32 %v369, %v370
    %v372 = vrot.slane %v371, 2
    %v373 = vmax.f32 %v371, %v372
    %v374 = vrot.slane %v373, 1
    %v375 = vmax.f32 %v373, %v374
    %v376 = vsel %vm78, %v348, -inf
    %v377 = vrot.slane %v376, 4
    %v378 = vmax.f32 %v376, %v377
    %v379 = vrot.slane %v378, 2
    %v380 = vmax.f32 %v378, %v379
    %v381 = vrot.slane %v380, 1
    %v382 = vmax.f32 %v380, %v381
    %v383 = vsel %vm78, %v349, -inf
    %v384 = vrot.slane %v383, 4
    %v385 = vmax.f32 %v383, %v384
    %v386 = vrot.slane %v385, 2
    %v387 = vmax.f32 %v385, %v386
    %v388 = vrot.slane %v387, 1
    %v389 = vmax.f32 %v387, %v388
    %v390 = vsel %vm78, %v350, -inf
    %v391 = vrot.slane %v390, 4
    %v392 = vmax.f32 %v390, %v391
    %v393 = vrot.slane %v392, 2
    %v394 = vmax.f32 %v392, %v393
    %v395 = vrot.slane %v394, 1
    %v396 = vmax.f32 %v394, %v395
    %v397 = vsel %vm78, %v351, -inf
    %v398 = vrot.slane %v397, 4
    %v399 = vmax.f32 %v397, %v398
    %v400 = vrot.slane %v399, 2
    %v401 = vmax.f32 %v399, %v400
    %v402 = vrot.slane %v401, 1
    %v403 = vmax.f32 %v401, %v402
    %v404 = vsel %vm78, %v352, -inf
    %v405 = vrot.slane %v404, 4
    %v406 = vmax.f32 %v404, %v405
    %v407 = vrot.slane %v406, 2
    %v408 = vmax.f32 %v406, %v407
    %v409 = vrot.slane %v408, 1
    %v410 = vmax.f32 %v408, %v409
    %v411 = vsel %vm78, %v353, -inf
    %v412 = vrot.slane %v411, 4
    %v413 = vmax.f32 %v411, %v412
    %v414 = vrot.slane %v413, 2
    %v415 = vmax.f32 %v413, %v414
    %v416 = vrot.slane %v415, 1
    %v417 = vmax.f32 %v415, %v416
    %v418 = vsel %vm78, %v354, -inf
    %v419 = vrot.slane %v418, 4
    %v420 = vmax.f32 %v418, %v419
    %v421 = vrot.slane %v420, 2
    %v422 = vmax.f32 %v420, %v421
    %v423 = vrot.slane %v422, 1
    %v424 = vmax.f32 %v422, %v423
    %v425 = vsel %vm78, %v355, -inf
    %v426 = vrot.slane %v425, 4
    %v427 = vmax.f32 %v425, %v426
    %v428 = vrot.slane %v427, 2
    %v429 = vmax.f32 %v427, %v428
    %v430 = vrot.slane %v429, 1
    %v431 = vmax.f32 %v429, %v430
    %v432 = vsel %vm78, %v356, -inf
    %v433 = vrot.slane %v432, 4
    %v434 = vmax.f32 %v432, %v433
    %v435 = vrot.slane %v434, 2
    %v436 = vmax.f32 %v434, %v435
    %v437 = vrot.slane %v436, 1
    %v438 = vmax.f32 %v436, %v437
    %v439 = vsel %vm78, %v357, -inf
    %v440 = vrot.slane %v439, 4
    %v441 = vmax.f32 %v439, %v440
    %v442 = vrot.slane %v441, 2
    %v443 = vmax.f32 %v441, %v442
    %v444 = vrot.slane %v443, 1
    %v445 = vmax.f32 %v443, %v444
    %v446 = vsel %vm78, %v358, -inf
    %v447 = vrot.slane %v446, 4
    %v448 = vmax.f32 %v446, %v447
    %v449 = vrot.slane %v448, 2
    %v450 = vmax.f32 %v448, %v449
    %v451 = vrot.slane %v450, 1
    %v452 = vmax.f32 %v450, %v451
    %v453 = vsel %vm78, %v359, -inf
    %v454 = vrot.slane %v453, 4
    %v455 = vmax.f32 %v453, %v454
    %v456 = vrot.slane %v455, 2
    %v457 = vmax.f32 %v455, %v456
    %v458 = vrot.slane %v457, 1
    %v459 = vmax.f32 %v457, %v458
    %v460 = vsel %vm78, %v360, -inf
    %v461 = vrot.slane %v460, 4
    %v462 = vmax.f32 %v460, %v461
    %v463 = vrot.slane %v462, 2
    %v464 = vmax.f32 %v462, %v463
    %v465 = vrot.slane %v464, 1
    %v466 = vmax.f32 %v464, %v465
    %v467 = vsel %vm78, %v361, -inf
    %v468 = vrot.slane %v467, 4
    %v469 = vmax.f32 %v467, %v468
    %v470 = vrot.slane %v469, 2
    %v471 = vmax.f32 %v469, %v470
    %v472 = vrot.slane %v471, 1
    %v473 = vmax.f32 %v471, %v472
    %v474 = vsub.f32 %v346, %v368
    %v475 = vsub.f32 %v347, %v375
    %v476 = vsub.f32 %v348, %v382
    %v477 = vsub.f32 %v349, %v389
    %v478 = vsub.f32 %v350, %v396
    %v479 = vsub.f32 %v351, %v403
    %v480 = vsub.f32 %v352, %v410
    %v481 = vsub.f32 %v353, %v417
    %v482 = vsub.f32 %v354, %v424
    %v483 = vsub.f32 %v355, %v431
    %v484 = vsub.f32 %v356, %v438
    %v485 = vsub.f32 %v357, %v445
    %v486 = vsub.f32 %v358, %v452
    %v487 = vsub.f32 %v359, %v459
    %v488 = vsub.f32 %v360, %v466
    %v489 = vsub.f32 %v361, %v473
    %v490 = vmul.f32 %v474, 1.442695
    %v491 = vpow.pop %v490
    %v492 = vmul.f32 %v475, 1.442695
    %v493 = vpow.pop %v492
    %v494 = vmul.f32 %v476, 1.442695
    %v495 = vpow.pop %v494
    %v496 = vmul.f32 %v477, 1.442695
    %v497 = vpow.pop %v496
    %v498 = vmul.f32 %v478, 1.442695
    %v499 = vpow.pop %v498
    %v500 = vmul.f32 %v479, 1.442695
    %v501 = vpow.pop %v500
    %v502 = vmul.f32 %v480, 1.442695
    %v503 = vpow.pop %v502
    %v504 = vmul.f32 %v481, 1.442695
    %v505 = vpow.pop %v504
    %v506 = vmul.f32 %v482, 1.442695
    %v507 = vpow.pop %v506
    %v508 = vmul.f32 %v483, 1.442695
    %v509 = vpow.pop %v508
    %v510 = vmul.f32 %v484, 1.442695
    %v511 = vpow.pop %v510
    %v512 = vmul.f32 %v485, 1.442695
    %v513 = vpow.pop %v512
    %v514 = vmul.f32 %v486, 1.442695
    %v515 = vpow.pop %v514
    %v516 = vmul.f32 %v487, 1.442695
    %v517 = vpow.pop %v516
    %v518 = vmul.f32 %v488, 1.442695
    %v519 = vpow.pop %v518
    %v520 = vmul.f32 %v489, 1.442695
    %v521 = vpow.pop %v520
    %v522 = vsel %vm78, %v491, 0.0
    %v523 = vrot.slane %v522, 4
    %v524 = vadd.f32 %v522, %v523
    %v525 = vrot.slane %v524, 2
    %v526 = vadd.f32 %v524, %v525
    %v527 = vrot.slane %v526, 1
    %v528 = vadd.f32 %v526, %v527
    %v529 = vsel %vm78, %v493, 0.0
    %v530 = vrot.slane %v529, 4
    %v531 = vadd.f32 %v529, %v530
    %v532 = vrot.slane %v531, 2
    %v533 = vadd.f32 %v531, %v532
    %v534 = vrot.slane %v533, 1
    %v535 = vadd.f32 %v533, %v534
    %v536 = vsel %vm78, %v495, 0.0
    %v537 = vrot.slane %v536, 4
    %v538 = vadd.f32 %v536, %v537
    %v539 = vrot.slane %v538, 2
    %v540 = vadd.f32 %v538, %v539
    %v541 = vrot.slane %v540, 1
    %v542 = vadd.f32 %v540, %v541
    %v543 = vsel %vm78, %v497, 0.0
    %v544 = vrot.slane %v543, 4
    %v545 = vadd.f32 %v543, %v544
    %v546 = vrot.slane %v545, 2
    %v547 = vadd.f32 %v545, %v546
    %v548 = vrot.slane %v547, 1
    %v549 = vadd.f32 %v547, %v548
    %v550 = vsel %vm78, %v499, 0.0
    %v551 = vrot.slane %v550, 4
    %v552 = vadd.f32 %v550, %v551
    %v553 = vrot.slane %v552, 2
    %v554 = vadd.f32 %v552, %v553
    %v555 = vrot.slane %v554, 1
    %v556 = vadd.f32 %v554, %v555
    %v557 = vsel %vm78, %v501, 0.0
    %v558 = vrot.slane %v557, 4
    %v559 = vadd.f32 %v557, %v558
    %v560 = vrot.slane %v559, 2
    %v561 = vadd.f32 %v559, %v560
    %v562 = vrot.slane %v561, 1
    %v563 = vadd.f32 %v561, %v562
    %v564 = vsel %vm78, %v503, 0.0
    %v565 = vrot.slane %v564, 4
    %v566 = vadd.f32 %v564, %v565
    %v567 = vrot.slane %v566, 2
    %v568 = vadd.f32 %v566, %v567
    %v569 = vrot.slane %v568, 1
    %v570 = vadd.f32 %v568, %v569
    %v571 = vsel %vm78, %v505, 0.0
    %v572 = vrot.slane %v571, 4
    %v573 = vadd.f32 %v571, %v572
    %v574 = vrot.slane %v573, 2
    %v575 = vadd.f32 %v573, %v574
    %v576 = vrot.slane %v575, 1
    %v577 = vadd.f32 %v575, %v576
    %v578 = vsel %vm78, %v507, 0.0
    %v579 = vrot.slane %v578, 4
    %v580 = vadd.f32 %v578, %v579
    %v581 = vrot.slane %v580, 2
    %v582 = vadd.f32 %v580, %v581
    %v583 = vrot.slane %v582, 1
    %v584 = vadd.f32 %v582, %v583
    %v585 = vsel %vm78, %v509, 0.0
    %v586 = vrot.slane %v585, 4
    %v587 = vadd.f32 %v585, %v586
    %v588 = vrot.slane %v587, 2
    %v589 = vadd.f32 %v587, %v588
    %v590 = vrot.slane %v589, 1
    %v591 = vadd.f32 %v589, %v590
    %v592 = vsel %vm78, %v511, 0.0
    %v593 = vrot.slane %v592, 4
    %v594 = vadd.f32 %v592, %v593
    %v595 = vrot.slane %v594, 2
    %v596 = vadd.f32 %v594, %v595
    %v597 = vrot.slane %v596, 1
    %v598 = vadd.f32 %v596, %v597
    %v599 = vsel %vm78, %v513, 0.0
    %v600 = vrot.slane %v599, 4
    %v601 = vadd.f32 %v599, %v600
    %v602 = vrot.slane %v601, 2
    %v603 = vadd.f32 %v601, %v602
    %v604 = vrot.slane %v603, 1
    %v605 = vadd.f32 %v603, %v604
    %v606 = vsel %vm78, %v515, 0.0
    %v607 = vrot.slane %v606, 4
    %v608 = vadd.f32 %v606, %v607
    %v609 = vrot.slane %v608, 2
    %v610 = vadd.f32 %v608, %v609
    %v611 = vrot.slane %v610, 1
    %v612 = vadd.f32 %v610, %v611
    %v613 = vsel %vm78, %v517, 0.0
    %v614 = vrot.slane %v613, 4
    %v615 = vadd.f32 %v613, %v614
    %v616 = vrot.slane %v615, 2
    %v617 = vadd.f32 %v615, %v616
    %v618 = vrot.slane %v617, 1
    %v619 = vadd.f32 %v617, %v618
    %v620 = vsel %vm78, %v519, 0.0
    %v621 = vrot.slane %v620, 4
    %v622 = vadd.f32 %v620, %v621
    %v623 = vrot.slane %v622, 2
    %v624 = vadd.f32 %v622, %v623
    %v625 = vrot.slane %v624, 1
    %v626 = vadd.f32 %v624, %v625
    %v627 = vsel %vm78, %v521, 0.0
    %v628 = vrot.slane %v627, 4
    %v629 = vadd.f32 %v627, %v628
    %v630 = vrot.slane %v629, 2
    %v631 = vadd.f32 %v629, %v630
    %v632 = vrot.slane %v631, 1
    %v633 = vadd.f32 %v631, %v632
    %v634 = vrcp.pop %v528
    %v635 = vrcp.pop %v535
    %v636 = vrcp.pop %v542
    %v637 = vrcp.pop %v549
    %v638 = vrcp.pop %v556
    %v639 = vrcp.pop %v563
    %v640 = vrcp.pop %v570
    %v641 = vrcp.pop %v577
    %v642 = vrcp.pop %v584
    %v643 = vrcp.pop %v591
    %v644 = vrcp.pop %v598
    %v645 = vrcp.pop %v605
    %v646 = vrcp.pop %v612
    %v647 = vrcp.pop %v619
    %v648 = vrcp.pop %v626
    %v649 = vrcp.pop %v633
    %v650 = vmul.f32 %v491, %v634
    %v651 = vmul.f32 %v493, %v635
    %v652 = vmul.f32 %v495, %v636
    %v653 = vmul.f32 %v497, %v637
    %v654 = vmul.f32 %v499, %v638
    %v655 = vmul.f32 %v501, %v639
    %v656 = vmul.f32 %v503, %v640
    %v657 = vmul.f32 %v505, %v641
    %v658 = vmul.f32 %v507, %v642
    %v659 = vmul.f32 %v509, %v643
    %v660 = vmul.f32 %v511, %v644
    %v661 = vmul.f32 %v513, %v645
    %v662 = vmul.f32 %v515, %v646
    %v663 = vmul.f32 %v517, %v647
    %v664 = vmul.f32 %v519, %v648
    %v665 = vmul.f32 %v521, %v649
    %666 = vrot.lane.b32.xlu0 %v152, 112
    %v667 = vpop.permute.xlu0 %666
    %668 = vrot.lane.b32.xlu0 %v157, 112
    %v669 = vpop.permute.xlu0 %668
    %v672 = vmul.f32 %v650, %v667
    %v673 = vmul.f32 %v651, %v667
    %v674 = vmul.f32 %v652, %v667
    %v675 = vmul.f32 %v653, %v667
    %v676 = vmul.f32 %v654, %v667
    %v677 = vmul.f32 %v655, %v667
    %v678 = vmul.f32 %v656, %v667
    %v679 = vmul.f32 %v657, %v667
    %v680 = vmul.f32 %v658, %v669
    %v681 = vmul.f32 %v659, %v669
    %v682 = vmul.f32 %v660, %v669
    %v683 = vmul.f32 %v661, %v669
    %v684 = vmul.f32 %v662, %v669
    %v685 = vmul.f32 %v663, %v669
    %v686 = vmul.f32 %v664, %v669
    %v687 = vmul.f32 %v665, %v669
    %v688 = vsel %vm78, %v672, 0.0
    %v689 = vrot.slane %v688, 4
    %v690 = vadd.f32 %v688, %v689
    %v691 = vrot.slane %v690, 2
    %v692 = vadd.f32 %v690, %v691
    %v693 = vrot.slane %v692, 1
    %v694 = vadd.f32 %v692, %v693
    %v695 = vsel %vm78, %v673, 0.0
    %v696 = vrot.slane %v695, 4
    %v697 = vadd.f32 %v695, %v696
    %v698 = vrot.slane %v697, 2
    %v699 = vadd.f32 %v697, %v698
    %v700 = vrot.slane %v699, 1
    %v701 = vadd.f32 %v699, %v700
    %v702 = vsel %vm78, %v674, 0.0
    %v703 = vrot.slane %v702, 4
    %v704 = vadd.f32 %v702, %v703
    %v705 = vrot.slane %v704, 2
    %v706 = vadd.f32 %v704, %v705
    %v707 = vrot.slane %v706, 1
    %v708 = vadd.f32 %v706, %v707
    %v709 = vsel %vm78, %v675, 0.0
    %v710 = vrot.slane %v709, 4
    %v711 = vadd.f32 %v709, %v710
    %v712 = vrot.slane %v711, 2
    %v713 = vadd.f32 %v711, %v712
    %v714 = vrot.slane %v713, 1
    %v715 = vadd.f32 %v713, %v714
    %v716 = vsel %vm78, %v676, 0.0
    %v717 = vrot.slane %v716, 4
    %v718 = vadd.f32 %v716, %v717
    %v719 = vrot.slane %v718, 2
    %v720 = vadd.f32 %v718, %v719
    %v721 = vrot.slane %v720, 1
    %v722 = vadd.f32 %v720, %v721
    %v723 = vsel %vm78, %v677, 0.0
    %v724 = vrot.slane %v723, 4
    %v725 = vadd.f32 %v723, %v724
    %v726 = vrot.slane %v725, 2
    %v727 = vadd.f32 %v725, %v726
    %v728 = vrot.slane %v727, 1
    %v729 = vadd.f32 %v727, %v728
    %v730 = vsel %vm78, %v678, 0.0
    %v731 = vrot.slane %v730, 4
    %v732 = vadd.f32 %v730, %v731
    %v733 = vrot.slane %v732, 2
    %v734 = vadd.f32 %v732, %v733
    %v735 = vrot.slane %v734, 1
    %v736 = vadd.f32 %v734, %v735
    %v737 = vsel %vm78, %v679, 0.0
    %v738 = vrot.slane %v737, 4
    %v739 = vadd.f32 %v737, %v738
    %v740 = vrot.slane %v739, 2
    %v741 = vadd.f32 %v739, %v740
    %v742 = vrot.slane %v741, 1
    %v743 = vadd.f32 %v741, %v742
    %v744 = vsel %vm78, %v680, 0.0
    %v745 = vrot.slane %v744, 4
    %v746 = vadd.f32 %v744, %v745
    %v747 = vrot.slane %v746, 2
    %v748 = vadd.f32 %v746, %v747
    %v749 = vrot.slane %v748, 1
    %v750 = vadd.f32 %v748, %v749
    %v751 = vsel %vm78, %v681, 0.0
    %v752 = vrot.slane %v751, 4
    %v753 = vadd.f32 %v751, %v752
    %v754 = vrot.slane %v753, 2
    %v755 = vadd.f32 %v753, %v754
    %v756 = vrot.slane %v755, 1
    %v757 = vadd.f32 %v755, %v756
    %v758 = vsel %vm78, %v682, 0.0
    %v759 = vrot.slane %v758, 4
    %v760 = vadd.f32 %v758, %v759
    %v761 = vrot.slane %v760, 2
    %v762 = vadd.f32 %v760, %v761
    %v763 = vrot.slane %v762, 1
    %v764 = vadd.f32 %v762, %v763
    %v765 = vsel %vm78, %v683, 0.0
    %v766 = vrot.slane %v765, 4
    %v767 = vadd.f32 %v765, %v766
    %v768 = vrot.slane %v767, 2
    %v769 = vadd.f32 %v767, %v768
    %v770 = vrot.slane %v769, 1
    %v771 = vadd.f32 %v769, %v770
    %v772 = vsel %vm78, %v684, 0.0
    %v773 = vrot.slane %v772, 4
    %v774 = vadd.f32 %v772, %v773
    %v775 = vrot.slane %v774, 2
    %v776 = vadd.f32 %v774, %v775
    %v777 = vrot.slane %v776, 1
    %v778 = vadd.f32 %v776, %v777
    %v779 = vsel %vm78, %v685, 0.0
    %v780 = vrot.slane %v779, 4
    %v781 = vadd.f32 %v779, %v780
    %v782 = vrot.slane %v781, 2
    %v783 = vadd.f32 %v781, %v782
    %v784 = vrot.slane %v783, 1
    %v785 = vadd.f32 %v783, %v784
    %v786 = vsel %vm78, %v686, 0.0
    %v787 = vrot.slane %v786, 4
    %v788 = vadd.f32 %v786, %v787
    %v789 = vrot.slane %v788, 2
    %v790 = vadd.f32 %v788, %v789
    %v791 = vrot.slane %v790, 1
    %v792 = vadd.f32 %v790, %v791
    %v793 = vsel %vm78, %v687, 0.0
    %v794 = vrot.slane %v793, 4
    %v795 = vadd.f32 %v793, %v794
    %v796 = vrot.slane %v795, 2
    %v797 = vadd.f32 %v795, %v796
    %v798 = vrot.slane %v797, 1
    %v799 = vadd.f32 %v797, %v798
    %v800 = vld [vmem:[%s4] sm:$0xff]
    %v801 = vld [vmem:[%s5] sm:$0x1]
    %v802 = vlaneseq
    %v803 = vshrl.u32 %v802, 7
    %v804 = vsub.s32 0, %v803
    %v805 = vrot.slane %v801, %v804
    %vm822 = vcmask 1041409
    %v823 = vsel %vm822, %v701, %v694
    %vm824 = vcmask 1042434
    %v825 = vsel %vm824, %v708, %v823
    %vm826 = vcmask 1043459
    %v827 = vsel %vm826, %v715, %v825
    %vm828 = vcmask 1044484
    %v829 = vsel %vm828, %v722, %v827
    %vm830 = vcmask 1045509
    %v831 = vsel %vm830, %v729, %v829
    %vm832 = vcmask 1046534
    %v833 = vsel %vm832, %v736, %v831
    %vm834 = vcmask 1047559
    %v835 = vsel %vm834, %v743, %v833
    %v836 = vsel %vm822, %v757, %v750
    %v837 = vsel %vm824, %v764, %v836
    %v838 = vsel %vm826, %v771, %v837
    %v839 = vsel %vm828, %v778, %v838
    %v840 = vsel %vm830, %v785, %v839
    %v841 = vsel %vm832, %v792, %v840
    %v842 = vsel %vm834, %v799, %v841
    %v843 = vsel %vm78, %v835, 0
    %v845 = vsel %vm78, %v842, 0
    %847 = vmatprep.subr.mxu0 0.0
    %848 = vmatpush1.msra.mxu0 %v800
    %849 = vmatprep.subr.mxu0 0.0
    %850 = vmatpush1.msra.mxu0 0.0
    %851 = vmatprep.subr.mxu0 0.0
    %852 = vmatpush1.msra.mxu0 0.0
    %853 = vmatprep.subr.mxu0 0.0
    %854 = vmatpush1.msra.mxu0 0.0
    %855 = vmatprep.subr.mxu0 0.0
    %856 = vmatpush1.msra.mxu0 0.0
    %857 = vmatprep.subr.mxu0 0.0
    %858 = vmatpush1.msra.mxu0 0.0
    %859 = vmatprep.subr.mxu0 0.0
    %860 = vmatpush1.msra.mxu0 0.0
    %861 = vmatprep.subr.mxu0 0.0
    %862 = vmatpush1.msra.mxu0 0.0
    %863 = vmatprep.subr.mxu0 0.0
    %864 = vmatpush1.msra.mxu0 0.0
    %865 = vmatprep.subr.mxu0 0.0
    %866 = vmatpush1.msra.mxu0 0.0
    %867 = vmatprep.subr.mxu0 0.0
    %868 = vmatpush1.msra.mxu0 0.0
    %869 = vmatprep.subr.mxu0 0.0
    %870 = vmatpush1.msra.mxu0 0.0
    %871 = vmatprep.subr.mxu0 0.0
    %872 = vmatpush1.msra.mxu0 0.0
    %873 = vmatprep.subr.mxu0 0.0
    %874 = vmatpush1.msra.mxu0 0.0
    %875 = vmatprep.subr.mxu0 0.0
    %876 = vmatpush1.msra.mxu0 0.0
    %877 = vmatprep.subr.mxu0 0.0
    %878 = vmatpush1.msra.mxu0 0.0
    %879 = vmatprep.subr.mxu0 0.0
    %880 = vmatpush1.msra.mxu0 0.0
    %881 = vmatprep.subr.mxu0 0.0
    %882 = vmatpush1.msra.mxu0 0.0
    %883 = vmatprep.subr.mxu0 0.0
    %884 = vmatpush1.msra.mxu0 0.0
    %885 = vmatprep.subr.mxu0 0.0
    %886 = vmatpush1.msra.mxu0 0.0
    %887 = vmatprep.subr.mxu0 0.0
    %888 = vmatpush1.msra.mxu0 0.0
    %889 = vmatprep.subr.mxu0 0.0
    %890 = vmatpush1.msra.mxu0 0.0
    %891 = vmatprep.subr.mxu0 0.0
    %892 = vmatpush1.msra.mxu0 0.0
    %893 = vmatprep.subr.mxu0 0.0
    %894 = vmatpush1.msra.mxu0 0.0
    %895 = vmatprep.subr.mxu0 0.0
    %896 = vmatpush1.msra.mxu0 0.0
    %897 = vmatprep.subr.mxu0 0.0
    %898 = vmatpush1.msra.mxu0 0.0
    %899 = vmatprep.subr.mxu0 0.0
    %900 = vmatpush1.msra.mxu0 0.0
    %901 = vmatprep.subr.mxu0 0.0
    %902 = vmatpush1.msra.mxu0 0.0
    %903 = vmatprep.subr.mxu0 0.0
    %904 = vmatpush1.msra.mxu0 0.0
    %905 = vmatprep.subr.mxu0 0.0
    %906 = vmatpush1.msra.mxu0 0.0
    %907 = vmatprep.subr.mxu0 0.0
    %908 = vmatpush1.msra.mxu0 0.0
    %909 = vmatprep.subr.mxu0 0.0
    %910 = vmatpush1.msra.mxu0 0.0
    %911 = vmatprep.mubr.f32.mxu0 0.0
    %912 = vmatmul.mubr.f32.gmra.mrb[0].mxu0 %v843
    %v913 = vpop.f32.mrb[0].mxu0
    %v914 = vadd.f32 %v805, %v913
    %v915 = vpop.f32.mrb[0].mxu0
    %916 = vmatprep.mubr.f32.mxu0 0.0
    %917 = vmatmul.mubr.f32.gmra.mrb[0].mxu0 %v845
    %v918 = vpop.f32.mrb[0].mxu0
    %v919 = vadd.f32 %v805, %v918
    %v920 = vpop.f32.mrb[0].mxu0
    %921 = vdwg.mxu0
    %v922 = vadd.f32 %v70, %v914
    %v923 = vadd.f32 %v71, %v919
    %v924 = vld [vmem:[%s10] sm:$0x1]
    %v925 = vld [vmem:[%s11] sm:$0x1]
    %v926 = vsel %vm78, %v922, 0.0
    %927 = vadd.xlane.f32.xlu0 %v926
    %v928 = vpop.xlane.xlu0 %927
    %v929 = vsel %vm78, %v923, 0.0
    %930 = vadd.xlane.f32.xlu0 %v929
    %v931 = vpop.xlane.xlu0 %930
    %v932 = vrcp.pop 8.0
    %v933 = vmul.f32 %v928, %v932
    %v934 = vmul.f32 %v931, %v932
    %v935 = vsub.f32 %v922, %v933
    %v936 = vsub.f32 %v923, %v934
    %v937 = vmul.f32 %v935, %v935
    %v938 = vmul.f32 %v936, %v936
    %v939 = vsel %vm78, %v937, 0.0
    %940 = vadd.xlane.f32.xlu0 %v939
    %v941 = vpop.xlane.xlu0 %940
    %v942 = vsel %vm78, %v938, 0.0
    %943 = vadd.xlane.f32.xlu0 %v942
    %v944 = vpop.xlane.xlu0 %943
    %v945 = vmul.f32 %v941, %v932
    %v946 = vmul.f32 %v944, %v932
    %v947 = vadd.f32 %v945, 1e-05
    %v948 = vadd.f32 %v946, 1e-05
    %v949 = vrsqrt.pop %v947
    %v950 = vrsqrt.pop %v948
    %v951 = vmul.f32 %v935, %v949
    %v952 = vmul.f32 %v936, %v950
    %v953 = vlaneseq
    %v954 = vshrl.u32 %v953, 7
    %v955 = vsub.s32 0, %v954
    %v956 = vrot.slane %v924, %v955
    %v957 = vmul.f32 %v951, %v956
    %v958 = vmul.f32 %v952, %v956
    %v959 = vlaneseq
    %v960 = vshrl.u32 %v959, 7
    %v961 = vsub.s32 0, %v960
    %v962 = vrot.slane %v925, %v961
    %v963 = vadd.f32 %v957, %v962
    %v964 = vadd.f32 %v958, %v962
    %v965 = vld [vmem:[%s6] sm:$0xff]
    %v966 = vld [vmem:[%s6 + $0x8] sm:$0xff]
    %v967 = vld [vmem:[%s6 + $0x10] sm:$0xff]
    %v968 = vld [vmem:[%s6 + $0x18] sm:$0xff]
    %v969 = vld [vmem:[%s6 + $0x20] sm:$0xff]
    %v970 = vld [vmem:[%s6 + $0x28] sm:$0xff]
    %v971 = vld [vmem:[%s6 + $0x30] sm:$0xff]
    %v972 = vld [vmem:[%s6 + $0x38] sm:$0xff]
    %v973 = vld [vmem:[%s6 + $0x40] sm:$0xff]
    %v974 = vld [vmem:[%s6 + $0x48] sm:$0xff]
    %v975 = vld [vmem:[%s6 + $0x50] sm:$0xff]
    %v976 = vld [vmem:[%s6 + $0x58] sm:$0xff]
    %v977 = vld [vmem:[%s6 + $0x60] sm:$0xff]
    %v978 = vld [vmem:[%s6 + $0x68] sm:$0xff]
    %v979 = vld [vmem:[%s6 + $0x70] sm:$0xff]
    %v980 = vld [vmem:[%s6 + $0x78] sm:$0xff]
    %v981 = vld [vmem:[%s7] ss:$2 sm:$0xff]
    %s982 = scalar_lea.vmem %s7, 16
    %v983 = vld [vmem:[%s982] ss:$2 sm:$0xff]
    %v986 = vlaneseq
    %v987 = vshrl.u32 %v986, 7
    %v988 = vsub.s32 0, %v987
    %v989 = vrot.slane %v981, %v988
    %v990 = vlaneseq
    %v991 = vshrl.u32 %v990, 7
    %v992 = vsub.s32 1, %v991
    %v993 = vrot.slane %v981, %v992
    %v994 = vlaneseq
    %v995 = vshrl.u32 %v994, 7
    %v996 = vsub.s32 2, %v995
    %v997 = vrot.slane %v981, %v996
    %v998 = vlaneseq
    %v999 = vshrl.u32 %v998, 7
    %v1000 = vsub.s32 3, %v999
    %v1001 = vrot.slane %v981, %v1000
    %v1002 = vlaneseq
    %v1003 = vshrl.u32 %v1002, 7
    %v1004 = vsub.s32 4, %v1003
    %v1005 = vrot.slane %v981, %v1004
    %v1006 = vlaneseq
    %v1007 = vshrl.u32 %v1006, 7
    %v1008 = vsub.s32 5, %v1007
    %v1009 = vrot.slane %v981, %v1008
    %v1010 = vlaneseq
    %v1011 = vshrl.u32 %v1010, 7
    %v1012 = vsub.s32 6, %v1011
    %v1013 = vrot.slane %v981, %v1012
    %v1014 = vlaneseq
    %v1015 = vshrl.u32 %v1014, 7
    %v1016 = vsub.s32 7, %v1015
    %v1017 = vrot.slane %v981, %v1016
    %v1018 = vlaneseq
    %v1019 = vshrl.u32 %v1018, 7
    %v1020 = vsub.s32 0, %v1019
    %v1021 = vrot.slane %v983, %v1020
    %v1022 = vlaneseq
    %v1023 = vshrl.u32 %v1022, 7
    %v1024 = vsub.s32 1, %v1023
    %v1025 = vrot.slane %v983, %v1024
    %v1026 = vlaneseq
    %v1027 = vshrl.u32 %v1026, 7
    %v1028 = vsub.s32 2, %v1027
    %v1029 = vrot.slane %v983, %v1028
    %v1030 = vlaneseq
    %v1031 = vshrl.u32 %v1030, 7
    %v1032 = vsub.s32 3, %v1031
    %v1033 = vrot.slane %v983, %v1032
    %v1034 = vlaneseq
    %v1035 = vshrl.u32 %v1034, 7
    %v1036 = vsub.s32 4, %v1035
    %v1037 = vrot.slane %v983, %v1036
    %v1038 = vlaneseq
    %v1039 = vshrl.u32 %v1038, 7
    %v1040 = vsub.s32 5, %v1039
    %v1041 = vrot.slane %v983, %v1040
    %v1042 = vlaneseq
    %v1043 = vshrl.u32 %v1042, 7
    %v1044 = vsub.s32 6, %v1043
    %v1045 = vrot.slane %v983, %v1044
    %v1046 = vlaneseq
    %v1047 = vshrl.u32 %v1046, 7
    %v1048 = vsub.s32 7, %v1047
    %v1049 = vrot.slane %v983, %v1048
    %v1067 = vsel %vm78, %v963, 0
    %v1070 = vsel %vm78, %v964, 0
    %1072 = vmatprep.subr.mxu0 %v966
    %1073 = vmatpush1.msra.mxu0 %v965
    %1074 = vmatprep.subr.mxu0 0.0
    %1075 = vmatpush1.msra.mxu0 0.0
    %1076 = vmatprep.subr.mxu0 0.0
    %1077 = vmatpush1.msra.mxu0 0.0
    %1078 = vmatprep.subr.mxu0 0.0
    %1079 = vmatpush1.msra.mxu0 0.0
    %1080 = vmatprep.subr.mxu0 0.0
    %1081 = vmatpush1.msra.mxu0 0.0
    %1082 = vmatprep.subr.mxu0 0.0
    %1083 = vmatpush1.msra.mxu0 0.0
    %1084 = vmatprep.subr.mxu0 0.0
    %1085 = vmatpush1.msra.mxu0 0.0
    %1086 = vmatprep.subr.mxu0 0.0
    %1087 = vmatpush1.msra.mxu0 0.0
    %1088 = vmatprep.subr.mxu0 0.0
    %1089 = vmatpush1.msra.mxu0 0.0
    %1090 = vmatprep.subr.mxu0 0.0
    %1091 = vmatpush1.msra.mxu0 0.0
    %1092 = vmatprep.subr.mxu0 0.0
    %1093 = vmatpush1.msra.mxu0 0.0
    %1094 = vmatprep.subr.mxu0 0.0
    %1095 = vmatpush1.msra.mxu0 0.0
    %1096 = vmatprep.subr.mxu0 0.0
    %1097 = vmatpush1.msra.mxu0 0.0
    %1098 = vmatprep.subr.mxu0 0.0
    %1099 = vmatpush1.msra.mxu0 0.0
    %1100 = vmatprep.subr.mxu0 0.0
    %1101 = vmatpush1.msra.mxu0 0.0
    %1102 = vmatprep.subr.mxu0 0.0
    %1103 = vmatpush1.msra.mxu0 0.0
    %1104 = vmatprep.subr.mxu0 0.0
    %1105 = vmatpush1.msra.mxu0 0.0
    %1106 = vmatprep.subr.mxu0 0.0
    %1107 = vmatpush1.msra.mxu0 0.0
    %1108 = vmatprep.subr.mxu0 0.0
    %1109 = vmatpush1.msra.mxu0 0.0
    %1110 = vmatprep.subr.mxu0 0.0
    %1111 = vmatpush1.msra.mxu0 0.0
    %1112 = vmatprep.subr.mxu0 0.0
    %1113 = vmatpush1.msra.mxu0 0.0
    %1114 = vmatprep.subr.mxu0 0.0
    %1115 = vmatpush1.msra.mxu0 0.0
    %1116 = vmatprep.subr.mxu0 0.0
    %1117 = vmatpush1.msra.mxu0 0.0
    %1118 = vmatprep.subr.mxu0 0.0
    %1119 = vmatpush1.msra.mxu0 0.0
    %1120 = vmatprep.subr.mxu0 0.0
    %1121 = vmatpush1.msra.mxu0 0.0
    %1122 = vmatprep.subr.mxu0 0.0
    %1123 = vmatpush1.msra.mxu0 0.0
    %1124 = vmatprep.subr.mxu0 0.0
    %1125 = vmatpush1.msra.mxu0 0.0
    %1126 = vmatprep.subr.mxu0 0.0
    %1127 = vmatpush1.msra.mxu0 0.0
    %1128 = vmatprep.subr.mxu0 0.0
    %1129 = vmatpush1.msra.mxu0 0.0
    %1130 = vmatprep.subr.mxu0 0.0
    %1131 = vmatpush1.msra.mxu0 0.0
    %1132 = vmatprep.subr.mxu0 0.0
    %1133 = vmatpush1.msra.mxu0 0.0
    %1134 = vmatprep.subr.mxu0 0.0
    %1135 = vmatpush1.msra.mxu0 0.0
    %1136 = vmatprep.mubr.f32.mxu0 0.0
    %1137 = vmatmul.mubr.f32.gmra.mrb[0].mxu0 %v1067
    %v1138 = vpop.f32.mrb[0].mxu0
    %v1139 = vadd.f32 %v989, %v1138
    %v1140 = vpop.f32.mrb[0].mxu0
    %v1141 = vadd.f32 %v993, %v1140
    %1142 = vmatprep.mubr.f32.mxu0 0.0
    %1143 = vmatmul.mubr.f32.gmra.mrb[0].mxu0 %v1070
    %v1144 = vpop.f32.mrb[0].mxu0
    %v1145 = vadd.f32 %v989, %v1144
    %v1146 = vpop.f32.mrb[0].mxu0
    %v1147 = vadd.f32 %v993, %v1146
    %1148 = vdwg.mxu0
    %1149 = vmatprep.subr.mxu0 %v968
    %1150 = vmatpush1.msra.mxu0 %v967
    %1151 = vmatprep.subr.mxu0 0.0
    %1152 = vmatpush1.msra.mxu0 0.0
    %1153 = vmatprep.subr.mxu0 0.0
    %1154 = vmatpush1.msra.mxu0 0.0
    %1155 = vmatprep.subr.mxu0 0.0
    %1156 = vmatpush1.msra.mxu0 0.0
    %1157 = vmatprep.subr.mxu0 0.0
    %1158 = vmatpush1.msra.mxu0 0.0
    %1159 = vmatprep.subr.mxu0 0.0
    %1160 = vmatpush1.msra.mxu0 0.0
    %1161 = vmatprep.subr.mxu0 0.0
    %1162 = vmatpush1.msra.mxu0 0.0
    %1163 = vmatprep.subr.mxu0 0.0
    %1164 = vmatpush1.msra.mxu0 0.0
    %1165 = vmatprep.subr.mxu0 0.0
    %1166 = vmatpush1.msra.mxu0 0.0
    %1167 = vmatprep.subr.mxu0 0.0
    %1168 = vmatpush1.msra.mxu0 0.0
    %1169 = vmatprep.subr.mxu0 0.0
    %1170 = vmatpush1.msra.mxu0 0.0
    %1171 = vmatprep.subr.mxu0 0.0
    %1172 = vmatpush1.msra.mxu0 0.0
    %1173 = vmatprep.subr.mxu0 0.0
    %1174 = vmatpush1.msra.mxu0 0.0
    %1175 = vmatprep.subr.mxu0 0.0
    %1176 = vmatpush1.msra.mxu0 0.0
    %1177 = vmatprep.subr.mxu0 0.0
    %1178 = vmatpush1.msra.mxu0 0.0
    %1179 = vmatprep.subr.mxu0 0.0
    %1180 = vmatpush1.msra.mxu0 0.0
    %1181 = vmatprep.subr.mxu0 0.0
    %1182 = vmatpush1.msra.mxu0 0.0
    %1183 = vmatprep.subr.mxu0 0.0
    %1184 = vmatpush1.msra.mxu0 0.0
    %1185 = vmatprep.subr.mxu0 0.0
    %1186 = vmatpush1.msra.mxu0 0.0
    %1187 = vmatprep.subr.mxu0 0.0
    %1188 = vmatpush1.msra.mxu0 0.0
    %1189 = vmatprep.subr.mxu0 0.0
    %1190 = vmatpush1.msra.mxu0 0.0
    %1191 = vmatprep.subr.mxu0 0.0
    %1192 = vmatpush1.msra.mxu0 0.0
    %1193 = vmatprep.subr.mxu0 0.0
    %1194 = vmatpush1.msra.mxu0 0.0
    %1195 = vmatprep.subr.mxu0 0.0
    %1196 = vmatpush1.msra.mxu0 0.0
    %1197 = vmatprep.subr.mxu0 0.0
    %1198 = vmatpush1.msra.mxu0 0.0
    %1199 = vmatprep.subr.mxu0 0.0
    %1200 = vmatpush1.msra.mxu0 0.0
    %1201 = vmatprep.subr.mxu0 0.0
    %1202 = vmatpush1.msra.mxu0 0.0
    %1203 = vmatprep.subr.mxu0 0.0
    %1204 = vmatpush1.msra.mxu0 0.0
    %1205 = vmatprep.subr.mxu0 0.0
    %1206 = vmatpush1.msra.mxu0 0.0
    %1207 = vmatprep.subr.mxu0 0.0
    %1208 = vmatpush1.msra.mxu0 0.0
    %1209 = vmatprep.subr.mxu0 0.0
    %1210 = vmatpush1.msra.mxu0 0.0
    %1211 = vmatprep.subr.mxu0 0.0
    %1212 = vmatpush1.msra.mxu0 0.0
    %1213 = vmatprep.mubr.f32.mxu0 0.0
    %1214 = vmatmul.mubr.f32.gmra.mrb[0].mxu0 %v1067
    %v1215 = vpop.f32.mrb[0].mxu0
    %v1216 = vadd.f32 %v997, %v1215
    %v1217 = vpop.f32.mrb[0].mxu0
    %v1218 = vadd.f32 %v1001, %v1217
    %1219 = vmatprep.mubr.f32.mxu0 0.0
    %1220 = vmatmul.mubr.f32.gmra.mrb[0].mxu0 %v1070
    %v1221 = vpop.f32.mrb[0].mxu0
    %v1222 = vadd.f32 %v997, %v1221
    %v1223 = vpop.f32.mrb[0].mxu0
    %v1224 = vadd.f32 %v1001, %v1223
    %1225 = vdwg.mxu0
    %1226 = vmatprep.subr.mxu0 %v970
    %1227 = vmatpush1.msra.mxu0 %v969
    %1228 = vmatprep.subr.mxu0 0.0
    %1229 = vmatpush1.msra.mxu0 0.0
    %1230 = vmatprep.subr.mxu0 0.0
    %1231 = vmatpush1.msra.mxu0 0.0
    %1232 = vmatprep.subr.mxu0 0.0
    %1233 = vmatpush1.msra.mxu0 0.0
    %1234 = vmatprep.subr.mxu0 0.0
    %1235 = vmatpush1.msra.mxu0 0.0
    %1236 = vmatprep.subr.mxu0 0.0
    %1237 = vmatpush1.msra.mxu0 0.0
    %1238 = vmatprep.subr.mxu0 0.0
    %1239 = vmatpush1.msra.mxu0 0.0
    %1240 = vmatprep.subr.mxu0 0.0
    %1241 = vmatpush1.msra.mxu0 0.0
    %1242 = vmatprep.subr.mxu0 0.0
    %1243 = vmatpush1.msra.mxu0 0.0
    %1244 = vmatprep.subr.mxu0 0.0
    %1245 = vmatpush1.msra.mxu0 0.0
    %1246 = vmatprep.subr.mxu0 0.0
    %1247 = vmatpush1.msra.mxu0 0.0
    %1248 = vmatprep.subr.mxu0 0.0
    %1249 = vmatpush1.msra.mxu0 0.0
    %1250 = vmatprep.subr.mxu0 0.0
    %1251 = vmatpush1.msra.mxu0 0.0
    %1252 = vmatprep.subr.mxu0 0.0
    %1253 = vmatpush1.msra.mxu0 0.0
    %1254 = vmatprep.subr.mxu0 0.0
    %1255 = vmatpush1.msra.mxu0 0.0
    %1256 = vmatprep.subr.mxu0 0.0
    %1257 = vmatpush1.msra.mxu0 0.0
    %1258 = vmatprep.subr.mxu0 0.0
    %1259 = vmatpush1.msra.mxu0 0.0
    %1260 = vmatprep.subr.mxu0 0.0
    %1261 = vmatpush1.msra.mxu0 0.0
    %1262 = vmatprep.subr.mxu0 0.0
    %1263 = vmatpush1.msra.mxu0 0.0
    %1264 = vmatprep.subr.mxu0 0.0
    %1265 = vmatpush1.msra.mxu0 0.0
    %1266 = vmatprep.subr.mxu0 0.0
    %1267 = vmatpush1.msra.mxu0 0.0
    %1268 = vmatprep.subr.mxu0 0.0
    %1269 = vmatpush1.msra.mxu0 0.0
    %1270 = vmatprep.subr.mxu0 0.0
    %1271 = vmatpush1.msra.mxu0 0.0
    %1272 = vmatprep.subr.mxu0 0.0
    %1273 = vmatpush1.msra.mxu0 0.0
    %1274 = vmatprep.subr.mxu0 0.0
    %1275 = vmatpush1.msra.mxu0 0.0
    %1276 = vmatprep.subr.mxu0 0.0
    %1277 = vmatpush1.msra.mxu0 0.0
    %1278 = vmatprep.subr.mxu0 0.0
    %1279 = vmatpush1.msra.mxu0 0.0
    %1280 = vmatprep.subr.mxu0 0.0
    %1281 = vmatpush1.msra.mxu0 0.0
    %1282 = vmatprep.subr.mxu0 0.0
    %1283 = vmatpush1.msra.mxu0 0.0
    %1284 = vmatprep.subr.mxu0 0.0
    %1285 = vmatpush1.msra.mxu0 0.0
    %1286 = vmatprep.subr.mxu0 0.0
    %1287 = vmatpush1.msra.mxu0 0.0
    %1288 = vmatprep.subr.mxu0 0.0
    %1289 = vmatpush1.msra.mxu0 0.0
    %1290 = vmatprep.mubr.f32.mxu0 0.0
    %1291 = vmatmul.mubr.f32.gmra.mrb[0].mxu0 %v1067
    %v1292 = vpop.f32.mrb[0].mxu0
    %v1293 = vadd.f32 %v1005, %v1292
    %v1294 = vpop.f32.mrb[0].mxu0
    %v1295 = vadd.f32 %v1009, %v1294
    %1296 = vmatprep.mubr.f32.mxu0 0.0
    %1297 = vmatmul.mubr.f32.gmra.mrb[0].mxu0 %v1070
    %v1298 = vpop.f32.mrb[0].mxu0
    %v1299 = vadd.f32 %v1005, %v1298
    %v1300 = vpop.f32.mrb[0].mxu0
    %v1301 = vadd.f32 %v1009, %v1300
    %1302 = vdwg.mxu0
    %1303 = vmatprep.subr.mxu0 %v972
    %1304 = vmatpush1.msra.mxu0 %v971
    %1305 = vmatprep.subr.mxu0 0.0
    %1306 = vmatpush1.msra.mxu0 0.0
    %1307 = vmatprep.subr.mxu0 0.0
    %1308 = vmatpush1.msra.mxu0 0.0
    %1309 = vmatprep.subr.mxu0 0.0
    %1310 = vmatpush1.msra.mxu0 0.0
    %1311 = vmatprep.subr.mxu0 0.0
    %1312 = vmatpush1.msra.mxu0 0.0
    %1313 = vmatprep.subr.mxu0 0.0
    %1314 = vmatpush1.msra.mxu0 0.0
    %1315 = vmatprep.subr.mxu0 0.0
    %1316 = vmatpush1.msra.mxu0 0.0
    %1317 = vmatprep.subr.mxu0 0.0
    %1318 = vmatpush1.msra.mxu0 0.0
    %1319 = vmatprep.subr.mxu0 0.0
    %1320 = vmatpush1.msra.mxu0 0.0
    %1321 = vmatprep.subr.mxu0 0.0
    %1322 = vmatpush1.msra.mxu0 0.0
    %1323 = vmatprep.subr.mxu0 0.0
    %1324 = vmatpush1.msra.mxu0 0.0
    %1325 = vmatprep.subr.mxu0 0.0
    %1326 = vmatpush1.msra.mxu0 0.0
    %1327 = vmatprep.subr.mxu0 0.0
    %1328 = vmatpush1.msra.mxu0 0.0
    %1329 = vmatprep.subr.mxu0 0.0
    %1330 = vmatpush1.msra.mxu0 0.0
    %1331 = vmatprep.subr.mxu0 0.0
    %1332 = vmatpush1.msra.mxu0 0.0
    %1333 = vmatprep.subr.mxu0 0.0
    %1334 = vmatpush1.msra.mxu0 0.0
    %1335 = vmatprep.subr.mxu0 0.0
    %1336 = vmatpush1.msra.mxu0 0.0
    %1337 = vmatprep.subr.mxu0 0.0
    %1338 = vmatpush1.msra.mxu0 0.0
    %1339 = vmatprep.subr.mxu0 0.0
    %1340 = vmatpush1.msra.mxu0 0.0
    %1341 = vmatprep.subr.mxu0 0.0
    %1342 = vmatpush1.msra.mxu0 0.0
    %1343 = vmatprep.subr.mxu0 0.0
    %1344 = vmatpush1.msra.mxu0 0.0
    %1345 = vmatprep.subr.mxu0 0.0
    %1346 = vmatpush1.msra.mxu0 0.0
    %1347 = vmatprep.subr.mxu0 0.0
    %1348 = vmatpush1.msra.mxu0 0.0
    %1349 = vmatprep.subr.mxu0 0.0
    %1350 = vmatpush1.msra.mxu0 0.0
    %1351 = vmatprep.subr.mxu0 0.0
    %1352 = vmatpush1.msra.mxu0 0.0
    %1353 = vmatprep.subr.mxu0 0.0
    %1354 = vmatpush1.msra.mxu0 0.0
    %1355 = vmatprep.subr.mxu0 0.0
    %1356 = vmatpush1.msra.mxu0 0.0
    %1357 = vmatprep.subr.mxu0 0.0
    %1358 = vmatpush1.msra.mxu0 0.0
    %1359 = vmatprep.subr.mxu0 0.0
    %1360 = vmatpush1.msra.mxu0 0.0
    %1361 = vmatprep.subr.mxu0 0.0
    %1362 = vmatpush1.msra.mxu0 0.0
    %1363 = vmatprep.subr.mxu0 0.0
    %1364 = vmatpush1.msra.mxu0 0.0
    %1365 = vmatprep.subr.mxu0 0.0
    %1366 = vmatpush1.msra.mxu0 0.0
    %1367 = vmatprep.mubr.f32.mxu0 0.0
    %1368 = vmatmul.mubr.f32.gmra.mrb[0].mxu0 %v1067
    %v1369 = vpop.f32.mrb[0].mxu0
    %v1370 = vadd.f32 %v1013, %v1369
    %v1371 = vpop.f32.mrb[0].mxu0
    %v1372 = vadd.f32 %v1017, %v1371
    %1373 = vmatprep.mubr.f32.mxu0 0.0
    %1374 = vmatmul.mubr.f32.gmra.mrb[0].mxu0 %v1070
    %v1375 = vpop.f32.mrb[0].mxu0
    %v1376 = vadd.f32 %v1013, %v1375
    %v1377 = vpop.f32.mrb[0].mxu0
    %v1378 = vadd.f32 %v1017, %v1377
    %1379 = vdwg.mxu0
    %1380 = vmatprep.subr.mxu0 %v974
    %1381 = vmatpush1.msra.mxu0 %v973
    %1382 = vmatprep.subr.mxu0 0.0
    %1383 = vmatpush1.msra.mxu0 0.0
    %1384 = vmatprep.subr.mxu0 0.0
    %1385 = vmatpush1.msra.mxu0 0.0
    %1386 = vmatprep.subr.mxu0 0.0
    %1387 = vmatpush1.msra.mxu0 0.0
    %1388 = vmatprep.subr.mxu0 0.0
    %1389 = vmatpush1.msra.mxu0 0.0
    %1390 = vmatprep.subr.mxu0 0.0
    %1391 = vmatpush1.msra.mxu0 0.0
    %1392 = vmatprep.subr.mxu0 0.0
    %1393 = vmatpush1.msra.mxu0 0.0
    %1394 = vmatprep.subr.mxu0 0.0
    %1395 = vmatpush1.msra.mxu0 0.0
    %1396 = vmatprep.subr.mxu0 0.0
    %1397 = vmatpush1.msra.mxu0 0.0
    %1398 = vmatprep.subr.mxu0 0.0
    %1399 = vmatpush1.msra.mxu0 0.0
    %1400 = vmatprep.subr.mxu0 0.0
    %1401 = vmatpush1.msra.mxu0 0.0
    %1402 = vmatprep.subr.mxu0 0.0
    %1403 = vmatpush1.msra.mxu0 0.0
    %1404 = vmatprep.subr.mxu0 0.0
    %1405 = vmatpush1.msra.mxu0 0.0
    %1406 = vmatprep.subr.mxu0 0.0
    %1407 = vmatpush1.msra.mxu0 0.0
    %1408 = vmatprep.subr.mxu0 0.0
    %1409 = vmatpush1.msra.mxu0 0.0
    %1410 = vmatprep.subr.mxu0 0.0
    %1411 = vmatpush1.msra.mxu0 0.0
    %1412 = vmatprep.subr.mxu0 0.0
    %1413 = vmatpush1.msra.mxu0 0.0
    %1414 = vmatprep.subr.mxu0 0.0
    %1415 = vmatpush1.msra.mxu0 0.0
    %1416 = vmatprep.subr.mxu0 0.0
    %1417 = vmatpush1.msra.mxu0 0.0
    %1418 = vmatprep.subr.mxu0 0.0
    %1419 = vmatpush1.msra.mxu0 0.0
    %1420 = vmatprep.subr.mxu0 0.0
    %1421 = vmatpush1.msra.mxu0 0.0
    %1422 = vmatprep.subr.mxu0 0.0
    %1423 = vmatpush1.msra.mxu0 0.0
    %1424 = vmatprep.subr.mxu0 0.0
    %1425 = vmatpush1.msra.mxu0 0.0
    %1426 = vmatprep.subr.mxu0 0.0
    %1427 = vmatpush1.msra.mxu0 0.0
    %1428 = vmatprep.subr.mxu0 0.0
    %1429 = vmatpush1.msra.mxu0 0.0
    %1430 = vmatprep.subr.mxu0 0.0
    %1431 = vmatpush1.msra.mxu0 0.0
    %1432 = vmatprep.subr.mxu0 0.0
    %1433 = vmatpush1.msra.mxu0 0.0
    %1434 = vmatprep.subr.mxu0 0.0
    %1435 = vmatpush1.msra.mxu0 0.0
    %1436 = vmatprep.subr.mxu0 0.0
    %1437 = vmatpush1.msra.mxu0 0.0
    %1438 = vmatprep.subr.mxu0 0.0
    %1439 = vmatpush1.msra.mxu0 0.0
    %1440 = vmatprep.subr.mxu0 0.0
    %1441 = vmatpush1.msra.mxu0 0.0
    %1442 = vmatprep.subr.mxu0 0.0
    %1443 = vmatpush1.msra.mxu0 0.0
    %1444 = vmatprep.mubr.f32.mxu0 0.0
    %1445 = vmatmul.mubr.f32.gmra.mrb[0].mxu0 %v1067
    %v1446 = vpop.f32.mrb[0].mxu0
    %v1447 = vadd.f32 %v1021, %v1446
    %v1448 = vpop.f32.mrb[0].mxu0
    %v1449 = vadd.f32 %v1025, %v1448
    %1450 = vmatprep.mubr.f32.mxu0 0.0
    %1451 = vmatmul.mubr.f32.gmra.mrb[0].mxu0 %v1070
    %v1452 = vpop.f32.mrb[0].mxu0
    %v1453 = vadd.f32 %v1021, %v1452
    %v1454 = vpop.f32.mrb[0].mxu0
    %v1455 = vadd.f32 %v1025, %v1454
    %1456 = vdwg.mxu0
    %1457 = vmatprep.subr.mxu0 %v976
    %1458 = vmatpush1.msra.mxu0 %v975
    %1459 = vmatprep.subr.mxu0 0.0
    %1460 = vmatpush1.msra.mxu0 0.0
    %1461 = vmatprep.subr.mxu0 0.0
    %1462 = vmatpush1.msra.mxu0 0.0
    %1463 = vmatprep.subr.mxu0 0.0
    %1464 = vmatpush1.msra.mxu0 0.0
    %1465 = vmatprep.subr.mxu0 0.0
    %1466 = vmatpush1.msra.mxu0 0.0
    %1467 = vmatprep.subr.mxu0 0.0
    %1468 = vmatpush1.msra.mxu0 0.0
    %1469 = vmatprep.subr.mxu0 0.0
    %1470 = vmatpush1.msra.mxu0 0.0
    %1471 = vmatprep.subr.mxu0 0.0
    %1472 = vmatpush1.msra.mxu0 0.0
    %1473 = vmatprep.subr.mxu0 0.0
    %1474 = vmatpush1.msra.mxu0 0.0
    %1475 = vmatprep.subr.mxu0 0.0
    %1476 = vmatpush1.msra.mxu0 0.0
    %1477 = vmatprep.subr.mxu0 0.0
    %1478 = vmatpush1.msra.mxu0 0.0
    %1479 = vmatprep.subr.mxu0 0.0
    %1480 = vmatpush1.msra.mxu0 0.0
    %1481 = vmatprep.subr.mxu0 0.0
    %1482 = vmatpush1.msra.mxu0 0.0
    %1483 = vmatprep.subr.mxu0 0.0
    %1484 = vmatpush1.msra.mxu0 0.0
    %1485 = vmatprep.subr.mxu0 0.0
    %1486 = vmatpush1.msra.mxu0 0.0
    %1487 = vmatprep.subr.mxu0 0.0
    %1488 = vmatpush1.msra.mxu0 0.0
    %1489 = vmatprep.subr.mxu0 0.0
    %1490 = vmatpush1.msra.mxu0 0.0
    %1491 = vmatprep.subr.mxu0 0.0
    %1492 = vmatpush1.msra.mxu0 0.0
    %1493 = vmatprep.subr.mxu0 0.0
    %1494 = vmatpush1.msra.mxu0 0.0
    %1495 = vmatprep.subr.mxu0 0.0
    %1496 = vmatpush1.msra.mxu0 0.0
    %1497 = vmatprep.subr.mxu0 0.0
    %1498 = vmatpush1.msra.mxu0 0.0
    %1499 = vmatprep.subr.mxu0 0.0
    %1500 = vmatpush1.msra.mxu0 0.0
    %1501 = vmatprep.subr.mxu0 0.0
    %1502 = vmatpush1.msra.mxu0 0.0
    %1503 = vmatprep.subr.mxu0 0.0
    %1504 = vmatpush1.msra.mxu0 0.0
    %1505 = vmatprep.subr.mxu0 0.0
    %1506 = vmatpush1.msra.mxu0 0.0
    %1507 = vmatprep.subr.mxu0 0.0
    %1508 = vmatpush1.msra.mxu0 0.0
    %1509 = vmatprep.subr.mxu0 0.0
    %1510 = vmatpush1.msra.mxu0 0.0
    %1511 = vmatprep.subr.mxu0 0.0
    %1512 = vmatpush1.msra.mxu0 0.0
    %1513 = vmatprep.subr.mxu0 0.0
    %1514 = vmatpush1.msra.mxu0 0.0
    %1515 = vmatprep.subr.mxu0 0.0
    %1516 = vmatpush1.msra.mxu0 0.0
    %1517 = vmatprep.subr.mxu0 0.0
    %1518 = vmatpush1.msra.mxu0 0.0
    %1519 = vmatprep.subr.mxu0 0.0
    %1520 = vmatpush1.msra.mxu0 0.0
    %1521 = vmatprep.mubr.f32.mxu0 0.0
    %1522 = vmatmul.mubr.f32.gmra.mrb[0].mxu0 %v1067
    %v1523 = vpop.f32.mrb[0].mxu0
    %v1524 = vadd.f32 %v1029, %v1523
    %v1525 = vpop.f32.mrb[0].mxu0
    %v1526 = vadd.f32 %v1033, %v1525
    %1527 = vmatprep.mubr.f32.mxu0 0.0
    %1528 = vmatmul.mubr.f32.gmra.mrb[0].mxu0 %v1070
    %v1529 = vpop.f32.mrb[0].mxu0
    %v1530 = vadd.f32 %v1029, %v1529
    %v1531 = vpop.f32.mrb[0].mxu0
    %v1532 = vadd.f32 %v1033, %v1531
    %1533 = vdwg.mxu0
    %1534 = vmatprep.subr.mxu0 %v978
    %1535 = vmatpush1.msra.mxu0 %v977
    %1536 = vmatprep.subr.mxu0 0.0
    %1537 = vmatpush1.msra.mxu0 0.0
    %1538 = vmatprep.subr.mxu0 0.0
    %1539 = vmatpush1.msra.mxu0 0.0
    %1540 = vmatprep.subr.mxu0 0.0
    %1541 = vmatpush1.msra.mxu0 0.0
    %1542 = vmatprep.subr.mxu0 0.0
    %1543 = vmatpush1.msra.mxu0 0.0
    %1544 = vmatprep.subr.mxu0 0.0
    %1545 = vmatpush1.msra.mxu0 0.0
    %1546 = vmatprep.subr.mxu0 0.0
    %1547 = vmatpush1.msra.mxu0 0.0
    %1548 = vmatprep.subr.mxu0 0.0
    %1549 = vmatpush1.msra.mxu0 0.0
    %1550 = vmatprep.subr.mxu0 0.0
    %1551 = vmatpush1.msra.mxu0 0.0
    %1552 = vmatprep.subr.mxu0 0.0
    %1553 = vmatpush1.msra.mxu0 0.0
    %1554 = vmatprep.subr.mxu0 0.0
    %1555 = vmatpush1.msra.mxu0 0.0
    %1556 = vmatprep.subr.mxu0 0.0
    %1557 = vmatpush1.msra.mxu0 0.0
    %1558 = vmatprep.subr.mxu0 0.0
    %1559 = vmatpush1.msra.mxu0 0.0
    %1560 = vmatprep.subr.mxu0 0.0
    %1561 = vmatpush1.msra.mxu0 0.0
    %1562 = vmatprep.subr.mxu0 0.0
    %1563 = vmatpush1.msra.mxu0 0.0
    %1564 = vmatprep.subr.mxu0 0.0
    %1565 = vmatpush1.msra.mxu0 0.0
    %1566 = vmatprep.subr.mxu0 0.0
    %1567 = vmatpush1.msra.mxu0 0.0
    %1568 = vmatprep.subr.mxu0 0.0
    %1569 = vmatpush1.msra.mxu0 0.0
    %1570 = vmatprep.subr.mxu0 0.0
    %1571 = vmatpush1.msra.mxu0 0.0
    %1572 = vmatprep.subr.mxu0 0.0
    %1573 = vmatpush1.msra.mxu0 0.0
    %1574 = vmatprep.subr.mxu0 0.0
    %1575 = vmatpush1.msra.mxu0 0.0
    %1576 = vmatprep.subr.mxu0 0.0
    %1577 = vmatpush1.msra.mxu0 0.0
    %1578 = vmatprep.subr.mxu0 0.0
    %1579 = vmatpush1.msra.mxu0 0.0
    %1580 = vmatprep.subr.mxu0 0.0
    %1581 = vmatpush1.msra.mxu0 0.0
    %1582 = vmatprep.subr.mxu0 0.0
    %1583 = vmatpush1.msra.mxu0 0.0
    %1584 = vmatprep.subr.mxu0 0.0
    %1585 = vmatpush1.msra.mxu0 0.0
    %1586 = vmatprep.subr.mxu0 0.0
    %1587 = vmatpush1.msra.mxu0 0.0
    %1588 = vmatprep.subr.mxu0 0.0
    %1589 = vmatpush1.msra.mxu0 0.0
    %1590 = vmatprep.subr.mxu0 0.0
    %1591 = vmatpush1.msra.mxu0 0.0
    %1592 = vmatprep.subr.mxu0 0.0
    %1593 = vmatpush1.msra.mxu0 0.0
    %1594 = vmatprep.subr.mxu0 0.0
    %1595 = vmatpush1.msra.mxu0 0.0
    %1596 = vmatprep.subr.mxu0 0.0
    %1597 = vmatpush1.msra.mxu0 0.0
    %1598 = vmatprep.mubr.f32.mxu0 0.0
    %1599 = vmatmul.mubr.f32.gmra.mrb[0].mxu0 %v1067
    %v1600 = vpop.f32.mrb[0].mxu0
    %v1601 = vadd.f32 %v1037, %v1600
    %v1602 = vpop.f32.mrb[0].mxu0
    %v1603 = vadd.f32 %v1041, %v1602
    %1604 = vmatprep.mubr.f32.mxu0 0.0
    %1605 = vmatmul.mubr.f32.gmra.mrb[0].mxu0 %v1070
    %v1606 = vpop.f32.mrb[0].mxu0
    %v1607 = vadd.f32 %v1037, %v1606
    %v1608 = vpop.f32.mrb[0].mxu0
    %v1609 = vadd.f32 %v1041, %v1608
    %1610 = vdwg.mxu0
    %1611 = vmatprep.subr.mxu0 %v980
    %1612 = vmatpush1.msra.mxu0 %v979
    %1613 = vmatprep.subr.mxu0 0.0
    %1614 = vmatpush1.msra.mxu0 0.0
    %1615 = vmatprep.subr.mxu0 0.0
    %1616 = vmatpush1.msra.mxu0 0.0
    %1617 = vmatprep.subr.mxu0 0.0
    %1618 = vmatpush1.msra.mxu0 0.0
    %1619 = vmatprep.subr.mxu0 0.0
    %1620 = vmatpush1.msra.mxu0 0.0
    %1621 = vmatprep.subr.mxu0 0.0
    %1622 = vmatpush1.msra.mxu0 0.0
    %1623 = vmatprep.subr.mxu0 0.0
    %1624 = vmatpush1.msra.mxu0 0.0
    %1625 = vmatprep.subr.mxu0 0.0
    %1626 = vmatpush1.msra.mxu0 0.0
    %1627 = vmatprep.subr.mxu0 0.0
    %1628 = vmatpush1.msra.mxu0 0.0
    %1629 = vmatprep.subr.mxu0 0.0
    %1630 = vmatpush1.msra.mxu0 0.0
    %1631 = vmatprep.subr.mxu0 0.0
    %1632 = vmatpush1.msra.mxu0 0.0
    %1633 = vmatprep.subr.mxu0 0.0
    %1634 = vmatpush1.msra.mxu0 0.0
    %1635 = vmatprep.subr.mxu0 0.0
    %1636 = vmatpush1.msra.mxu0 0.0
    %1637 = vmatprep.subr.mxu0 0.0
    %1638 = vmatpush1.msra.mxu0 0.0
    %1639 = vmatprep.subr.mxu0 0.0
    %1640 = vmatpush1.msra.mxu0 0.0
    %1641 = vmatprep.subr.mxu0 0.0
    %1642 = vmatpush1.msra.mxu0 0.0
    %1643 = vmatprep.subr.mxu0 0.0
    %1644 = vmatpush1.msra.mxu0 0.0
    %1645 = vmatprep.subr.mxu0 0.0
    %1646 = vmatpush1.msra.mxu0 0.0
    %1647 = vmatprep.subr.mxu0 0.0
    %1648 = vmatpush1.msra.mxu0 0.0
    %1649 = vmatprep.subr.mxu0 0.0
    %1650 = vmatpush1.msra.mxu0 0.0
    %1651 = vmatprep.subr.mxu0 0.0
    %1652 = vmatpush1.msra.mxu0 0.0
    %1653 = vmatprep.subr.mxu0 0.0
    %1654 = vmatpush1.msra.mxu0 0.0
    %1655 = vmatprep.subr.mxu0 0.0
    %1656 = vmatpush1.msra.mxu0 0.0
    %1657 = vmatprep.subr.mxu0 0.0
    %1658 = vmatpush1.msra.mxu0 0.0
    %1659 = vmatprep.subr.mxu0 0.0
    %1660 = vmatpush1.msra.mxu0 0.0
    %1661 = vmatprep.subr.mxu0 0.0
    %1662 = vmatpush1.msra.mxu0 0.0
    %1663 = vmatprep.subr.mxu0 0.0
    %1664 = vmatpush1.msra.mxu0 0.0
    %1665 = vmatprep.subr.mxu0 0.0
    %1666 = vmatpush1.msra.mxu0 0.0
    %1667 = vmatprep.subr.mxu0 0.0
    %1668 = vmatpush1.msra.mxu0 0.0
    %1669 = vmatprep.subr.mxu0 0.0
    %1670 = vmatpush1.msra.mxu0 0.0
    %1671 = vmatprep.subr.mxu0 0.0
    %1672 = vmatpush1.msra.mxu0 0.0
    %1673 = vmatprep.subr.mxu0 0.0
    %1674 = vmatpush1.msra.mxu0 0.0
    %1675 = vmatprep.mubr.f32.mxu0 0.0
    %1676 = vmatmul.mubr.f32.gmra.mrb[0].mxu0 %v1067
    %v1677 = vpop.f32.mrb[0].mxu0
    %v1678 = vadd.f32 %v1045, %v1677
    %v1679 = vpop.f32.mrb[0].mxu0
    %v1680 = vadd.f32 %v1049, %v1679
    %1681 = vmatprep.mubr.f32.mxu0 0.0
    %1682 = vmatmul.mubr.f32.gmra.mrb[0].mxu0 %v1070
    %v1683 = vpop.f32.mrb[0].mxu0
    %v1684 = vadd.f32 %v1045, %v1683
    %v1685 = vpop.f32.mrb[0].mxu0
    %v1686 = vadd.f32 %v1049, %v1685
    %1687 = vdwg.mxu0
    %v1688 = vmax.f32 %v1139, 0.0
    %v1689 = vmax.f32 %v1141, 0.0
    %v1690 = vmax.f32 %v1216, 0.0
    %v1691 = vmax.f32 %v1218, 0.0
    %v1692 = vmax.f32 %v1293, 0.0
    %v1693 = vmax.f32 %v1295, 0.0
    %v1694 = vmax.f32 %v1370, 0.0
    %v1695 = vmax.f32 %v1372, 0.0
    %v1696 = vmax.f32 %v1447, 0.0
    %v1697 = vmax.f32 %v1449, 0.0
    %v1698 = vmax.f32 %v1524, 0.0
    %v1699 = vmax.f32 %v1526, 0.0
    %v1700 = vmax.f32 %v1601, 0.0
    %v1701 = vmax.f32 %v1603, 0.0
    %v1702 = vmax.f32 %v1678, 0.0
    %v1703 = vmax.f32 %v1680, 0.0
    %v1704 = vmax.f32 %v1145, 0.0
    %v1705 = vmax.f32 %v1147, 0.0
    %v1706 = vmax.f32 %v1222, 0.0
    %v1707 = vmax.f32 %v1224, 0.0
    %v1708 = vmax.f32 %v1299, 0.0
    %v1709 = vmax.f32 %v1301, 0.0
    %v1710 = vmax.f32 %v1376, 0.0
    %v1711 = vmax.f32 %v1378, 0.0
    %v1712 = vmax.f32 %v1453, 0.0
    %v1713 = vmax.f32 %v1455, 0.0
    %v1714 = vmax.f32 %v1530, 0.0
    %v1715 = vmax.f32 %v1532, 0.0
    %v1716 = vmax.f32 %v1607, 0.0
    %v1717 = vmax.f32 %v1609, 0.0
    %v1718 = vmax.f32 %v1684, 0.0
    %v1719 = vmax.f32 %v1686, 0.0
    %v1720 = vld [vmem:[%s8] sm:$0xff]
    %v1721 = vld [vmem:[%s8 + $0x8] sm:$0xff]
    %v1722 = vld [vmem:[%s8 + $0x10] sm:$0xff]
    %v1723 = vld [vmem:[%s8 + $0x18] sm:$0xff]
    %v1724 = vld [vmem:[%s8 + $0x20] sm:$0xff]
    %v1725 = vld [vmem:[%s8 + $0x28] sm:$0xff]
    %v1726 = vld [vmem:[%s8 + $0x30] sm:$0xff]
    %v1727 = vld [vmem:[%s8 + $0x38] sm:$0xff]
    %v1728 = vld [vmem:[%s8 + $0x40] sm:$0xff]
    %v1729 = vld [vmem:[%s8 + $0x48] sm:$0xff]
    %v1730 = vld [vmem:[%s8 + $0x50] sm:$0xff]
    %v1731 = vld [vmem:[%s8 + $0x58] sm:$0xff]
    %v1732 = vld [vmem:[%s8 + $0x60] sm:$0xff]
    %v1733 = vld [vmem:[%s8 + $0x68] sm:$0xff]
    %v1734 = vld [vmem:[%s8 + $0x70] sm:$0xff]
    %v1735 = vld [vmem:[%s8 + $0x78] sm:$0xff]
    %v1736 = vld [vmem:[%s8 + $0x80] sm:$0xff]
    %v1737 = vld [vmem:[%s8 + $0x88] sm:$0xff]
    %v1738 = vld [vmem:[%s8 + $0x90] sm:$0xff]
    %v1739 = vld [vmem:[%s8 + $0x98] sm:$0xff]
    %v1740 = vld [vmem:[%s8 + $0xa0] sm:$0xff]
    %v1741 = vld [vmem:[%s8 + $0xa8] sm:$0xff]
    %v1742 = vld [vmem:[%s8 + $0xb0] sm:$0xff]
    %v1743 = vld [vmem:[%s8 + $0xb8] sm:$0xff]
    %v1744 = vld [vmem:[%s8 + $0xc0] sm:$0xff]
    %v1745 = vld [vmem:[%s8 + $0xc8] sm:$0xff]
    %v1746 = vld [vmem:[%s8 + $0xd0] sm:$0xff]
    %v1747 = vld [vmem:[%s8 + $0xd8] sm:$0xff]
    %v1748 = vld [vmem:[%s8 + $0xe0] sm:$0xff]
    %v1749 = vld [vmem:[%s8 + $0xe8] sm:$0xff]
    %v1750 = vld [vmem:[%s8 + $0xf0] sm:$0xff]
    %v1751 = vld [vmem:[%s8 + $0xf8] sm:$0xff]
    %v1752 = vld [vmem:[%s8 + $0x100] sm:$0xff]
    %v1753 = vld [vmem:[%s8 + $0x108] sm:$0xff]
    %v1754 = vld [vmem:[%s8 + $0x110] sm:$0xff]
    %v1755 = vld [vmem:[%s8 + $0x118] sm:$0xff]
    %v1756 = vld [vmem:[%s8 + $0x120] sm:$0xff]
    %v1757 = vld [vmem:[%s8 + $0x128] sm:$0xff]
    %v1758 = vld [vmem:[%s8 + $0x130] sm:$0xff]
    %v1759 = vld [vmem:[%s8 + $0x138] sm:$0xff]
    %v1760 = vld [vmem:[%s8 + $0x140] sm:$0xff]
    %v1761 = vld [vmem:[%s8 + $0x148] sm:$0xff]
    %v1762 = vld [vmem:[%s8 + $0x150] sm:$0xff]
    %v1763 = vld [vmem:[%s8 + $0x158] sm:$0xff]
    %v1764 = vld [vmem:[%s8 + $0x160] sm:$0xff]
    %v1765 = vld [vmem:[%s8 + $0x168] sm:$0xff]
    %v1766 = vld [vmem:[%s8 + $0x170] sm:$0xff]
    %v1767 = vld [vmem:[%s8 + $0x178] sm:$0xff]
    %v1768 = vld [vmem:[%s8 + $0x180] sm:$0xff]
    %v1769 = vld [vmem:[%s8 + $0x188] sm:$0xff]
    %v1770 = vld [vmem:[%s8 + $0x190] sm:$0xff]
    %v1771 = vld [vmem:[%s8 + $0x198] sm:$0xff]
    %v1772 = vld [vmem:[%s8 + $0x1a0] sm:$0xff]
    %v1773 = vld [vmem:[%s8 + $0x1a8] sm:$0xff]
    %v1774 = vld [vmem:[%s8 + $0x1b0] sm:$0xff]
    %v1775 = vld [vmem:[%s8 + $0x1b8] sm:$0xff]
    %v1776 = vld [vmem:[%s8 + $0x1c0] sm:$0xff]
    %v1777 = vld [vmem:[%s8 + $0x1c8] sm:$0xff]
    %v1778 = vld [vmem:[%s8 + $0x1d0] sm:$0xff]
    %v1779 = vld [vmem:[%s8 + $0x1d8] sm:$0xff]
    %v1780 = vld [vmem:[%s8 + $0x1e0] sm:$0xff]
    %v1781 = vld [vmem:[%s8 + $0x1e8] sm:$0xff]
    %v1782 = vld [vmem:[%s8 + $0x1f0] sm:$0xff]
    %v1783 = vld [vmem:[%s8 + $0x1f8] sm:$0xff]
    %v1784 = vld [vmem:[%s8 + $0x200] sm:$0xff]
    %v1785 = vld [vmem:[%s8 + $0x208] sm:$0xff]
    %v1786 = vld [vmem:[%s8 + $0x210] sm:$0xff]
    %v1787 = vld [vmem:[%s8 + $0x218] sm:$0xff]
    %v1788 = vld [vmem:[%s8 + $0x220] sm:$0xff]
    %v1789 = vld [vmem:[%s8 + $0x228] sm:$0xff]
    %v1790 = vld [vmem:[%s8 + $0x230] sm:$0xff]
    %v1791 = vld [vmem:[%s8 + $0x238] sm:$0xff]
    %v1792 = vld [vmem:[%s8 + $0x240] sm:$0xff]
    %v1793 = vld [vmem:[%s8 + $0x248] sm:$0xff]
    %v1794 = vld [vmem:[%s8 + $0x250] sm:$0xff]
    %v1795 = vld [vmem:[%s8 + $0x258] sm:$0xff]
    %v1796 = vld [vmem:[%s8 + $0x260] sm:$0xff]
    %v1797 = vld [vmem:[%s8 + $0x268] sm:$0xff]
    %v1798 = vld [vmem:[%s8 + $0x270] sm:$0xff]
    %v1799 = vld [vmem:[%s8 + $0x278] sm:$0xff]
    %v1800 = vld [vmem:[%s8 + $0x280] sm:$0xff]
    %v1801 = vld [vmem:[%s8 + $0x288] sm:$0xff]
    %v1802 = vld [vmem:[%s8 + $0x290] sm:$0xff]
    %v1803 = vld [vmem:[%s8 + $0x298] sm:$0xff]
    %v1804 = vld [vmem:[%s8 + $0x2a0] sm:$0xff]
    %v1805 = vld [vmem:[%s8 + $0x2a8] sm:$0xff]
    %v1806 = vld [vmem:[%s8 + $0x2b0] sm:$0xff]
    %v1807 = vld [vmem:[%s8 + $0x2b8] sm:$0xff]
    %v1808 = vld [vmem:[%s8 + $0x2c0] sm:$0xff]
    %v1809 = vld [vmem:[%s8 + $0x2c8] sm:$0xff]
    %v1810 = vld [vmem:[%s8 + $0x2d0] sm:$0xff]
    %v1811 = vld [vmem:[%s8 + $0x2d8] sm:$0xff]
    %v1812 = vld [vmem:[%s8 + $0x2e0] sm:$0xff]
    %v1813 = vld [vmem:[%s8 + $0x2e8] sm:$0xff]
    %v1814 = vld [vmem:[%s8 + $0x2f0] sm:$0xff]
    %v1815 = vld [vmem:[%s8 + $0x2f8] sm:$0xff]
    %v1816 = vld [vmem:[%s8 + $0x300] sm:$0xff]
    %v1817 = vld [vmem:[%s8 + $0x308] sm:$0xff]
    %v1818 = vld [vmem:[%s8 + $0x310] sm:$0xff]
    %v1819 = vld [vmem:[%s8 + $0x318] sm:$0xff]
    %v1820 = vld [vmem:[%s8 + $0x320] sm:$0xff]
    %v1821 = vld [vmem:[%s8 + $0x328] sm:$0xff]
    %v1822 = vld [vmem:[%s8 + $0x330] sm:$0xff]
    %v1823 = vld [vmem:[%s8 + $0x338] sm:$0xff]
    %v1824 = vld [vmem:[%s8 + $0x340] sm:$0xff]
    %v1825 = vld [vmem:[%s8 + $0x348] sm:$0xff]
    %v1826 = vld [vmem:[%s8 + $0x350] sm:$0xff]
    %v1827 = vld [vmem:[%s8 + $0x358] sm:$0xff]
    %v1828 = vld [vmem:[%s8 + $0x360] sm:$0xff]
    %v1829 = vld [vmem:[%s8 + $0x368] sm:$0xff]
    %v1830 = vld [vmem:[%s8 + $0x370] sm:$0xff]
    %v1831 = vld [vmem:[%s8 + $0x378] sm:$0xff]
    %v1832 = vld [vmem:[%s8 + $0x380] sm:$0xff]
    %v1833 = vld [vmem:[%s8 + $0x388] sm:$0xff]
    %v1834 = vld [vmem:[%s8 + $0x390] sm:$0xff]
    %v1835 = vld [vmem:[%s8 + $0x398] sm:$0xff]
    %v1836 = vld [vmem:[%s8 + $0x3a0] sm:$0xff]
    %v1837 = vld [vmem:[%s8 + $0x3a8] sm:$0xff]
    %v1838 = vld [vmem:[%s8 + $0x3b0] sm:$0xff]
    %v1839 = vld [vmem:[%s8 + $0x3b8] sm:$0xff]
    %v1840 = vld [vmem:[%s8 + $0x3c0] sm:$0xff]
    %v1841 = vld [vmem:[%s8 + $0x3c8] sm:$0xff]
    %v1842 = vld [vmem:[%s8 + $0x3d0] sm:$0xff]
    %v1843 = vld [vmem:[%s8 + $0x3d8] sm:$0xff]
    %v1844 = vld [vmem:[%s8 + $0x3e0] sm:$0xff]
    %v1845 = vld [vmem:[%s8 + $0x3e8] sm:$0xff]
    %v1846 = vld [vmem:[%s8 + $0x3f0] sm:$0xff]
    %v1847 = vld [vmem:[%s8 + $0x3f8] sm:$0xff]
    %v1848 = vld [vmem:[%s8 + $0x400] sm:$0xff]
    %v1849 = vld [vmem:[%s8 + $0x408] sm:$0xff]
    %v1850 = vld [vmem:[%s8 + $0x410] sm:$0xff]
    %v1851 = vld [vmem:[%s8 + $0x418] sm:$0xff]
    %v1852 = vld [vmem:[%s8 + $0x420] sm:$0xff]
    %v1853 = vld [vmem:[%s8 + $0x428] sm:$0xff]
    %v1854 = vld [vmem:[%s8 + $0x430] sm:$0xff]
    %v1855 = vld [vmem:[%s8 + $0x438] sm:$0xff]
    %v1856 = vld [vmem:[%s8 + $0x440] sm:$0xff]
    %v1857 = vld [vmem:[%s8 + $0x448] sm:$0xff]
    %v1858 = vld [vmem:[%s8 + $0x450] sm:$0xff]
    %v1859 = vld [vmem:[%s8 + $0x458] sm:$0xff]
    %v1860 = vld [vmem:[%s8 + $0x460] sm:$0xff]
    %v1861 = vld [vmem:[%s8 + $0x468] sm:$0xff]
    %v1862 = vld [vmem:[%s8 + $0x470] sm:$0xff]
    %v1863 = vld [vmem:[%s8 + $0x478] sm:$0xff]
    %v1864 = vld [vmem:[%s8 + $0x480] sm:$0xff]
    %v1865 = vld [vmem:[%s8 + $0x488] sm:$0xff]
    %v1866 = vld [vmem:[%s8 + $0x490] sm:$0xff]
    %v1867 = vld [vmem:[%s8 + $0x498] sm:$0xff]
    %v1868 = vld [vmem:[%s8 + $0x4a0] sm:$0xff]
    %v1869 = vld [vmem:[%s8 + $0x4a8] sm:$0xff]
    %v1870 = vld [vmem:[%s8 + $0x4b0] sm:$0xff]
    %v1871 = vld [vmem:[%s8 + $0x4b8] sm:$0xff]
    %v1872 = vld [vmem:[%s8 + $0x4c0] sm:$0xff]
    %v1873 = vld [vmem:[%s8 + $0x4c8] sm:$0xff]
    %v1874 = vld [vmem:[%s8 + $0x4d0] sm:$0xff]
    %v1875 = vld [vmem:[%s8 + $0x4d8] sm:$0xff]
    %v1876 = vld [vmem:[%s8 + $0x4e0] sm:$0xff]
    %v1877 = vld [vmem:[%s8 + $0x4e8] sm:$0xff]
    %v1878 = vld [vmem:[%s8 + $0x4f0] sm:$0xff]
    %v1879 = vld [vmem:[%s8 + $0x4f8] sm:$0xff]
    %v1880 = vld [vmem:[%s8 + $0x500] sm:$0xff]
    %v1881 = vld [vmem:[%s8 + $0x508] sm:$0xff]
    %v1882 = vld [vmem:[%s8 + $0x510] sm:$0xff]
    %v1883 = vld [vmem:[%s8 + $0x518] sm:$0xff]
    %v1884 = vld [vmem:[%s8 + $0x520] sm:$0xff]
    %v1885 = vld [vmem:[%s8 + $0x528] sm:$0xff]
    %v1886 = vld [vmem:[%s8 + $0x530] sm:$0xff]
    %v1887 = vld [vmem:[%s8 + $0x538] sm:$0xff]
    %v1888 = vld [vmem:[%s8 + $0x540] sm:$0xff]
    %v1889 = vld [vmem:[%s8 + $0x548] sm:$0xff]
    %v1890 = vld [vmem:[%s8 + $0x550] sm:$0xff]
    %v1891 = vld [vmem:[%s8 + $0x558] sm:$0xff]
    %v1892 = vld [vmem:[%s8 + $0x560] sm:$0xff]
    %v1893 = vld [vmem:[%s8 + $0x568] sm:$0xff]
    %v1894 = vld [vmem:[%s8 + $0x570] sm:$0xff]
    %v1895 = vld [vmem:[%s8 + $0x578] sm:$0xff]
    %v1896 = vld [vmem:[%s8 + $0x580] sm:$0xff]
    %v1897 = vld [vmem:[%s8 + $0x588] sm:$0xff]
    %v1898 = vld [vmem:[%s8 + $0x590] sm:$0xff]
    %v1899 = vld [vmem:[%s8 + $0x598] sm:$0xff]
    %v1900 = vld [vmem:[%s8 + $0x5a0] sm:$0xff]
    %v1901 = vld [vmem:[%s8 + $0x5a8] sm:$0xff]
    %v1902 = vld [vmem:[%s8 + $0x5b0] sm:$0xff]
    %v1903 = vld [vmem:[%s8 + $0x5b8] sm:$0xff]
    %v1904 = vld [vmem:[%s8 + $0x5c0] sm:$0xff]
    %v1905 = vld [vmem:[%s8 + $0x5c8] sm:$0xff]
    %v1906 = vld [vmem:[%s8 + $0x5d0] sm:$0xff]
    %v1907 = vld [vmem:[%s8 + $0x5d8] sm:$0xff]
    %v1908 = vld [vmem:[%s8 + $0x5e0] sm:$0xff]
    %v1909 = vld [vmem:[%s8 + $0x5e8] sm:$0xff]
    %v1910 = vld [vmem:[%s8 + $0x5f0] sm:$0xff]
    %v1911 = vld [vmem:[%s8 + $0x5f8] sm:$0xff]
    %v1912 = vld [vmem:[%s8 + $0x600] sm:$0xff]
    %v1913 = vld [vmem:[%s8 + $0x608] sm:$0xff]
    %v1914 = vld [vmem:[%s8 + $0x610] sm:$0xff]
    %v1915 = vld [vmem:[%s8 + $0x618] sm:$0xff]
    %v1916 = vld [vmem:[%s8 + $0x620] sm:$0xff]
    %v1917 = vld [vmem:[%s8 + $0x628] sm:$0xff]
    %v1918 = vld [vmem:[%s8 + $0x630] sm:$0xff]
    %v1919 = vld [vmem:[%s8 + $0x638] sm:$0xff]
    %v1920 = vld [vmem:[%s8 + $0x640] sm:$0xff]
    %v1921 = vld [vmem:[%s8 + $0x648] sm:$0xff]
    %v1922 = vld [vmem:[%s8 + $0x650] sm:$0xff]
    %v1923 = vld [vmem:[%s8 + $0x658] sm:$0xff]
    %v1924 = vld [vmem:[%s8 + $0x660] sm:$0xff]
    %v1925 = vld [vmem:[%s8 + $0x668] sm:$0xff]
    %v1926 = vld [vmem:[%s8 + $0x670] sm:$0xff]
    %v1927 = vld [vmem:[%s8 + $0x678] sm:$0xff]
    %v1928 = vld [vmem:[%s8 + $0x680] sm:$0xff]
    %v1929 = vld [vmem:[%s8 + $0x688] sm:$0xff]
    %v1930 = vld [vmem:[%s8 + $0x690] sm:$0xff]
    %v1931 = vld [vmem:[%s8 + $0x698] sm:$0xff]
    %v1932 = vld [vmem:[%s8 + $0x6a0] sm:$0xff]
    %v1933 = vld [vmem:[%s8 + $0x6a8] sm:$0xff]
    %v1934 = vld [vmem:[%s8 + $0x6b0] sm:$0xff]
    %v1935 = vld [vmem:[%s8 + $0x6b8] sm:$0xff]
    %v1936 = vld [vmem:[%s8 + $0x6c0] sm:$0xff]
    %v1937 = vld [vmem:[%s8 + $0x6c8] sm:$0xff]
    %v1938 = vld [vmem:[%s8 + $0x6d0] sm:$0xff]
    %v1939 = vld [vmem:[%s8 + $0x6d8] sm:$0xff]
    %v1940 = vld [vmem:[%s8 + $0x6e0] sm:$0xff]
    %v1941 = vld [vmem:[%s8 + $0x6e8] sm:$0xff]
    %v1942 = vld [vmem:[%s8 + $0x6f0] sm:$0xff]
    %v1943 = vld [vmem:[%s8 + $0x6f8] sm:$0xff]
    %v1944 = vld [vmem:[%s8 + $0x700] sm:$0xff]
    %v1945 = vld [vmem:[%s8 + $0x708] sm:$0xff]
    %v1946 = vld [vmem:[%s8 + $0x710] sm:$0xff]
    %v1947 = vld [vmem:[%s8 + $0x718] sm:$0xff]
    %v1948 = vld [vmem:[%s8 + $0x720] sm:$0xff]
    %v1949 = vld [vmem:[%s8 + $0x728] sm:$0xff]
    %v1950 = vld [vmem:[%s8 + $0x730] sm:$0xff]
    %v1951 = vld [vmem:[%s8 + $0x738] sm:$0xff]
    %v1952 = vld [vmem:[%s8 + $0x740] sm:$0xff]
    %v1953 = vld [vmem:[%s8 + $0x748] sm:$0xff]
    %v1954 = vld [vmem:[%s8 + $0x750] sm:$0xff]
    %v1955 = vld [vmem:[%s8 + $0x758] sm:$0xff]
    %v1956 = vld [vmem:[%s8 + $0x760] sm:$0xff]
    %v1957 = vld [vmem:[%s8 + $0x768] sm:$0xff]
    %v1958 = vld [vmem:[%s8 + $0x770] sm:$0xff]
    %v1959 = vld [vmem:[%s8 + $0x778] sm:$0xff]
    %v1960 = vld [vmem:[%s8 + $0x780] sm:$0xff]
    %v1961 = vld [vmem:[%s8 + $0x788] sm:$0xff]
    %v1962 = vld [vmem:[%s8 + $0x790] sm:$0xff]
    %v1963 = vld [vmem:[%s8 + $0x798] sm:$0xff]
    %v1964 = vld [vmem:[%s8 + $0x7a0] sm:$0xff]
    %v1965 = vld [vmem:[%s8 + $0x7a8] sm:$0xff]
    %v1966 = vld [vmem:[%s8 + $0x7b0] sm:$0xff]
    %v1967 = vld [vmem:[%s8 + $0x7b8] sm:$0xff]
    %v1968 = vld [vmem:[%s8 + $0x7c0] sm:$0xff]
    %v1969 = vld [vmem:[%s8 + $0x7c8] sm:$0xff]
    %v1970 = vld [vmem:[%s8 + $0x7d0] sm:$0xff]
    %v1971 = vld [vmem:[%s8 + $0x7d8] sm:$0xff]
    %v1972 = vld [vmem:[%s8 + $0x7e0] sm:$0xff]
    %v1973 = vld [vmem:[%s8 + $0x7e8] sm:$0xff]
    %v1974 = vld [vmem:[%s8 + $0x7f0] sm:$0xff]
    %v1975 = vld [vmem:[%s8 + $0x7f8] sm:$0xff]
    %v1976 = vld [vmem:[%s9] sm:$0x1]
    %v1977 = vlaneseq
    %v1978 = vshrl.u32 %v1977, 7
    %v1979 = vsub.s32 0, %v1978
    %v1980 = vrot.slane %v1976, %v1979
    %1981 = vmatprep.subr.mxu0 0.0
    %1982 = vmatpush1.msra.mxu0 %v1720
    %1983 = vmatprep.subr.mxu0 0.0
    %1984 = vmatpush1.msra.mxu0 %v1721
    %1985 = vmatprep.subr.mxu0 0.0
    %1986 = vmatpush1.msra.mxu0 %v1722
    %1987 = vmatprep.subr.mxu0 0.0
    %1988 = vmatpush1.msra.mxu0 %v1723
    %1989 = vmatprep.subr.mxu0 0.0
    %1990 = vmatpush1.msra.mxu0 %v1724
    %1991 = vmatprep.subr.mxu0 0.0
    %1992 = vmatpush1.msra.mxu0 %v1725
    %1993 = vmatprep.subr.mxu0 0.0
    %1994 = vmatpush1.msra.mxu0 %v1726
    %1995 = vmatprep.subr.mxu0 0.0
    %1996 = vmatpush1.msra.mxu0 %v1727
    %1997 = vmatprep.subr.mxu0 0.0
    %1998 = vmatpush1.msra.mxu0 %v1728
    %1999 = vmatprep.subr.mxu0 0.0
    %2000 = vmatpush1.msra.mxu0 %v1729
    %2001 = vmatprep.subr.mxu0 0.0
    %2002 = vmatpush1.msra.mxu0 %v1730
    %2003 = vmatprep.subr.mxu0 0.0
    %2004 = vmatpush1.msra.mxu0 %v1731
    %2005 = vmatprep.subr.mxu0 0.0
    %2006 = vmatpush1.msra.mxu0 %v1732
    %2007 = vmatprep.subr.mxu0 0.0
    %2008 = vmatpush1.msra.mxu0 %v1733
    %2009 = vmatprep.subr.mxu0 0.0
    %2010 = vmatpush1.msra.mxu0 %v1734
    %2011 = vmatprep.subr.mxu0 0.0
    %2012 = vmatpush1.msra.mxu0 %v1735
    %2013 = vmatprep.subr.mxu0 0.0
    %2014 = vmatpush1.msra.mxu0 %v1736
    %2015 = vmatprep.subr.mxu0 0.0
    %2016 = vmatpush1.msra.mxu0 %v1737
    %2017 = vmatprep.subr.mxu0 0.0
    %2018 = vmatpush1.msra.mxu0 %v1738
    %2019 = vmatprep.subr.mxu0 0.0
    %2020 = vmatpush1.msra.mxu0 %v1739
    %2021 = vmatprep.subr.mxu0 0.0
    %2022 = vmatpush1.msra.mxu0 %v1740
    %2023 = vmatprep.subr.mxu0 0.0
    %2024 = vmatpush1.msra.mxu0 %v1741
    %2025 = vmatprep.subr.mxu0 0.0
    %2026 = vmatpush1.msra.mxu0 %v1742
    %2027 = vmatprep.subr.mxu0 0.0
    %2028 = vmatpush1.msra.mxu0 %v1743
    %2029 = vmatprep.subr.mxu0 0.0
    %2030 = vmatpush1.msra.mxu0 %v1744
    %2031 = vmatprep.subr.mxu0 0.0
    %2032 = vmatpush1.msra.mxu0 %v1745
    %2033 = vmatprep.subr.mxu0 0.0
    %2034 = vmatpush1.msra.mxu0 %v1746
    %2035 = vmatprep.subr.mxu0 0.0
    %2036 = vmatpush1.msra.mxu0 %v1747
    %2037 = vmatprep.subr.mxu0 0.0
    %2038 = vmatpush1.msra.mxu0 %v1748
    %2039 = vmatprep.subr.mxu0 0.0
    %2040 = vmatpush1.msra.mxu0 %v1749
    %2041 = vmatprep.subr.mxu0 0.0
    %2042 = vmatpush1.msra.mxu0 %v1750
    %2043 = vmatprep.subr.mxu0 0.0
    %2044 = vmatpush1.msra.mxu0 %v1751
    %2045 = vmatprep.mubr.f32.mxu0 %v1689
    %2046 = vmatmul.mubr.f32.gmra.mrb[0].mxu0 %v1688
    %v2047 = vpop.f32.mrb[0].mxu0
    %v2048 = vadd.f32 %v1980, %v2047
    %v2049 = vpop.f32.mrb[0].mxu0
    %2050 = vmatprep.mubr.f32.mxu0 %v1705
    %2051 = vmatmul.mubr.f32.gmra.mrb[0].mxu0 %v1704
    %v2052 = vpop.f32.mrb[0].mxu0
    %v2053 = vadd.f32 %v1980, %v2052
    %v2054 = vpop.f32.mrb[0].mxu0
    %2055 = vdwg.mxu0
    %2056 = vmatprep.subr.mxu0 0.0
    %2057 = vmatpush1.msra.mxu0 %v1752
    %2058 = vmatprep.subr.mxu0 0.0
    %2059 = vmatpush1.msra.mxu0 %v1753
    %2060 = vmatprep.subr.mxu0 0.0
    %2061 = vmatpush1.msra.mxu0 %v1754
    %2062 = vmatprep.subr.mxu0 0.0
    %2063 = vmatpush1.msra.mxu0 %v1755
    %2064 = vmatprep.subr.mxu0 0.0
    %2065 = vmatpush1.msra.mxu0 %v1756
    %2066 = vmatprep.subr.mxu0 0.0
    %2067 = vmatpush1.msra.mxu0 %v1757
    %2068 = vmatprep.subr.mxu0 0.0
    %2069 = vmatpush1.msra.mxu0 %v1758
    %2070 = vmatprep.subr.mxu0 0.0
    %2071 = vmatpush1.msra.mxu0 %v1759
    %2072 = vmatprep.subr.mxu0 0.0
    %2073 = vmatpush1.msra.mxu0 %v1760
    %2074 = vmatprep.subr.mxu0 0.0
    %2075 = vmatpush1.msra.mxu0 %v1761
    %2076 = vmatprep.subr.mxu0 0.0
    %2077 = vmatpush1.msra.mxu0 %v1762
    %2078 = vmatprep.subr.mxu0 0.0
    %2079 = vmatpush1.msra.mxu0 %v1763
    %2080 = vmatprep.subr.mxu0 0.0
    %2081 = vmatpush1.msra.mxu0 %v1764
    %2082 = vmatprep.subr.mxu0 0.0
    %2083 = vmatpush1.msra.mxu0 %v1765
    %2084 = vmatprep.subr.mxu0 0.0
    %2085 = vmatpush1.msra.mxu0 %v1766
    %2086 = vmatprep.subr.mxu0 0.0
    %2087 = vmatpush1.msra.mxu0 %v1767
    %2088 = vmatprep.subr.mxu0 0.0
    %2089 = vmatpush1.msra.mxu0 %v1768
    %2090 = vmatprep.subr.mxu0 0.0
    %2091 = vmatpush1.msra.mxu0 %v1769
    %2092 = vmatprep.subr.mxu0 0.0
    %2093 = vmatpush1.msra.mxu0 %v1770
    %2094 = vmatprep.subr.mxu0 0.0
    %2095 = vmatpush1.msra.mxu0 %v1771
    %2096 = vmatprep.subr.mxu0 0.0
    %2097 = vmatpush1.msra.mxu0 %v1772
    %2098 = vmatprep.subr.mxu0 0.0
    %2099 = vmatpush1.msra.mxu0 %v1773
    %2100 = vmatprep.subr.mxu0 0.0
    %2101 = vmatpush1.msra.mxu0 %v1774
    %2102 = vmatprep.subr.mxu0 0.0
    %2103 = vmatpush1.msra.mxu0 %v1775
    %2104 = vmatprep.subr.mxu0 0.0
    %2105 = vmatpush1.msra.mxu0 %v1776
    %2106 = vmatprep.subr.mxu0 0.0
    %2107 = vmatpush1.msra.mxu0 %v1777
    %2108 = vmatprep.subr.mxu0 0.0
    %2109 = vmatpush1.msra.mxu0 %v1778
    %2110 = vmatprep.subr.mxu0 0.0
    %2111 = vmatpush1.msra.mxu0 %v1779
    %2112 = vmatprep.subr.mxu0 0.0
    %2113 = vmatpush1.msra.mxu0 %v1780
    %2114 = vmatprep.subr.mxu0 0.0
    %2115 = vmatpush1.msra.mxu0 %v1781
    %2116 = vmatprep.subr.mxu0 0.0
    %2117 = vmatpush1.msra.mxu0 %v1782
    %2118 = vmatprep.subr.mxu0 0.0
    %2119 = vmatpush1.msra.mxu0 %v1783
    %2120 = vmatprep.mubr.f32.mxu0 %v1691
    %2121 = vmatmul.mubr.f32.gmra.mrb[0].mxu0 %v1690
    %v2122 = vpop.f32.mrb[0].mxu0
    %v2123 = vadd.f32 %v2048, %v2122
    %v2124 = vpop.f32.mrb[0].mxu0
    %2125 = vmatprep.mubr.f32.mxu0 %v1707
    %2126 = vmatmul.mubr.f32.gmra.mrb[0].mxu0 %v1706
    %v2127 = vpop.f32.mrb[0].mxu0
    %v2128 = vadd.f32 %v2053, %v2127
    %v2129 = vpop.f32.mrb[0].mxu0
    %2130 = vdwg.mxu0
    %2131 = vmatprep.subr.mxu0 0.0
    %2132 = vmatpush1.msra.mxu0 %v1784
    %2133 = vmatprep.subr.mxu0 0.0
    %2134 = vmatpush1.msra.mxu0 %v1785
    %2135 = vmatprep.subr.mxu0 0.0
    %2136 = vmatpush1.msra.mxu0 %v1786
    %2137 = vmatprep.subr.mxu0 0.0
    %2138 = vmatpush1.msra.mxu0 %v1787
    %2139 = vmatprep.subr.mxu0 0.0
    %2140 = vmatpush1.msra.mxu0 %v1788
    %2141 = vmatprep.subr.mxu0 0.0
    %2142 = vmatpush1.msra.mxu0 %v1789
    %2143 = vmatprep.subr.mxu0 0.0
    %2144 = vmatpush1.msra.mxu0 %v1790
    %2145 = vmatprep.subr.mxu0 0.0
    %2146 = vmatpush1.msra.mxu0 %v1791
    %2147 = vmatprep.subr.mxu0 0.0
    %2148 = vmatpush1.msra.mxu0 %v1792
    %2149 = vmatprep.subr.mxu0 0.0
    %2150 = vmatpush1.msra.mxu0 %v1793
    %2151 = vmatprep.subr.mxu0 0.0
    %2152 = vmatpush1.msra.mxu0 %v1794
    %2153 = vmatprep.subr.mxu0 0.0
    %2154 = vmatpush1.msra.mxu0 %v1795
    %2155 = vmatprep.subr.mxu0 0.0
    %2156 = vmatpush1.msra.mxu0 %v1796
    %2157 = vmatprep.subr.mxu0 0.0
    %2158 = vmatpush1.msra.mxu0 %v1797
    %2159 = vmatprep.subr.mxu0 0.0
    %2160 = vmatpush1.msra.mxu0 %v1798
    %2161 = vmatprep.subr.mxu0 0.0
    %2162 = vmatpush1.msra.mxu0 %v1799
    %2163 = vmatprep.subr.mxu0 0.0
    %2164 = vmatpush1.msra.mxu0 %v1800
    %2165 = vmatprep.subr.mxu0 0.0
    %2166 = vmatpush1.msra.mxu0 %v1801
    %2167 = vmatprep.subr.mxu0 0.0
    %2168 = vmatpush1.msra.mxu0 %v1802
    %2169 = vmatprep.subr.mxu0 0.0
    %2170 = vmatpush1.msra.mxu0 %v1803
    %2171 = vmatprep.subr.mxu0 0.0
    %2172 = vmatpush1.msra.mxu0 %v1804
    %2173 = vmatprep.subr.mxu0 0.0
    %2174 = vmatpush1.msra.mxu0 %v1805
    %2175 = vmatprep.subr.mxu0 0.0
    %2176 = vmatpush1.msra.mxu0 %v1806
    %2177 = vmatprep.subr.mxu0 0.0
    %2178 = vmatpush1.msra.mxu0 %v1807
    %2179 = vmatprep.subr.mxu0 0.0
    %2180 = vmatpush1.msra.mxu0 %v1808
    %2181 = vmatprep.subr.mxu0 0.0
    %2182 = vmatpush1.msra.mxu0 %v1809
    %2183 = vmatprep.subr.mxu0 0.0
    %2184 = vmatpush1.msra.mxu0 %v1810
    %2185 = vmatprep.subr.mxu0 0.0
    %2186 = vmatpush1.msra.mxu0 %v1811
    %2187 = vmatprep.subr.mxu0 0.0
    %2188 = vmatpush1.msra.mxu0 %v1812
    %2189 = vmatprep.subr.mxu0 0.0
    %2190 = vmatpush1.msra.mxu0 %v1813
    %2191 = vmatprep.subr.mxu0 0.0
    %2192 = vmatpush1.msra.mxu0 %v1814
    %2193 = vmatprep.subr.mxu0 0.0
    %2194 = vmatpush1.msra.mxu0 %v1815
    %2195 = vmatprep.mubr.f32.mxu0 %v1693
    %2196 = vmatmul.mubr.f32.gmra.mrb[0].mxu0 %v1692
    %v2197 = vpop.f32.mrb[0].mxu0
    %v2198 = vadd.f32 %v2123, %v2197
    %v2199 = vpop.f32.mrb[0].mxu0
    %2200 = vmatprep.mubr.f32.mxu0 %v1709
    %2201 = vmatmul.mubr.f32.gmra.mrb[0].mxu0 %v1708
    %v2202 = vpop.f32.mrb[0].mxu0
    %v2203 = vadd.f32 %v2128, %v2202
    %v2204 = vpop.f32.mrb[0].mxu0
    %2205 = vdwg.mxu0
    %2206 = vmatprep.subr.mxu0 0.0
    %2207 = vmatpush1.msra.mxu0 %v1816
    %2208 = vmatprep.subr.mxu0 0.0
    %2209 = vmatpush1.msra.mxu0 %v1817
    %2210 = vmatprep.subr.mxu0 0.0
    %2211 = vmatpush1.msra.mxu0 %v1818
    %2212 = vmatprep.subr.mxu0 0.0
    %2213 = vmatpush1.msra.mxu0 %v1819
    %2214 = vmatprep.subr.mxu0 0.0
    %2215 = vmatpush1.msra.mxu0 %v1820
    %2216 = vmatprep.subr.mxu0 0.0
    %2217 = vmatpush1.msra.mxu0 %v1821
    %2218 = vmatprep.subr.mxu0 0.0
    %2219 = vmatpush1.msra.mxu0 %v1822
    %2220 = vmatprep.subr.mxu0 0.0
    %2221 = vmatpush1.msra.mxu0 %v1823
    %2222 = vmatprep.subr.mxu0 0.0
    %2223 = vmatpush1.msra.mxu0 %v1824
    %2224 = vmatprep.subr.mxu0 0.0
    %2225 = vmatpush1.msra.mxu0 %v1825
    %2226 = vmatprep.subr.mxu0 0.0
    %2227 = vmatpush1.msra.mxu0 %v1826
    %2228 = vmatprep.subr.mxu0 0.0
    %2229 = vmatpush1.msra.mxu0 %v1827
    %2230 = vmatprep.subr.mxu0 0.0
    %2231 = vmatpush1.msra.mxu0 %v1828
    %2232 = vmatprep.subr.mxu0 0.0
    %2233 = vmatpush1.msra.mxu0 %v1829
    %2234 = vmatprep.subr.mxu0 0.0
    %2235 = vmatpush1.msra.mxu0 %v1830
    %2236 = vmatprep.subr.mxu0 0.0
    %2237 = vmatpush1.msra.mxu0 %v1831
    %2238 = vmatprep.subr.mxu0 0.0
    %2239 = vmatpush1.msra.mxu0 %v1832
    %2240 = vmatprep.subr.mxu0 0.0
    %2241 = vmatpush1.msra.mxu0 %v1833
    %2242 = vmatprep.subr.mxu0 0.0
    %2243 = vmatpush1.msra.mxu0 %v1834
    %2244 = vmatprep.subr.mxu0 0.0
    %2245 = vmatpush1.msra.mxu0 %v1835
    %2246 = vmatprep.subr.mxu0 0.0
    %2247 = vmatpush1.msra.mxu0 %v1836
    %2248 = vmatprep.subr.mxu0 0.0
    %2249 = vmatpush1.msra.mxu0 %v1837
    %2250 = vmatprep.subr.mxu0 0.0
    %2251 = vmatpush1.msra.mxu0 %v1838
    %2252 = vmatprep.subr.mxu0 0.0
    %2253 = vmatpush1.msra.mxu0 %v1839
    %2254 = vmatprep.subr.mxu0 0.0
    %2255 = vmatpush1.msra.mxu0 %v1840
    %2256 = vmatprep.subr.mxu0 0.0
    %2257 = vmatpush1.msra.mxu0 %v1841
    %2258 = vmatprep.subr.mxu0 0.0
    %2259 = vmatpush1.msra.mxu0 %v1842
    %2260 = vmatprep.subr.mxu0 0.0
    %2261 = vmatpush1.msra.mxu0 %v1843
    %2262 = vmatprep.subr.mxu0 0.0
    %2263 = vmatpush1.msra.mxu0 %v1844
    %2264 = vmatprep.subr.mxu0 0.0
    %2265 = vmatpush1.msra.mxu0 %v1845
    %2266 = vmatprep.subr.mxu0 0.0
    %2267 = vmatpush1.msra.mxu0 %v1846
    %2268 = vmatprep.subr.mxu0 0.0
    %2269 = vmatpush1.msra.mxu0 %v1847
    %2270 = vmatprep.mubr.f32.mxu0 %v1695
    %2271 = vmatmul.mubr.f32.gmra.mrb[0].mxu0 %v1694
    %v2272 = vpop.f32.mrb[0].mxu0
    %v2273 = vadd.f32 %v2198, %v2272
    %v2274 = vpop.f32.mrb[0].mxu0
    %2275 = vmatprep.mubr.f32.mxu0 %v1711
    %2276 = vmatmul.mubr.f32.gmra.mrb[0].mxu0 %v1710
    %v2277 = vpop.f32.mrb[0].mxu0
    %v2278 = vadd.f32 %v2203, %v2277
    %v2279 = vpop.f32.mrb[0].mxu0
    %2280 = vdwg.mxu0
    %2281 = vmatprep.subr.mxu0 0.0
    %2282 = vmatpush1.msra.mxu0 %v1848
    %2283 = vmatprep.subr.mxu0 0.0
    %2284 = vmatpush1.msra.mxu0 %v1849
    %2285 = vmatprep.subr.mxu0 0.0
    %2286 = vmatpush1.msra.mxu0 %v1850
    %2287 = vmatprep.subr.mxu0 0.0
    %2288 = vmatpush1.msra.mxu0 %v1851
    %2289 = vmatprep.subr.mxu0 0.0
    %2290 = vmatpush1.msra.mxu0 %v1852
    %2291 = vmatprep.subr.mxu0 0.0
    %2292 = vmatpush1.msra.mxu0 %v1853
    %2293 = vmatprep.subr.mxu0 0.0
    %2294 = vmatpush1.msra.mxu0 %v1854
    %2295 = vmatprep.subr.mxu0 0.0
    %2296 = vmatpush1.msra.mxu0 %v1855
    %2297 = vmatprep.subr.mxu0 0.0
    %2298 = vmatpush1.msra.mxu0 %v1856
    %2299 = vmatprep.subr.mxu0 0.0
    %2300 = vmatpush1.msra.mxu0 %v1857
    %2301 = vmatprep.subr.mxu0 0.0
    %2302 = vmatpush1.msra.mxu0 %v1858
    %2303 = vmatprep.subr.mxu0 0.0
    %2304 = vmatpush1.msra.mxu0 %v1859
    %2305 = vmatprep.subr.mxu0 0.0
    %2306 = vmatpush1.msra.mxu0 %v1860
    %2307 = vmatprep.subr.mxu0 0.0
    %2308 = vmatpush1.msra.mxu0 %v1861
    %2309 = vmatprep.subr.mxu0 0.0
    %2310 = vmatpush1.msra.mxu0 %v1862
    %2311 = vmatprep.subr.mxu0 0.0
    %2312 = vmatpush1.msra.mxu0 %v1863
    %2313 = vmatprep.subr.mxu0 0.0
    %2314 = vmatpush1.msra.mxu0 %v1864
    %2315 = vmatprep.subr.mxu0 0.0
    %2316 = vmatpush1.msra.mxu0 %v1865
    %2317 = vmatprep.subr.mxu0 0.0
    %2318 = vmatpush1.msra.mxu0 %v1866
    %2319 = vmatprep.subr.mxu0 0.0
    %2320 = vmatpush1.msra.mxu0 %v1867
    %2321 = vmatprep.subr.mxu0 0.0
    %2322 = vmatpush1.msra.mxu0 %v1868
    %2323 = vmatprep.subr.mxu0 0.0
    %2324 = vmatpush1.msra.mxu0 %v1869
    %2325 = vmatprep.subr.mxu0 0.0
    %2326 = vmatpush1.msra.mxu0 %v1870
    %2327 = vmatprep.subr.mxu0 0.0
    %2328 = vmatpush1.msra.mxu0 %v1871
    %2329 = vmatprep.subr.mxu0 0.0
    %2330 = vmatpush1.msra.mxu0 %v1872
    %2331 = vmatprep.subr.mxu0 0.0
    %2332 = vmatpush1.msra.mxu0 %v1873
    %2333 = vmatprep.subr.mxu0 0.0
    %2334 = vmatpush1.msra.mxu0 %v1874
    %2335 = vmatprep.subr.mxu0 0.0
    %2336 = vmatpush1.msra.mxu0 %v1875
    %2337 = vmatprep.subr.mxu0 0.0
    %2338 = vmatpush1.msra.mxu0 %v1876
    %2339 = vmatprep.subr.mxu0 0.0
    %2340 = vmatpush1.msra.mxu0 %v1877
    %2341 = vmatprep.subr.mxu0 0.0
    %2342 = vmatpush1.msra.mxu0 %v1878
    %2343 = vmatprep.subr.mxu0 0.0
    %2344 = vmatpush1.msra.mxu0 %v1879
    %2345 = vmatprep.mubr.f32.mxu0 %v1697
    %2346 = vmatmul.mubr.f32.gmra.mrb[0].mxu0 %v1696
    %v2347 = vpop.f32.mrb[0].mxu0
    %v2348 = vadd.f32 %v2273, %v2347
    %v2349 = vpop.f32.mrb[0].mxu0
    %2350 = vmatprep.mubr.f32.mxu0 %v1713
    %2351 = vmatmul.mubr.f32.gmra.mrb[0].mxu0 %v1712
    %v2352 = vpop.f32.mrb[0].mxu0
    %v2353 = vadd.f32 %v2278, %v2352
    %v2354 = vpop.f32.mrb[0].mxu0
    %2355 = vdwg.mxu0
    %2356 = vmatprep.subr.mxu0 0.0
    %2357 = vmatpush1.msra.mxu0 %v1880
    %2358 = vmatprep.subr.mxu0 0.0
    %2359 = vmatpush1.msra.mxu0 %v1881
    %2360 = vmatprep.subr.mxu0 0.0
    %2361 = vmatpush1.msra.mxu0 %v1882
    %2362 = vmatprep.subr.mxu0 0.0
    %2363 = vmatpush1.msra.mxu0 %v1883
    %2364 = vmatprep.subr.mxu0 0.0
    %2365 = vmatpush1.msra.mxu0 %v1884
    %2366 = vmatprep.subr.mxu0 0.0
    %2367 = vmatpush1.msra.mxu0 %v1885
    %2368 = vmatprep.subr.mxu0 0.0
    %2369 = vmatpush1.msra.mxu0 %v1886
    %2370 = vmatprep.subr.mxu0 0.0
    %2371 = vmatpush1.msra.mxu0 %v1887
    %2372 = vmatprep.subr.mxu0 0.0
    %2373 = vmatpush1.msra.mxu0 %v1888
    %2374 = vmatprep.subr.mxu0 0.0
    %2375 = vmatpush1.msra.mxu0 %v1889
    %2376 = vmatprep.subr.mxu0 0.0
    %2377 = vmatpush1.msra.mxu0 %v1890
    %2378 = vmatprep.subr.mxu0 0.0
    %2379 = vmatpush1.msra.mxu0 %v1891
    %2380 = vmatprep.subr.mxu0 0.0
    %2381 = vmatpush1.msra.mxu0 %v1892
    %2382 = vmatprep.subr.mxu0 0.0
    %2383 = vmatpush1.msra.mxu0 %v1893
    %2384 = vmatprep.subr.mxu0 0.0
    %2385 = vmatpush1.msra.mxu0 %v1894
    %2386 = vmatprep.subr.mxu0 0.0
    %2387 = vmatpush1.msra.mxu0 %v1895
    %2388 = vmatprep.subr.mxu0 0.0
    %2389 = vmatpush1.msra.mxu0 %v1896
    %2390 = vmatprep.subr.mxu0 0.0
    %2391 = vmatpush1.msra.mxu0 %v1897
    %2392 = vmatprep.subr.mxu0 0.0
    %2393 = vmatpush1.msra.mxu0 %v1898
    %2394 = vmatprep.subr.mxu0 0.0
    %2395 = vmatpush1.msra.mxu0 %v1899
    %2396 = vmatprep.subr.mxu0 0.0
    %2397 = vmatpush1.msra.mxu0 %v1900
    %2398 = vmatprep.subr.mxu0 0.0
    %2399 = vmatpush1.msra.mxu0 %v1901
    %2400 = vmatprep.subr.mxu0 0.0
    %2401 = vmatpush1.msra.mxu0 %v1902
    %2402 = vmatprep.subr.mxu0 0.0
    %2403 = vmatpush1.msra.mxu0 %v1903
    %2404 = vmatprep.subr.mxu0 0.0
    %2405 = vmatpush1.msra.mxu0 %v1904
    %2406 = vmatprep.subr.mxu0 0.0
    %2407 = vmatpush1.msra.mxu0 %v1905
    %2408 = vmatprep.subr.mxu0 0.0
    %2409 = vmatpush1.msra.mxu0 %v1906
    %2410 = vmatprep.subr.mxu0 0.0
    %2411 = vmatpush1.msra.mxu0 %v1907
    %2412 = vmatprep.subr.mxu0 0.0
    %2413 = vmatpush1.msra.mxu0 %v1908
    %2414 = vmatprep.subr.mxu0 0.0
    %2415 = vmatpush1.msra.mxu0 %v1909
    %2416 = vmatprep.subr.mxu0 0.0
    %2417 = vmatpush1.msra.mxu0 %v1910
    %2418 = vmatprep.subr.mxu0 0.0
    %2419 = vmatpush1.msra.mxu0 %v1911
    %2420 = vmatprep.mubr.f32.mxu0 %v1699
    %2421 = vmatmul.mubr.f32.gmra.mrb[0].mxu0 %v1698
    %v2422 = vpop.f32.mrb[0].mxu0
    %v2423 = vadd.f32 %v2348, %v2422
    %v2424 = vpop.f32.mrb[0].mxu0
    %2425 = vmatprep.mubr.f32.mxu0 %v1715
    %2426 = vmatmul.mubr.f32.gmra.mrb[0].mxu0 %v1714
    %v2427 = vpop.f32.mrb[0].mxu0
    %v2428 = vadd.f32 %v2353, %v2427
    %v2429 = vpop.f32.mrb[0].mxu0
    %2430 = vdwg.mxu0
    %2431 = vmatprep.subr.mxu0 0.0
    %2432 = vmatpush1.msra.mxu0 %v1912
    %2433 = vmatprep.subr.mxu0 0.0
    %2434 = vmatpush1.msra.mxu0 %v1913
    %2435 = vmatprep.subr.mxu0 0.0
    %2436 = vmatpush1.msra.mxu0 %v1914
    %2437 = vmatprep.subr.mxu0 0.0
    %2438 = vmatpush1.msra.mxu0 %v1915
    %2439 = vmatprep.subr.mxu0 0.0
    %2440 = vmatpush1.msra.mxu0 %v1916
    %2441 = vmatprep.subr.mxu0 0.0
    %2442 = vmatpush1.msra.mxu0 %v1917
    %2443 = vmatprep.subr.mxu0 0.0
    %2444 = vmatpush1.msra.mxu0 %v1918
    %2445 = vmatprep.subr.mxu0 0.0
    %2446 = vmatpush1.msra.mxu0 %v1919
    %2447 = vmatprep.subr.mxu0 0.0
    %2448 = vmatpush1.msra.mxu0 %v1920
    %2449 = vmatprep.subr.mxu0 0.0
    %2450 = vmatpush1.msra.mxu0 %v1921
    %2451 = vmatprep.subr.mxu0 0.0
    %2452 = vmatpush1.msra.mxu0 %v1922
    %2453 = vmatprep.subr.mxu0 0.0
    %2454 = vmatpush1.msra.mxu0 %v1923
    %2455 = vmatprep.subr.mxu0 0.0
    %2456 = vmatpush1.msra.mxu0 %v1924
    %2457 = vmatprep.subr.mxu0 0.0
    %2458 = vmatpush1.msra.mxu0 %v1925
    %2459 = vmatprep.subr.mxu0 0.0
    %2460 = vmatpush1.msra.mxu0 %v1926
    %2461 = vmatprep.subr.mxu0 0.0
    %2462 = vmatpush1.msra.mxu0 %v1927
    %2463 = vmatprep.subr.mxu0 0.0
    %2464 = vmatpush1.msra.mxu0 %v1928
    %2465 = vmatprep.subr.mxu0 0.0
    %2466 = vmatpush1.msra.mxu0 %v1929
    %2467 = vmatprep.subr.mxu0 0.0
    %2468 = vmatpush1.msra.mxu0 %v1930
    %2469 = vmatprep.subr.mxu0 0.0
    %2470 = vmatpush1.msra.mxu0 %v1931
    %2471 = vmatprep.subr.mxu0 0.0
    %2472 = vmatpush1.msra.mxu0 %v1932
    %2473 = vmatprep.subr.mxu0 0.0
    %2474 = vmatpush1.msra.mxu0 %v1933
    %2475 = vmatprep.subr.mxu0 0.0
    %2476 = vmatpush1.msra.mxu0 %v1934
    %2477 = vmatprep.subr.mxu0 0.0
    %2478 = vmatpush1.msra.mxu0 %v1935
    %2479 = vmatprep.subr.mxu0 0.0
    %2480 = vmatpush1.msra.mxu0 %v1936
    %2481 = vmatprep.subr.mxu0 0.0
    %2482 = vmatpush1.msra.mxu0 %v1937
    %2483 = vmatprep.subr.mxu0 0.0
    %2484 = vmatpush1.msra.mxu0 %v1938
    %2485 = vmatprep.subr.mxu0 0.0
    %2486 = vmatpush1.msra.mxu0 %v1939
    %2487 = vmatprep.subr.mxu0 0.0
    %2488 = vmatpush1.msra.mxu0 %v1940
    %2489 = vmatprep.subr.mxu0 0.0
    %2490 = vmatpush1.msra.mxu0 %v1941
    %2491 = vmatprep.subr.mxu0 0.0
    %2492 = vmatpush1.msra.mxu0 %v1942
    %2493 = vmatprep.subr.mxu0 0.0
    %2494 = vmatpush1.msra.mxu0 %v1943
    %2495 = vmatprep.mubr.f32.mxu0 %v1701
    %2496 = vmatmul.mubr.f32.gmra.mrb[0].mxu0 %v1700
    %v2497 = vpop.f32.mrb[0].mxu0
    %v2498 = vadd.f32 %v2423, %v2497
    %v2499 = vpop.f32.mrb[0].mxu0
    %2500 = vmatprep.mubr.f32.mxu0 %v1717
    %2501 = vmatmul.mubr.f32.gmra.mrb[0].mxu0 %v1716
    %v2502 = vpop.f32.mrb[0].mxu0
    %v2503 = vadd.f32 %v2428, %v2502
    %v2504 = vpop.f32.mrb[0].mxu0
    %2505 = vdwg.mxu0
    %2506 = vmatprep.subr.mxu0 0.0
    %2507 = vmatpush1.msra.mxu0 %v1944
    %2508 = vmatprep.subr.mxu0 0.0
    %2509 = vmatpush1.msra.mxu0 %v1945
    %2510 = vmatprep.subr.mxu0 0.0
    %2511 = vmatpush1.msra.mxu0 %v1946
    %2512 = vmatprep.subr.mxu0 0.0
    %2513 = vmatpush1.msra.mxu0 %v1947
    %2514 = vmatprep.subr.mxu0 0.0
    %2515 = vmatpush1.msra.mxu0 %v1948
    %2516 = vmatprep.subr.mxu0 0.0
    %2517 = vmatpush1.msra.mxu0 %v1949
    %2518 = vmatprep.subr.mxu0 0.0
    %2519 = vmatpush1.msra.mxu0 %v1950
    %2520 = vmatprep.subr.mxu0 0.0
    %2521 = vmatpush1.msra.mxu0 %v1951
    %2522 = vmatprep.subr.mxu0 0.0
    %2523 = vmatpush1.msra.mxu0 %v1952
    %2524 = vmatprep.subr.mxu0 0.0
    %2525 = vmatpush1.msra.mxu0 %v1953
    %2526 = vmatprep.subr.mxu0 0.0
    %2527 = vmatpush1.msra.mxu0 %v1954
    %2528 = vmatprep.subr.mxu0 0.0
    %2529 = vmatpush1.msra.mxu0 %v1955
    %2530 = vmatprep.subr.mxu0 0.0
    %2531 = vmatpush1.msra.mxu0 %v1956
    %2532 = vmatprep.subr.mxu0 0.0
    %2533 = vmatpush1.msra.mxu0 %v1957
    %2534 = vmatprep.subr.mxu0 0.0
    %2535 = vmatpush1.msra.mxu0 %v1958
    %2536 = vmatprep.subr.mxu0 0.0
    %2537 = vmatpush1.msra.mxu0 %v1959
    %2538 = vmatprep.subr.mxu0 0.0
    %2539 = vmatpush1.msra.mxu0 %v1960
    %2540 = vmatprep.subr.mxu0 0.0
    %2541 = vmatpush1.msra.mxu0 %v1961
    %2542 = vmatprep.subr.mxu0 0.0
    %2543 = vmatpush1.msra.mxu0 %v1962
    %2544 = vmatprep.subr.mxu0 0.0
    %2545 = vmatpush1.msra.mxu0 %v1963
    %2546 = vmatprep.subr.mxu0 0.0
    %2547 = vmatpush1.msra.mxu0 %v1964
    %2548 = vmatprep.subr.mxu0 0.0
    %2549 = vmatpush1.msra.mxu0 %v1965
    %2550 = vmatprep.subr.mxu0 0.0
    %2551 = vmatpush1.msra.mxu0 %v1966
    %2552 = vmatprep.subr.mxu0 0.0
    %2553 = vmatpush1.msra.mxu0 %v1967
    %2554 = vmatprep.subr.mxu0 0.0
    %2555 = vmatpush1.msra.mxu0 %v1968
    %2556 = vmatprep.subr.mxu0 0.0
    %2557 = vmatpush1.msra.mxu0 %v1969
    %2558 = vmatprep.subr.mxu0 0.0
    %2559 = vmatpush1.msra.mxu0 %v1970
    %2560 = vmatprep.subr.mxu0 0.0
    %2561 = vmatpush1.msra.mxu0 %v1971
    %2562 = vmatprep.subr.mxu0 0.0
    %2563 = vmatpush1.msra.mxu0 %v1972
    %2564 = vmatprep.subr.mxu0 0.0
    %2565 = vmatpush1.msra.mxu0 %v1973
    %2566 = vmatprep.subr.mxu0 0.0
    %2567 = vmatpush1.msra.mxu0 %v1974
    %2568 = vmatprep.subr.mxu0 0.0
    %2569 = vmatpush1.msra.mxu0 %v1975
    %2570 = vmatprep.mubr.f32.mxu0 %v1703
    %2571 = vmatmul.mubr.f32.gmra.mrb[0].mxu0 %v1702
    %v2572 = vpop.f32.mrb[0].mxu0
    %v2573 = vadd.f32 %v2498, %v2572
    %v2574 = vpop.f32.mrb[0].mxu0
    %2575 = vmatprep.mubr.f32.mxu0 %v1719
    %2576 = vmatmul.mubr.f32.gmra.mrb[0].mxu0 %v1718
    %v2577 = vpop.f32.mrb[0].mxu0
    %v2578 = vadd.f32 %v2503, %v2577
    %v2579 = vpop.f32.mrb[0].mxu0
    %2580 = vdwg.mxu0
    %v2581 = vadd.f32 %v963, %v2573
    %v2582 = vadd.f32 %v964, %v2578
    %v2583 = vld [vmem:[%s12] sm:$0x1]
    %v2584 = vld [vmem:[%s13] sm:$0x1]
    %v2585 = vsel %vm78, %v2581, 0.0
    %2586 = vadd.xlane.f32.xlu0 %v2585
    %v2587 = vpop.xlane.xlu0 %2586
    %v2588 = vsel %vm78, %v2582, 0.0
    %2589 = vadd.xlane.f32.xlu0 %v2588
    %v2590 = vpop.xlane.xlu0 %2589
    %v2591 = vmul.f32 %v2587, %v932
    %v2592 = vmul.f32 %v2590, %v932
    %v2593 = vsub.f32 %v2581, %v2591
    %v2594 = vsub.f32 %v2582, %v2592
    %v2595 = vmul.f32 %v2593, %v2593
    %v2596 = vmul.f32 %v2594, %v2594
    %v2597 = vsel %vm78, %v2595, 0.0
    %2598 = vadd.xlane.f32.xlu0 %v2597
    %v2599 = vpop.xlane.xlu0 %2598
    %v2600 = vsel %vm78, %v2596, 0.0
    %2601 = vadd.xlane.f32.xlu0 %v2600
    %v2602 = vpop.xlane.xlu0 %2601
    %v2603 = vmul.f32 %v2599, %v932
    %v2604 = vmul.f32 %v2602, %v932
    %v2605 = vadd.f32 %v2603, 1e-05
    %v2606 = vadd.f32 %v2604, 1e-05
    %v2607 = vrsqrt.pop %v2605
    %v2608 = vrsqrt.pop %v2606
    %v2609 = vmul.f32 %v2593, %v2607
    %v2610 = vmul.f32 %v2594, %v2608
    %v2611 = vlaneseq
    %v2612 = vshrl.u32 %v2611, 7
    %v2613 = vsub.s32 0, %v2612
    %v2614 = vrot.slane %v2583, %v2613
    %v2615 = vmul.f32 %v2609, %v2614
    %v2616 = vmul.f32 %v2610, %v2614
    %v2617 = vlaneseq
    %v2618 = vshrl.u32 %v2617, 7
    %v2619 = vsub.s32 0, %v2618
    %v2620 = vrot.slane %v2584, %v2619
    %v2621 = vadd.f32 %v2615, %v2620
    %v2622 = vadd.f32 %v2616, %v2620
    %s2623 = scalar_lea.vmem %s2, 8
    %v2624 = vld [vmem:[%s2623] sm:$0xff]
    %v2625 = vld [vmem:[%s3 + $0x1] sm:$0x1]
    %v2626 = vlaneseq
    %v2627 = vshrl.u32 %v2626, 7
    %v2628 = vsub.s32 0, %v2627
    %v2629 = vrot.slane %v2625, %v2628
    %v2631 = vsel %vm78, %v2621, 0
    %v2634 = vsel %vm78, %v2622, 0
    %2636 = vmatprep.subr.mxu0 0.0
    %2637 = vmatpush1.msra.mxu0 %v2624
    %2638 = vmatprep.subr.mxu0 0.0
    %2639 = vmatpush1.msra.mxu0 0.0
    %2640 = vmatprep.subr.mxu0 0.0
    %2641 = vmatpush1.msra.mxu0 0.0
    %2642 = vmatprep.subr.mxu0 0.0
    %2643 = vmatpush1.msra.mxu0 0.0
    %2644 = vmatprep.subr.mxu0 0.0
    %2645 = vmatpush1.msra.mxu0 0.0
    %2646 = vmatprep.subr.mxu0 0.0
    %2647 = vmatpush1.msra.mxu0 0.0
    %2648 = vmatprep.subr.mxu0 0.0
    %2649 = vmatpush1.msra.mxu0 0.0
    %2650 = vmatprep.subr.mxu0 0.0
    %2651 = vmatpush1.msra.mxu0 0.0
    %2652 = vmatprep.subr.mxu0 0.0
    %2653 = vmatpush1.msra.mxu0 0.0
    %2654 = vmatprep.subr.mxu0 0.0
    %2655 = vmatpush1.msra.mxu0 0.0
    %2656 = vmatprep.subr.mxu0 0.0
    %2657 = vmatpush1.msra.mxu0 0.0
    %2658 = vmatprep.subr.mxu0 0.0
    %2659 = vmatpush1.msra.mxu0 0.0
    %2660 = vmatprep.subr.mxu0 0.0
    %2661 = vmatpush1.msra.mxu0 0.0
    %2662 = vmatprep.subr.mxu0 0.0
    %2663 = vmatpush1.msra.mxu0 0.0
    %2664 = vmatprep.subr.mxu0 0.0
    %2665 = vmatpush1.msra.mxu0 0.0
    %2666 = vmatprep.subr.mxu0 0.0
    %2667 = vmatpush1.msra.mxu0 0.0
    %2668 = vmatprep.subr.mxu0 0.0
    %2669 = vmatpush1.msra.mxu0 0.0
    %2670 = vmatprep.subr.mxu0 0.0
    %2671 = vmatpush1.msra.mxu0 0.0
    %2672 = vmatprep.subr.mxu0 0.0
    %2673 = vmatpush1.msra.mxu0 0.0
    %2674 = vmatprep.subr.mxu0 0.0
    %2675 = vmatpush1.msra.mxu0 0.0
    %2676 = vmatprep.subr.mxu0 0.0
    %2677 = vmatpush1.msra.mxu0 0.0
    %2678 = vmatprep.subr.mxu0 0.0
    %2679 = vmatpush1.msra.mxu0 0.0
    %2680 = vmatprep.subr.mxu0 0.0
    %2681 = vmatpush1.msra.mxu0 0.0
    %2682 = vmatprep.subr.mxu0 0.0
    %2683 = vmatpush1.msra.mxu0 0.0
    %2684 = vmatprep.subr.mxu0 0.0
    %2685 = vmatpush1.msra.mxu0 0.0
    %2686 = vmatprep.subr.mxu0 0.0
    %2687 = vmatpush1.msra.mxu0 0.0
    %2688 = vmatprep.subr.mxu0 0.0
    %2689 = vmatpush1.msra.mxu0 0.0
    %2690 = vmatprep.subr.mxu0 0.0
    %2691 = vmatpush1.msra.mxu0 0.0
    %2692 = vmatprep.subr.mxu0 0.0
    %2693 = vmatpush1.msra.mxu0 0.0
    %2694 = vmatprep.subr.mxu0 0.0
    %2695 = vmatpush1.msra.mxu0 0.0
    %2696 = vmatprep.subr.mxu0 0.0
    %2697 = vmatpush1.msra.mxu0 0.0
    %2698 = vmatprep.subr.mxu0 0.0
    %2699 = vmatpush1.msra.mxu0 0.0
    %2700 = vmatprep.mubr.f32.mxu0 0.0
    %2701 = vmatmul.mubr.f32.gmra.mrb[0].mxu0 %v2631
    %v2702 = vpop.f32.mrb[0].mxu0
    %v2703 = vadd.f32 %v2629, %v2702
    %v2704 = vpop.f32.mrb[0].mxu0
    %2705 = vmatprep.mubr.f32.mxu0 0.0
    %2706 = vmatmul.mubr.f32.gmra.mrb[0].mxu0 %v2634
    %v2707 = vpop.f32.mrb[0].mxu0
    %v2708 = vadd.f32 %v2629, %v2707
    %v2709 = vpop.f32.mrb[0].mxu0
    %2710 = vdwg.mxu0
    %v2713 = vcombine.high %v2703, %v2703
    %v2715 = vunpack.c.l.s4 1966171168
    %v2716 = vunpack.c.0.s8 %v2715
    %v2717 = vlaneseq
    %v2718 = vshrl.u32 %v2717, 7
    %v2719 = vsub.s32 %v2716, %v2718
    %v2720 = vrot.slane %v2703, %v2719
    %v2722 = vunpack.c.l.s4 1966171168
    %v2723 = vunpack.c.0.s8 %v2722
    %v2724 = vlaneseq
    %v2725 = vshrl.u32 %v2724, 7
    %v2726 = vsub.s32 %v2723, %v2725
    %v2727 = vrot.slane %v2713, %v2726
    %v2728 = vcombine.high %v2720, %v2720
    %v2729 = vcombine.high %v2727, %v2727
    %v2731 = vunpack.c.l.s4 1966171168
    %v2732 = vunpack.c.0.s8 %v2731
    %v2733 = vlaneseq
    %v2734 = vshrl.u32 %v2733, 7
    %v2735 = vsub.s32 %v2732, %v2734
    %v2736 = vrot.slane %v2720, %v2735
    %v2738 = vunpack.c.l.s4 1966171168
    %v2739 = vunpack.c.0.s8 %v2738
    %v2740 = vlaneseq
    %v2741 = vshrl.u32 %v2740, 7
    %v2742 = vsub.s32 %v2739, %v2741
    %v2743 = vrot.slane %v2727, %v2742
    %v2745 = vunpack.c.l.s4 1966171168
    %v2746 = vunpack.c.0.s8 %v2745
    %v2747 = vlaneseq
    %v2748 = vshrl.u32 %v2747, 7
    %v2749 = vsub.s32 %v2746, %v2748
    %v2750 = vrot.slane %v2728, %v2749
    %v2752 = vunpack.c.l.s4 1966171168
    %v2753 = vunpack.c.0.s8 %v2752
    %v2754 = vlaneseq
    %v2755 = vshrl.u32 %v2754, 7
    %v2756 = vsub.s32 %v2753, %v2755
    %v2757 = vrot.slane %v2729, %v2756
    %v2758 = vcombine.high %v2736, %v2736
    %v2759 = vcombine.high %v2743, %v2743
    %v2760 = vcombine.high %v2750, %v2750
    %v2761 = vcombine.high %v2757, %v2757
    %v2762 = vcombine.high %v2708, %v2708
    %v2764 = vunpack.c.l.s4 1966171168
    %v2765 = vunpack.c.0.s8 %v2764
    %v2766 = vlaneseq
    %v2767 = vshrl.u32 %v2766, 7
    %v2768 = vsub.s32 %v2765, %v2767
    %v2769 = vrot.slane %v2708, %v2768
    %v2771 = vunpack.c.l.s4 1966171168
    %v2772 = vunpack.c.0.s8 %v2771
    %v2773 = vlaneseq
    %v2774 = vshrl.u32 %v2773, 7
    %v2775 = vsub.s32 %v2772, %v2774
    %v2776 = vrot.slane %v2762, %v2775
    %v2777 = vcombine.high %v2769, %v2769
    %v2778 = vcombine.high %v2776, %v2776
    %v2780 = vunpack.c.l.s4 1966171168
    %v2781 = vunpack.c.0.s8 %v2780
    %v2782 = vlaneseq
    %v2783 = vshrl.u32 %v2782, 7
    %v2784 = vsub.s32 %v2781, %v2783
    %v2785 = vrot.slane %v2769, %v2784
    %v2787 = vunpack.c.l.s4 1966171168
    %v2788 = vunpack.c.0.s8 %v2787
    %v2789 = vlaneseq
    %v2790 = vshrl.u32 %v2789, 7
    %v2791 = vsub.s32 %v2788, %v2790
    %v2792 = vrot.slane %v2776, %v2791
    %v2794 = vunpack.c.l.s4 1966171168
    %v2795 = vunpack.c.0.s8 %v2794
    %v2796 = vlaneseq
    %v2797 = vshrl.u32 %v2796, 7
    %v2798 = vsub.s32 %v2795, %v2797
    %v2799 = vrot.slane %v2777, %v2798
    %v2801 = vunpack.c.l.s4 1966171168
    %v2802 = vunpack.c.0.s8 %v2801
    %v2803 = vlaneseq
    %v2804 = vshrl.u32 %v2803, 7
    %v2805 = vsub.s32 %v2802, %v2804
    %v2806 = vrot.slane %v2778, %v2805
    %v2807 = vcombine.high %v2785, %v2785
    %v2808 = vcombine.high %v2792, %v2792
    %v2809 = vcombine.high %v2799, %v2799
    %v2810 = vcombine.high %v2806, %v2806
    %v2811 = vlaneseq
    %v2812 = vshrl.u32 %v2811, 7
    %v2813 = vsub.s32 0, %v2812
    %v2814 = vrot.slane %v2736, %v2813
    %v2815 = vlaneseq
    %v2816 = vshrl.u32 %v2815, 7
    %v2817 = vsub.s32 0, %v2816
    %v2818 = vrot.slane %v2750, %v2817
    %v2819 = vlaneseq
    %v2820 = vshrl.u32 %v2819, 7
    %v2821 = vsub.s32 0, %v2820
    %v2822 = vrot.slane %v2758, %v2821
    %v2823 = vlaneseq
    %v2824 = vshrl.u32 %v2823, 7
    %v2825 = vsub.s32 0, %v2824
    %v2826 = vrot.slane %v2760, %v2825
    %v2827 = vlaneseq
    %v2828 = vshrl.u32 %v2827, 7
    %v2829 = vsub.s32 0, %v2828
    %v2830 = vrot.slane %v2743, %v2829
    %v2831 = vlaneseq
    %v2832 = vshrl.u32 %v2831, 7
    %v2833 = vsub.s32 0, %v2832
    %v2834 = vrot.slane %v2757, %v2833
    %v2835 = vlaneseq
    %v2836 = vshrl.u32 %v2835, 7
    %v2837 = vsub.s32 0, %v2836
    %v2838 = vrot.slane %v2759, %v2837
    %v2839 = vlaneseq
    %v2840 = vshrl.u32 %v2839, 7
    %v2841 = vsub.s32 0, %v2840
    %v2842 = vrot.slane %v2761, %v2841
    %v2843 = vlaneseq
    %v2844 = vshrl.u32 %v2843, 7
    %v2845 = vsub.s32 0, %v2844
    %v2846 = vrot.slane %v2785, %v2845
    %v2847 = vlaneseq
    %v2848 = vshrl.u32 %v2847, 7
    %v2849 = vsub.s32 0, %v2848
    %v2850 = vrot.slane %v2799, %v2849
    %v2851 = vlaneseq
    %v2852 = vshrl.u32 %v2851, 7
    %v2853 = vsub.s32 0, %v2852
    %v2854 = vrot.slane %v2807, %v2853
    %v2855 = vlaneseq
    %v2856 = vshrl.u32 %v2855, 7
    %v2857 = vsub.s32 0, %v2856
    %v2858 = vrot.slane %v2809, %v2857
    %v2859 = vlaneseq
    %v2860 = vshrl.u32 %v2859, 7
    %v2861 = vsub.s32 0, %v2860
    %v2862 = vrot.slane %v2792, %v2861
    %v2863 = vlaneseq
    %v2864 = vshrl.u32 %v2863, 7
    %v2865 = vsub.s32 0, %v2864
    %v2866 = vrot.slane %v2806, %v2865
    %v2867 = vlaneseq
    %v2868 = vshrl.u32 %v2867, 7
    %v2869 = vsub.s32 0, %v2868
    %v2870 = vrot.slane %v2808, %v2869
    %v2871 = vlaneseq
    %v2872 = vshrl.u32 %v2871, 7
    %v2873 = vsub.s32 0, %v2872
    %v2874 = vrot.slane %v2810, %v2873
    %2891 = vrot.lane.b32.xlu0 %v2703, 120
    %v2892 = vpop.permute.xlu0 %2891
    %2893 = vrot.lane.b32.xlu0 %v2708, 120
    %v2894 = vpop.permute.xlu0 %2893
    %v2897 = vmul.f32 %v2814, %v2892
    %v2898 = vmul.f32 %v2818, %v2892
    %v2899 = vmul.f32 %v2822, %v2892
    %v2900 = vmul.f32 %v2826, %v2892
    %v2901 = vmul.f32 %v2830, %v2892
    %v2902 = vmul.f32 %v2834, %v2892
    %v2903 = vmul.f32 %v2838, %v2892
    %v2904 = vmul.f32 %v2842, %v2892
    %v2905 = vmul.f32 %v2846, %v2894
    %v2906 = vmul.f32 %v2850, %v2894
    %v2907 = vmul.f32 %v2854, %v2894
    %v2908 = vmul.f32 %v2858, %v2894
    %v2909 = vmul.f32 %v2862, %v2894
    %v2910 = vmul.f32 %v2866, %v2894
    %v2911 = vmul.f32 %v2870, %v2894
    %v2912 = vmul.f32 %v2874, %v2894
    %v2913 = vsel %vm78, %v2897, -inf
    %v2914 = vrot.slane %v2913, 4
    %v2915 = vmax.f32 %v2913, %v2914
    %v2916 = vrot.slane %v2915, 2
    %v2917 = vmax.f32 %v2915, %v2916
    %v2918 = vrot.slane %v2917, 1
    %v2919 = vmax.f32 %v2917, %v2918
    %v2920 = vsel %vm78, %v2898, -inf
    %v2921 = vrot.slane %v2920, 4
    %v2922 = vmax.f32 %v2920, %v2921
    %v2923 = vrot.slane %v2922, 2
    %v2924 = vmax.f32 %v2922, %v2923
    %v2925 = vrot.slane %v2924, 1
    %v2926 = vmax.f32 %v2924, %v2925
    %v2927 = vsel %vm78, %v2899, -inf
    %v2928 = vrot.slane %v2927, 4
    %v2929 = vmax.f32 %v2927, %v2928
    %v2930 = vrot.slane %v2929, 2
    %v2931 = vmax.f32 %v2929, %v2930
    %v2932 = vrot.slane %v2931, 1
    %v2933 = vmax.f32 %v2931, %v2932
    %v2934 = vsel %vm78, %v2900, -inf
    %v2935 = vrot.slane %v2934, 4
    %v2936 = vmax.f32 %v2934, %v2935
    %v2937 = vrot.slane %v2936, 2
    %v2938 = vmax.f32 %v2936, %v2937
    %v2939 = vrot.slane %v2938, 1
    %v2940 = vmax.f32 %v2938, %v2939
    %v2941 = vsel %vm78, %v2901, -inf
    %v2942 = vrot.slane %v2941, 4
    %v2943 = vmax.f32 %v2941, %v2942
    %v2944 = vrot.slane %v2943, 2
    %v2945 = vmax.f32 %v2943, %v2944
    %v2946 = vrot.slane %v2945, 1
    %v2947 = vmax.f32 %v2945, %v2946
    %v2948 = vsel %vm78, %v2902, -inf
    %v2949 = vrot.slane %v2948, 4
    %v2950 = vmax.f32 %v2948, %v2949
    %v2951 = vrot.slane %v2950, 2
    %v2952 = vmax.f32 %v2950, %v2951
    %v2953 = vrot.slane %v2952, 1
    %v2954 = vmax.f32 %v2952, %v2953
    %v2955 = vsel %vm78, %v2903, -inf
    %v2956 = vrot.slane %v2955, 4
    %v2957 = vmax.f32 %v2955, %v2956
    %v2958 = vrot.slane %v2957, 2
    %v2959 = vmax.f32 %v2957, %v2958
    %v2960 = vrot.slane %v2959, 1
    %v2961 = vmax.f32 %v2959, %v2960
    %v2962 = vsel %vm78, %v2904, -inf
    %v2963 = vrot.slane %v2962, 4
    %v2964 = vmax.f32 %v2962, %v2963
    %v2965 = vrot.slane %v2964, 2
    %v2966 = vmax.f32 %v2964, %v2965
    %v2967 = vrot.slane %v2966, 1
    %v2968 = vmax.f32 %v2966, %v2967
    %v2969 = vsel %vm78, %v2905, -inf
    %v2970 = vrot.slane %v2969, 4
    %v2971 = vmax.f32 %v2969, %v2970
    %v2972 = vrot.slane %v2971, 2
    %v2973 = vmax.f32 %v2971, %v2972
    %v2974 = vrot.slane %v2973, 1
    %v2975 = vmax.f32 %v2973, %v2974
    %v2976 = vsel %vm78, %v2906, -inf
    %v2977 = vrot.slane %v2976, 4
    %v2978 = vmax.f32 %v2976, %v2977
    %v2979 = vrot.slane %v2978, 2
    %v2980 = vmax.f32 %v2978, %v2979
    %v2981 = vrot.slane %v2980, 1
    %v2982 = vmax.f32 %v2980, %v2981
    %v2983 = vsel %vm78, %v2907, -inf
    %v2984 = vrot.slane %v2983, 4
    %v2985 = vmax.f32 %v2983, %v2984
    %v2986 = vrot.slane %v2985, 2
    %v2987 = vmax.f32 %v2985, %v2986
    %v2988 = vrot.slane %v2987, 1
    %v2989 = vmax.f32 %v2987, %v2988
    %v2990 = vsel %vm78, %v2908, -inf
    %v2991 = vrot.slane %v2990, 4
    %v2992 = vmax.f32 %v2990, %v2991
    %v2993 = vrot.slane %v2992, 2
    %v2994 = vmax.f32 %v2992, %v2993
    %v2995 = vrot.slane %v2994, 1
    %v2996 = vmax.f32 %v2994, %v2995
    %v2997 = vsel %vm78, %v2909, -inf
    %v2998 = vrot.slane %v2997, 4
    %v2999 = vmax.f32 %v2997, %v2998
    %v3000 = vrot.slane %v2999, 2
    %v3001 = vmax.f32 %v2999, %v3000
    %v3002 = vrot.slane %v3001, 1
    %v3003 = vmax.f32 %v3001, %v3002
    %v3004 = vsel %vm78, %v2910, -inf
    %v3005 = vrot.slane %v3004, 4
    %v3006 = vmax.f32 %v3004, %v3005
    %v3007 = vrot.slane %v3006, 2
    %v3008 = vmax.f32 %v3006, %v3007
    %v3009 = vrot.slane %v3008, 1
    %v3010 = vmax.f32 %v3008, %v3009
    %v3011 = vsel %vm78, %v2911, -inf
    %v3012 = vrot.slane %v3011, 4
    %v3013 = vmax.f32 %v3011, %v3012
    %v3014 = vrot.slane %v3013, 2
    %v3015 = vmax.f32 %v3013, %v3014
    %v3016 = vrot.slane %v3015, 1
    %v3017 = vmax.f32 %v3015, %v3016
    %v3018 = vsel %vm78, %v2912, -inf
    %v3019 = vrot.slane %v3018, 4
    %v3020 = vmax.f32 %v3018, %v3019
    %v3021 = vrot.slane %v3020, 2
    %v3022 = vmax.f32 %v3020, %v3021
    %v3023 = vrot.slane %v3022, 1
    %v3024 = vmax.f32 %v3022, %v3023
    %v3025 = vsub.f32 %v2897, %v2919
    %v3026 = vsub.f32 %v2898, %v2926
    %v3027 = vsub.f32 %v2899, %v2933
    %v3028 = vsub.f32 %v2900, %v2940
    %v3029 = vsub.f32 %v2901, %v2947
    %v3030 = vsub.f32 %v2902, %v2954
    %v3031 = vsub.f32 %v2903, %v2961
    %v3032 = vsub.f32 %v2904, %v2968
    %v3033 = vsub.f32 %v2905, %v2975
    %v3034 = vsub.f32 %v2906, %v2982
    %v3035 = vsub.f32 %v2907, %v2989
    %v3036 = vsub.f32 %v2908, %v2996
    %v3037 = vsub.f32 %v2909, %v3003
    %v3038 = vsub.f32 %v2910, %v3010
    %v3039 = vsub.f32 %v2911, %v3017
    %v3040 = vsub.f32 %v2912, %v3024
    %v3041 = vmul.f32 %v3025, 1.442695
    %v3042 = vpow.pop %v3041
    %v3043 = vmul.f32 %v3026, 1.442695
    %v3044 = vpow.pop %v3043
    %v3045 = vmul.f32 %v3027, 1.442695
    %v3046 = vpow.pop %v3045
    %v3047 = vmul.f32 %v3028, 1.442695
    %v3048 = vpow.pop %v3047
    %v3049 = vmul.f32 %v3029, 1.442695
    %v3050 = vpow.pop %v3049
    %v3051 = vmul.f32 %v3030, 1.442695
    %v3052 = vpow.pop %v3051
    %v3053 = vmul.f32 %v3031, 1.442695
    %v3054 = vpow.pop %v3053
    %v3055 = vmul.f32 %v3032, 1.442695
    %v3056 = vpow.pop %v3055
    %v3057 = vmul.f32 %v3033, 1.442695
    %v3058 = vpow.pop %v3057
    %v3059 = vmul.f32 %v3034, 1.442695
    %v3060 = vpow.pop %v3059
    %v3061 = vmul.f32 %v3035, 1.442695
    %v3062 = vpow.pop %v3061
    %v3063 = vmul.f32 %v3036, 1.442695
    %v3064 = vpow.pop %v3063
    %v3065 = vmul.f32 %v3037, 1.442695
    %v3066 = vpow.pop %v3065
    %v3067 = vmul.f32 %v3038, 1.442695
    %v3068 = vpow.pop %v3067
    %v3069 = vmul.f32 %v3039, 1.442695
    %v3070 = vpow.pop %v3069
    %v3071 = vmul.f32 %v3040, 1.442695
    %v3072 = vpow.pop %v3071
    %v3073 = vsel %vm78, %v3042, 0.0
    %v3074 = vrot.slane %v3073, 4
    %v3075 = vadd.f32 %v3073, %v3074
    %v3076 = vrot.slane %v3075, 2
    %v3077 = vadd.f32 %v3075, %v3076
    %v3078 = vrot.slane %v3077, 1
    %v3079 = vadd.f32 %v3077, %v3078
    %v3080 = vsel %vm78, %v3044, 0.0
    %v3081 = vrot.slane %v3080, 4
    %v3082 = vadd.f32 %v3080, %v3081
    %v3083 = vrot.slane %v3082, 2
    %v3084 = vadd.f32 %v3082, %v3083
    %v3085 = vrot.slane %v3084, 1
    %v3086 = vadd.f32 %v3084, %v3085
    %v3087 = vsel %vm78, %v3046, 0.0
    %v3088 = vrot.slane %v3087, 4
    %v3089 = vadd.f32 %v3087, %v3088
    %v3090 = vrot.slane %v3089, 2
    %v3091 = vadd.f32 %v3089, %v3090
    %v3092 = vrot.slane %v3091, 1
    %v3093 = vadd.f32 %v3091, %v3092
    %v3094 = vsel %vm78, %v3048, 0.0
    %v3095 = vrot.slane %v3094, 4
    %v3096 = vadd.f32 %v3094, %v3095
    %v3097 = vrot.slane %v3096, 2
    %v3098 = vadd.f32 %v3096, %v3097
    %v3099 = vrot.slane %v3098, 1
    %v3100 = vadd.f32 %v3098, %v3099
    %v3101 = vsel %vm78, %v3050, 0.0
    %v3102 = vrot.slane %v3101, 4
    %v3103 = vadd.f32 %v3101, %v3102
    %v3104 = vrot.slane %v3103, 2
    %v3105 = vadd.f32 %v3103, %v3104
    %v3106 = vrot.slane %v3105, 1
    %v3107 = vadd.f32 %v3105, %v3106
    %v3108 = vsel %vm78, %v3052, 0.0
    %v3109 = vrot.slane %v3108, 4
    %v3110 = vadd.f32 %v3108, %v3109
    %v3111 = vrot.slane %v3110, 2
    %v3112 = vadd.f32 %v3110, %v3111
    %v3113 = vrot.slane %v3112, 1
    %v3114 = vadd.f32 %v3112, %v3113
    %v3115 = vsel %vm78, %v3054, 0.0
    %v3116 = vrot.slane %v3115, 4
    %v3117 = vadd.f32 %v3115, %v3116
    %v3118 = vrot.slane %v3117, 2
    %v3119 = vadd.f32 %v3117, %v3118
    %v3120 = vrot.slane %v3119, 1
    %v3121 = vadd.f32 %v3119, %v3120
    %v3122 = vsel %vm78, %v3056, 0.0
    %v3123 = vrot.slane %v3122, 4
    %v3124 = vadd.f32 %v3122, %v3123
    %v3125 = vrot.slane %v3124, 2
    %v3126 = vadd.f32 %v3124, %v3125
    %v3127 = vrot.slane %v3126, 1
    %v3128 = vadd.f32 %v3126, %v3127
    %v3129 = vsel %vm78, %v3058, 0.0
    %v3130 = vrot.slane %v3129, 4
    %v3131 = vadd.f32 %v3129, %v3130
    %v3132 = vrot.slane %v3131, 2
    %v3133 = vadd.f32 %v3131, %v3132
    %v3134 = vrot.slane %v3133, 1
    %v3135 = vadd.f32 %v3133, %v3134
    %v3136 = vsel %vm78, %v3060, 0.0
    %v3137 = vrot.slane %v3136, 4
    %v3138 = vadd.f32 %v3136, %v3137
    %v3139 = vrot.slane %v3138, 2
    %v3140 = vadd.f32 %v3138, %v3139
    %v3141 = vrot.slane %v3140, 1
    %v3142 = vadd.f32 %v3140, %v3141
    %v3143 = vsel %vm78, %v3062, 0.0
    %v3144 = vrot.slane %v3143, 4
    %v3145 = vadd.f32 %v3143, %v3144
    %v3146 = vrot.slane %v3145, 2
    %v3147 = vadd.f32 %v3145, %v3146
    %v3148 = vrot.slane %v3147, 1
    %v3149 = vadd.f32 %v3147, %v3148
    %v3150 = vsel %vm78, %v3064, 0.0
    %v3151 = vrot.slane %v3150, 4
    %v3152 = vadd.f32 %v3150, %v3151
    %v3153 = vrot.slane %v3152, 2
    %v3154 = vadd.f32 %v3152, %v3153
    %v3155 = vrot.slane %v3154, 1
    %v3156 = vadd.f32 %v3154, %v3155
    %v3157 = vsel %vm78, %v3066, 0.0
    %v3158 = vrot.slane %v3157, 4
    %v3159 = vadd.f32 %v3157, %v3158
    %v3160 = vrot.slane %v3159, 2
    %v3161 = vadd.f32 %v3159, %v3160
    %v3162 = vrot.slane %v3161, 1
    %v3163 = vadd.f32 %v3161, %v3162
    %v3164 = vsel %vm78, %v3068, 0.0
    %v3165 = vrot.slane %v3164, 4
    %v3166 = vadd.f32 %v3164, %v3165
    %v3167 = vrot.slane %v3166, 2
    %v3168 = vadd.f32 %v3166, %v3167
    %v3169 = vrot.slane %v3168, 1
    %v3170 = vadd.f32 %v3168, %v3169
    %v3171 = vsel %vm78, %v3070, 0.0
    %v3172 = vrot.slane %v3171, 4
    %v3173 = vadd.f32 %v3171, %v3172
    %v3174 = vrot.slane %v3173, 2
    %v3175 = vadd.f32 %v3173, %v3174
    %v3176 = vrot.slane %v3175, 1
    %v3177 = vadd.f32 %v3175, %v3176
    %v3178 = vsel %vm78, %v3072, 0.0
    %v3179 = vrot.slane %v3178, 4
    %v3180 = vadd.f32 %v3178, %v3179
    %v3181 = vrot.slane %v3180, 2
    %v3182 = vadd.f32 %v3180, %v3181
    %v3183 = vrot.slane %v3182, 1
    %v3184 = vadd.f32 %v3182, %v3183
    %v3185 = vrcp.pop %v3079
    %v3186 = vrcp.pop %v3086
    %v3187 = vrcp.pop %v3093
    %v3188 = vrcp.pop %v3100
    %v3189 = vrcp.pop %v3107
    %v3190 = vrcp.pop %v3114
    %v3191 = vrcp.pop %v3121
    %v3192 = vrcp.pop %v3128
    %v3193 = vrcp.pop %v3135
    %v3194 = vrcp.pop %v3142
    %v3195 = vrcp.pop %v3149
    %v3196 = vrcp.pop %v3156
    %v3197 = vrcp.pop %v3163
    %v3198 = vrcp.pop %v3170
    %v3199 = vrcp.pop %v3177
    %v3200 = vrcp.pop %v3184
    %v3201 = vmul.f32 %v3042, %v3185
    %v3202 = vmul.f32 %v3044, %v3186
    %v3203 = vmul.f32 %v3046, %v3187
    %v3204 = vmul.f32 %v3048, %v3188
    %v3205 = vmul.f32 %v3050, %v3189
    %v3206 = vmul.f32 %v3052, %v3190
    %v3207 = vmul.f32 %v3054, %v3191
    %v3208 = vmul.f32 %v3056, %v3192
    %v3209 = vmul.f32 %v3058, %v3193
    %v3210 = vmul.f32 %v3060, %v3194
    %v3211 = vmul.f32 %v3062, %v3195
    %v3212 = vmul.f32 %v3064, %v3196
    %v3213 = vmul.f32 %v3066, %v3197
    %v3214 = vmul.f32 %v3068, %v3198
    %v3215 = vmul.f32 %v3070, %v3199
    %v3216 = vmul.f32 %v3072, %v3200
    %3217 = vrot.lane.b32.xlu0 %v2703, 112
    %v3218 = vpop.permute.xlu0 %3217
    %3219 = vrot.lane.b32.xlu0 %v2708, 112
    %v3220 = vpop.permute.xlu0 %3219
    %v3223 = vmul.f32 %v3201, %v3218
    %v3224 = vmul.f32 %v3202, %v3218
    %v3225 = vmul.f32 %v3203, %v3218
    %v3226 = vmul.f32 %v3204, %v3218
    %v3227 = vmul.f32 %v3205, %v3218
    %v3228 = vmul.f32 %v3206, %v3218
    %v3229 = vmul.f32 %v3207, %v3218
    %v3230 = vmul.f32 %v3208, %v3218
    %v3231 = vmul.f32 %v3209, %v3220
    %v3232 = vmul.f32 %v3210, %v3220
    %v3233 = vmul.f32 %v3211, %v3220
    %v3234 = vmul.f32 %v3212, %v3220
    %v3235 = vmul.f32 %v3213, %v3220
    %v3236 = vmul.f32 %v3214, %v3220
    %v3237 = vmul.f32 %v3215, %v3220
    %v3238 = vmul.f32 %v3216, %v3220
    %v3239 = vsel %vm78, %v3223, 0.0
    %v3240 = vrot.slane %v3239, 4
    %v3241 = vadd.f32 %v3239, %v3240
    %v3242 = vrot.slane %v3241, 2
    %v3243 = vadd.f32 %v3241, %v3242
    %v3244 = vrot.slane %v3243, 1
    %v3245 = vadd.f32 %v3243, %v3244
    %v3246 = vsel %vm78, %v3224, 0.0
    %v3247 = vrot.slane %v3246, 4
    %v3248 = vadd.f32 %v3246, %v3247
    %v3249 = vrot.slane %v3248, 2
    %v3250 = vadd.f32 %v3248, %v3249
    %v3251 = vrot.slane %v3250, 1
    %v3252 = vadd.f32 %v3250, %v3251
    %v3253 = vsel %vm78, %v3225, 0.0
    %v3254 = vrot.slane %v3253, 4
    %v3255 = vadd.f32 %v3253, %v3254
    %v3256 = vrot.slane %v3255, 2
    %v3257 = vadd.f32 %v3255, %v3256
    %v3258 = vrot.slane %v3257, 1
    %v3259 = vadd.f32 %v3257, %v3258
    %v3260 = vsel %vm78, %v3226, 0.0
    %v3261 = vrot.slane %v3260, 4
    %v3262 = vadd.f32 %v3260, %v3261
    %v3263 = vrot.slane %v3262, 2
    %v3264 = vadd.f32 %v3262, %v3263
    %v3265 = vrot.slane %v3264, 1
    %v3266 = vadd.f32 %v3264, %v3265
    %v3267 = vsel %vm78, %v3227, 0.0
    %v3268 = vrot.slane %v3267, 4
    %v3269 = vadd.f32 %v3267, %v3268
    %v3270 = vrot.slane %v3269, 2
    %v3271 = vadd.f32 %v3269, %v3270
    %v3272 = vrot.slane %v3271, 1
    %v3273 = vadd.f32 %v3271, %v3272
    %v3274 = vsel %vm78, %v3228, 0.0
    %v3275 = vrot.slane %v3274, 4
    %v3276 = vadd.f32 %v3274, %v3275
    %v3277 = vrot.slane %v3276, 2
    %v3278 = vadd.f32 %v3276, %v3277
    %v3279 = vrot.slane %v3278, 1
    %v3280 = vadd.f32 %v3278, %v3279
    %v3281 = vsel %vm78, %v3229, 0.0
    %v3282 = vrot.slane %v3281, 4
    %v3283 = vadd.f32 %v3281, %v3282
    %v3284 = vrot.slane %v3283, 2
    %v3285 = vadd.f32 %v3283, %v3284
    %v3286 = vrot.slane %v3285, 1
    %v3287 = vadd.f32 %v3285, %v3286
    %v3288 = vsel %vm78, %v3230, 0.0
    %v3289 = vrot.slane %v3288, 4
    %v3290 = vadd.f32 %v3288, %v3289
    %v3291 = vrot.slane %v3290, 2
    %v3292 = vadd.f32 %v3290, %v3291
    %v3293 = vrot.slane %v3292, 1
    %v3294 = vadd.f32 %v3292, %v3293
    %v3295 = vsel %vm78, %v3231, 0.0
    %v3296 = vrot.slane %v3295, 4
    %v3297 = vadd.f32 %v3295, %v3296
    %v3298 = vrot.slane %v3297, 2
    %v3299 = vadd.f32 %v3297, %v3298
    %v3300 = vrot.slane %v3299, 1
    %v3301 = vadd.f32 %v3299, %v3300
    %v3302 = vsel %vm78, %v3232, 0.0
    %v3303 = vrot.slane %v3302, 4
    %v3304 = vadd.f32 %v3302, %v3303
    %v3305 = vrot.slane %v3304, 2
    %v3306 = vadd.f32 %v3304, %v3305
    %v3307 = vrot.slane %v3306, 1
    %v3308 = vadd.f32 %v3306, %v3307
    %v3309 = vsel %vm78, %v3233, 0.0
    %v3310 = vrot.slane %v3309, 4
    %v3311 = vadd.f32 %v3309, %v3310
    %v3312 = vrot.slane %v3311, 2
    %v3313 = vadd.f32 %v3311, %v3312
    %v3314 = vrot.slane %v3313, 1
    %v3315 = vadd.f32 %v3313, %v3314
    %v3316 = vsel %vm78, %v3234, 0.0
    %v3317 = vrot.slane %v3316, 4
    %v3318 = vadd.f32 %v3316, %v3317
    %v3319 = vrot.slane %v3318, 2
    %v3320 = vadd.f32 %v3318, %v3319
    %v3321 = vrot.slane %v3320, 1
    %v3322 = vadd.f32 %v3320, %v3321
    %v3323 = vsel %vm78, %v3235, 0.0
    %v3324 = vrot.slane %v3323, 4
    %v3325 = vadd.f32 %v3323, %v3324
    %v3326 = vrot.slane %v3325, 2
    %v3327 = vadd.f32 %v3325, %v3326
    %v3328 = vrot.slane %v3327, 1
    %v3329 = vadd.f32 %v3327, %v3328
    %v3330 = vsel %vm78, %v3236, 0.0
    %v3331 = vrot.slane %v3330, 4
    %v3332 = vadd.f32 %v3330, %v3331
    %v3333 = vrot.slane %v3332, 2
    %v3334 = vadd.f32 %v3332, %v3333
    %v3335 = vrot.slane %v3334, 1
    %v3336 = vadd.f32 %v3334, %v3335
    %v3337 = vsel %vm78, %v3237, 0.0
    %v3338 = vrot.slane %v3337, 4
    %v3339 = vadd.f32 %v3337, %v3338
    %v3340 = vrot.slane %v3339, 2
    %v3341 = vadd.f32 %v3339, %v3340
    %v3342 = vrot.slane %v3341, 1
    %v3343 = vadd.f32 %v3341, %v3342
    %v3344 = vsel %vm78, %v3238, 0.0
    %v3345 = vrot.slane %v3344, 4
    %v3346 = vadd.f32 %v3344, %v3345
    %v3347 = vrot.slane %v3346, 2
    %v3348 = vadd.f32 %v3346, %v3347
    %v3349 = vrot.slane %v3348, 1
    %v3350 = vadd.f32 %v3348, %v3349
    %s3351 = scalar_lea.vmem %s4, 8
    %v3352 = vld [vmem:[%s3351] sm:$0xff]
    %v3353 = vld [vmem:[%s5 + $0x1] sm:$0x1]
    %v3354 = vlaneseq
    %v3355 = vshrl.u32 %v3354, 7
    %v3356 = vsub.s32 0, %v3355
    %v3357 = vrot.slane %v3353, %v3356
    %v3374 = vsel %vm822, %v3252, %v3245
    %v3375 = vsel %vm824, %v3259, %v3374
    %v3376 = vsel %vm826, %v3266, %v3375
    %v3377 = vsel %vm828, %v3273, %v3376
    %v3378 = vsel %vm830, %v3280, %v3377
    %v3379 = vsel %vm832, %v3287, %v3378
    %v3380 = vsel %vm834, %v3294, %v3379
    %v3381 = vsel %vm822, %v3308, %v3301
    %v3382 = vsel %vm824, %v3315, %v3381
    %v3383 = vsel %vm826, %v3322, %v3382
    %v3384 = vsel %vm828, %v3329, %v3383
    %v3385 = vsel %vm830, %v3336, %v3384
    %v3386 = vsel %vm832, %v3343, %v3385
    %v3387 = vsel %vm834, %v3350, %v3386
    %v3388 = vsel %vm78, %v3380, 0
    %v3390 = vsel %vm78, %v3387, 0
    %3392 = vmatprep.subr.mxu0 0.0
    %3393 = vmatpush1.msra.mxu0 %v3352
    %3394 = vmatprep.subr.mxu0 0.0
    %3395 = vmatpush1.msra.mxu0 0.0
    %3396 = vmatprep.subr.mxu0 0.0
    %3397 = vmatpush1.msra.mxu0 0.0
    %3398 = vmatprep.subr.mxu0 0.0
    %3399 = vmatpush1.msra.mxu0 0.0
    %3400 = vmatprep.subr.mxu0 0.0
    %3401 = vmatpush1.msra.mxu0 0.0
    %3402 = vmatprep.subr.mxu0 0.0
    %3403 = vmatpush1.msra.mxu0 0.0
    %3404 = vmatprep.subr.mxu0 0.0
    %3405 = vmatpush1.msra.mxu0 0.0
    %3406 = vmatprep.subr.mxu0 0.0
    %3407 = vmatpush1.msra.mxu0 0.0
    %3408 = vmatprep.subr.mxu0 0.0
    %3409 = vmatpush1.msra.mxu0 0.0
    %3410 = vmatprep.subr.mxu0 0.0
    %3411 = vmatpush1.msra.mxu0 0.0
    %3412 = vmatprep.subr.mxu0 0.0
    %3413 = vmatpush1.msra.mxu0 0.0
    %3414 = vmatprep.subr.mxu0 0.0
    %3415 = vmatpush1.msra.mxu0 0.0
    %3416 = vmatprep.subr.mxu0 0.0
    %3417 = vmatpush1.msra.mxu0 0.0
    %3418 = vmatprep.subr.mxu0 0.0
    %3419 = vmatpush1.msra.mxu0 0.0
    %3420 = vmatprep.subr.mxu0 0.0
    %3421 = vmatpush1.msra.mxu0 0.0
    %3422 = vmatprep.subr.mxu0 0.0
    %3423 = vmatpush1.msra.mxu0 0.0
    %3424 = vmatprep.subr.mxu0 0.0
    %3425 = vmatpush1.msra.mxu0 0.0
    %3426 = vmatprep.subr.mxu0 0.0
    %3427 = vmatpush1.msra.mxu0 0.0
    %3428 = vmatprep.subr.mxu0 0.0
    %3429 = vmatpush1.msra.mxu0 0.0
    %3430 = vmatprep.subr.mxu0 0.0
    %3431 = vmatpush1.msra.mxu0 0.0
    %3432 = vmatprep.subr.mxu0 0.0
    %3433 = vmatpush1.msra.mxu0 0.0
    %3434 = vmatprep.subr.mxu0 0.0
    %3435 = vmatpush1.msra.mxu0 0.0
    %3436 = vmatprep.subr.mxu0 0.0
    %3437 = vmatpush1.msra.mxu0 0.0
    %3438 = vmatprep.subr.mxu0 0.0
    %3439 = vmatpush1.msra.mxu0 0.0
    %3440 = vmatprep.subr.mxu0 0.0
    %3441 = vmatpush1.msra.mxu0 0.0
    %3442 = vmatprep.subr.mxu0 0.0
    %3443 = vmatpush1.msra.mxu0 0.0
    %3444 = vmatprep.subr.mxu0 0.0
    %3445 = vmatpush1.msra.mxu0 0.0
    %3446 = vmatprep.subr.mxu0 0.0
    %3447 = vmatpush1.msra.mxu0 0.0
    %3448 = vmatprep.subr.mxu0 0.0
    %3449 = vmatpush1.msra.mxu0 0.0
    %3450 = vmatprep.subr.mxu0 0.0
    %3451 = vmatpush1.msra.mxu0 0.0
    %3452 = vmatprep.subr.mxu0 0.0
    %3453 = vmatpush1.msra.mxu0 0.0
    %3454 = vmatprep.subr.mxu0 0.0
    %3455 = vmatpush1.msra.mxu0 0.0
    %3456 = vmatprep.mubr.f32.mxu0 0.0
    %3457 = vmatmul.mubr.f32.gmra.mrb[0].mxu0 %v3388
    %v3458 = vpop.f32.mrb[0].mxu0
    %v3459 = vadd.f32 %v3357, %v3458
    %v3460 = vpop.f32.mrb[0].mxu0
    %3461 = vmatprep.mubr.f32.mxu0 0.0
    %3462 = vmatmul.mubr.f32.gmra.mrb[0].mxu0 %v3390
    %v3463 = vpop.f32.mrb[0].mxu0
    %v3464 = vadd.f32 %v3357, %v3463
    %v3465 = vpop.f32.mrb[0].mxu0
    %3466 = vdwg.mxu0
    %v3467 = vadd.f32 %v2621, %v3459
    %v3468 = vadd.f32 %v2622, %v3464
    %v3469 = vld [vmem:[%s10 + $0x1] sm:$0x1]
    %v3470 = vld [vmem:[%s11 + $0x1] sm:$0x1]
    %v3471 = vsel %vm78, %v3467, 0.0
    %3472 = vadd.xlane.f32.xlu0 %v3471
    %v3473 = vpop.xlane.xlu0 %3472
    %v3474 = vsel %vm78, %v3468, 0.0
    %3475 = vadd.xlane.f32.xlu0 %v3474
    %v3476 = vpop.xlane.xlu0 %3475
    %v3477 = vmul.f32 %v3473, %v932
    %v3478 = vmul.f32 %v3476, %v932
    %v3479 = vsub.f32 %v3467, %v3477
    %v3480 = vsub.f32 %v3468, %v3478
    %v3481 = vmul.f32 %v3479, %v3479
    %v3482 = vmul.f32 %v3480, %v3480
    %v3483 = vsel %vm78, %v3481, 0.0
    %3484 = vadd.xlane.f32.xlu0 %v3483
    %v3485 = vpop.xlane.xlu0 %3484
    %v3486 = vsel %vm78, %v3482, 0.0
    %3487 = vadd.xlane.f32.xlu0 %v3486
    %v3488 = vpop.xlane.xlu0 %3487
    %v3489 = vmul.f32 %v3485, %v932
    %v3490 = vmul.f32 %v3488, %v932
    %v3491 = vadd.f32 %v3489, 1e-05
    %v3492 = vadd.f32 %v3490, 1e-05
    %v3493 = vrsqrt.pop %v3491
    %v3494 = vrsqrt.pop %v3492
    %v3495 = vmul.f32 %v3479, %v3493
    %v3496 = vmul.f32 %v3480, %v3494
    %v3497 = vlaneseq
    %v3498 = vshrl.u32 %v3497, 7
    %v3499 = vsub.s32 0, %v3498
    %v3500 = vrot.slane %v3469, %v3499
    %v3501 = vmul.f32 %v3495, %v3500
    %v3502 = vmul.f32 %v3496, %v3500
    %v3503 = vlaneseq
    %v3504 = vshrl.u32 %v3503, 7
    %v3505 = vsub.s32 0, %v3504
    %v3506 = vrot.slane %v3470, %v3505
    %v3507 = vadd.f32 %v3501, %v3506
    %v3508 = vadd.f32 %v3502, %v3506
    %s3509 = scalar_lea.vmem %s6, 128
    %v3510 = vld [vmem:[%s3509] sm:$0xff]
    %v3511 = vld [vmem:[%s3509 + $0x8] sm:$0xff]
    %v3512 = vld [vmem:[%s3509 + $0x10] sm:$0xff]
    %v3513 = vld [vmem:[%s3509 + $0x18] sm:$0xff]
    %v3514 = vld [vmem:[%s3509 + $0x20] sm:$0xff]
    %v3515 = vld [vmem:[%s3509 + $0x28] sm:$0xff]
    %v3516 = vld [vmem:[%s3509 + $0x30] sm:$0xff]
    %v3517 = vld [vmem:[%s3509 + $0x38] sm:$0xff]
    %v3518 = vld [vmem:[%s3509 + $0x40] sm:$0xff]
    %v3519 = vld [vmem:[%s3509 + $0x48] sm:$0xff]
    %v3520 = vld [vmem:[%s3509 + $0x50] sm:$0xff]
    %v3521 = vld [vmem:[%s3509 + $0x58] sm:$0xff]
    %v3522 = vld [vmem:[%s3509 + $0x60] sm:$0xff]
    %v3523 = vld [vmem:[%s3509 + $0x68] sm:$0xff]
    %v3524 = vld [vmem:[%s3509 + $0x70] sm:$0xff]
    %v3525 = vld [vmem:[%s3509 + $0x78] sm:$0xff]
    %s3526 = scalar_lea.vmem %s7, 1
    %v3527 = vld [vmem:[%s3526] ss:$2 sm:$0xff]
    %s3528 = scalar_lea.vmem %s7, 17
    %v3529 = vld [vmem:[%s3528] ss:$2 sm:$0xff]
    %v3532 = vlaneseq
    %v3533 = vshrl.u32 %v3532, 7
    %v3534 = vsub.s32 0, %v3533
    %v3535 = vrot.slane %v3527, %v3534
    %v3536 = vlaneseq
    %v3537 = vshrl.u32 %v3536, 7
    %v3538 = vsub.s32 1, %v3537
    %v3539 = vrot.slane %v3527, %v3538
    %v3540 = vlaneseq
    %v3541 = vshrl.u32 %v3540, 7
    %v3542 = vsub.s32 2, %v3541
    %v3543 = vrot.slane %v3527, %v3542
    %v3544 = vlaneseq
    %v3545 = vshrl.u32 %v3544, 7
    %v3546 = vsub.s32 3, %v3545
    %v3547 = vrot.slane %v3527, %v3546
    %v3548 = vlaneseq
    %v3549 = vshrl.u32 %v3548, 7
    %v3550 = vsub.s32 4, %v3549
    %v3551 = vrot.slane %v3527, %v3550
    %v3552 = vlaneseq
    %v3553 = vshrl.u32 %v3552, 7
    %v3554 = vsub.s32 5, %v3553
    %v3555 = vrot.slane %v3527, %v3554
    %v3556 = vlaneseq
    %v3557 = vshrl.u32 %v3556, 7
    %v3558 = vsub.s32 6, %v3557
    %v3559 = vrot.slane %v3527, %v3558
    %v3560 = vlaneseq
    %v3561 = vshrl.u32 %v3560, 7
    %v3562 = vsub.s32 7, %v3561
    %v3563 = vrot.slane %v3527, %v3562
    %v3564 = vlaneseq
    %v3565 = vshrl.u32 %v3564, 7
    %v3566 = vsub.s32 0, %v3565
    %v3567 = vrot.slane %v3529, %v3566
    %v3568 = vlaneseq
    %v3569 = vshrl.u32 %v3568, 7
    %v3570 = vsub.s32 1, %v3569
    %v3571 = vrot.slane %v3529, %v3570
    %v3572 = vlaneseq
    %v3573 = vshrl.u32 %v3572, 7
    %v3574 = vsub.s32 2, %v3573
    %v3575 = vrot.slane %v3529, %v3574
    %v3576 = vlaneseq
    %v3577 = vshrl.u32 %v3576, 7
    %v3578 = vsub.s32 3, %v3577
    %v3579 = vrot.slane %v3529, %v3578
    %v3580 = vlaneseq
    %v3581 = vshrl.u32 %v3580, 7
    %v3582 = vsub.s32 4, %v3581
    %v3583 = vrot.slane %v3529, %v3582
    %v3584 = vlaneseq
    %v3585 = vshrl.u32 %v3584, 7
    %v3586 = vsub.s32 5, %v3585
    %v3587 = vrot.slane %v3529, %v3586
    %v3588 = vlaneseq
    %v3589 = vshrl.u32 %v3588, 7
    %v3590 = vsub.s32 6, %v3589
    %v3591 = vrot.slane %v3529, %v3590
    %v3592 = vlaneseq
    %v3593 = vshrl.u32 %v3592, 7
    %v3594 = vsub.s32 7, %v3593
    %v3595 = vrot.slane %v3529, %v3594
    %v3613 = vsel %vm78, %v3507, 0
    %v3616 = vsel %vm78, %v3508, 0
    %3618 = vmatprep.subr.mxu0 %v3511
    %3619 = vmatpush1.msra.mxu0 %v3510
    %3620 = vmatprep.subr.mxu0 0.0
    %3621 = vmatpush1.msra.mxu0 0.0
    %3622 = vmatprep.subr.mxu0 0.0
    %3623 = vmatpush1.msra.mxu0 0.0
    %3624 = vmatprep.subr.mxu0 0.0
    %3625 = vmatpush1.msra.mxu0 0.0
    %3626 = vmatprep.subr.mxu0 0.0
    %3627 = vmatpush1.msra.mxu0 0.0
    %3628 = vmatprep.subr.mxu0 0.0
    %3629 = vmatpush1.msra.mxu0 0.0
    %3630 = vmatprep.subr.mxu0 0.0
    %3631 = vmatpush1.msra.mxu0 0.0
    %3632 = vmatprep.subr.mxu0 0.0
    %3633 = vmatpush1.msra.mxu0 0.0
    %3634 = vmatprep.subr.mxu0 0.0
    %3635 = vmatpush1.msra.mxu0 0.0
    %3636 = vmatprep.subr.mxu0 0.0
    %3637 = vmatpush1.msra.mxu0 0.0
    %3638 = vmatprep.subr.mxu0 0.0
    %3639 = vmatpush1.msra.mxu0 0.0
    %3640 = vmatprep.subr.mxu0 0.0
    %3641 = vmatpush1.msra.mxu0 0.0
    %3642 = vmatprep.subr.mxu0 0.0
    %3643 = vmatpush1.msra.mxu0 0.0
    %3644 = vmatprep.subr.mxu0 0.0
    %3645 = vmatpush1.msra.mxu0 0.0
    %3646 = vmatprep.subr.mxu0 0.0
    %3647 = vmatpush1.msra.mxu0 0.0
    %3648 = vmatprep.subr.mxu0 0.0
    %3649 = vmatpush1.msra.mxu0 0.0
    %3650 = vmatprep.subr.mxu0 0.0
    %3651 = vmatpush1.msra.mxu0 0.0
    %3652 = vmatprep.subr.mxu0 0.0
    %3653 = vmatpush1.msra.mxu0 0.0
    %3654 = vmatprep.subr.mxu0 0.0
    %3655 = vmatpush1.msra.mxu0 0.0
    %3656 = vmatprep.subr.mxu0 0.0
    %3657 = vmatpush1.msra.mxu0 0.0
    %3658 = vmatprep.subr.mxu0 0.0
    %3659 = vmatpush1.msra.mxu0 0.0
    %3660 = vmatprep.subr.mxu0 0.0
    %3661 = vmatpush1.msra.mxu0 0.0
    %3662 = vmatprep.subr.mxu0 0.0
    %3663 = vmatpush1.msra.mxu0 0.0
    %3664 = vmatprep.subr.mxu0 0.0
    %3665 = vmatpush1.msra.mxu0 0.0
    %3666 = vmatprep.subr.mxu0 0.0
    %3667 = vmatpush1.msra.mxu0 0.0
    %3668 = vmatprep.subr.mxu0 0.0
    %3669 = vmatpush1.msra.mxu0 0.0
    %3670 = vmatprep.subr.mxu0 0.0
    %3671 = vmatpush1.msra.mxu0 0.0
    %3672 = vmatprep.subr.mxu0 0.0
    %3673 = vmatpush1.msra.mxu0 0.0
    %3674 = vmatprep.subr.mxu0 0.0
    %3675 = vmatpush1.msra.mxu0 0.0
    %3676 = vmatprep.subr.mxu0 0.0
    %3677 = vmatpush1.msra.mxu0 0.0
    %3678 = vmatprep.subr.mxu0 0.0
    %3679 = vmatpush1.msra.mxu0 0.0
    %3680 = vmatprep.subr.mxu0 0.0
    %3681 = vmatpush1.msra.mxu0 0.0
    %3682 = vmatprep.mubr.f32.mxu0 0.0
    %3683 = vmatmul.mubr.f32.gmra.mrb[0].mxu0 %v3613
    %v3684 = vpop.f32.mrb[0].mxu0
    %v3685 = vadd.f32 %v3535, %v3684
    %v3686 = vpop.f32.mrb[0].mxu0
    %v3687 = vadd.f32 %v3539, %v3686
    %3688 = vmatprep.mubr.f32.mxu0 0.0
    %3689 = vmatmul.mubr.f32.gmra.mrb[0].mxu0 %v3616
    %v3690 = vpop.f32.mrb[0].mxu0
    %v3691 = vadd.f32 %v3535, %v3690
    %v3692 = vpop.f32.mrb[0].mxu0
    %v3693 = vadd.f32 %v3539, %v3692
    %3694 = vdwg.mxu0
    %3695 = vmatprep.subr.mxu0 %v3513
    %3696 = vmatpush1.msra.mxu0 %v3512
    %3697 = vmatprep.subr.mxu0 0.0
    %3698 = vmatpush1.msra.mxu0 0.0
    %3699 = vmatprep.subr.mxu0 0.0
    %3700 = vmatpush1.msra.mxu0 0.0
    %3701 = vmatprep.subr.mxu0 0.0
    %3702 = vmatpush1.msra.mxu0 0.0
    %3703 = vmatprep.subr.mxu0 0.0
    %3704 = vmatpush1.msra.mxu0 0.0
    %3705 = vmatprep.subr.mxu0 0.0
    %3706 = vmatpush1.msra.mxu0 0.0
    %3707 = vmatprep.subr.mxu0 0.0
    %3708 = vmatpush1.msra.mxu0 0.0
    %3709 = vmatprep.subr.mxu0 0.0
    %3710 = vmatpush1.msra.mxu0 0.0
    %3711 = vmatprep.subr.mxu0 0.0
    %3712 = vmatpush1.msra.mxu0 0.0
    %3713 = vmatprep.subr.mxu0 0.0
    %3714 = vmatpush1.msra.mxu0 0.0
    %3715 = vmatprep.subr.mxu0 0.0
    %3716 = vmatpush1.msra.mxu0 0.0
    %3717 = vmatprep.subr.mxu0 0.0
    %3718 = vmatpush1.msra.mxu0 0.0
    %3719 = vmatprep.subr.mxu0 0.0
    %3720 = vmatpush1.msra.mxu0 0.0
    %3721 = vmatprep.subr.mxu0 0.0
    %3722 = vmatpush1.msra.mxu0 0.0
    %3723 = vmatprep.subr.mxu0 0.0
    %3724 = vmatpush1.msra.mxu0 0.0
    %3725 = vmatprep.subr.mxu0 0.0
    %3726 = vmatpush1.msra.mxu0 0.0
    %3727 = vmatprep.subr.mxu0 0.0
    %3728 = vmatpush1.msra.mxu0 0.0
    %3729 = vmatprep.subr.mxu0 0.0
    %3730 = vmatpush1.msra.mxu0 0.0
    %3731 = vmatprep.subr.mxu0 0.0
    %3732 = vmatpush1.msra.mxu0 0.0
    %3733 = vmatprep.subr.mxu0 0.0
    %3734 = vmatpush1.msra.mxu0 0.0
    %3735 = vmatprep.subr.mxu0 0.0
    %3736 = vmatpush1.msra.mxu0 0.0
    %3737 = vmatprep.subr.mxu0 0.0
    %3738 = vmatpush1.msra.mxu0 0.0
    %3739 = vmatprep.subr.mxu0 0.0
    %3740 = vmatpush1.msra.mxu0 0.0
    %3741 = vmatprep.subr.mxu0 0.0
    %3742 = vmatpush1.msra.mxu0 0.0
    %3743 = vmatprep.subr.mxu0 0.0
    %3744 = vmatpush1.msra.mxu0 0.0
    %3745 = vmatprep.subr.mxu0 0.0
    %3746 = vmatpush1.msra.mxu0 0.0
    %3747 = vmatprep.subr.mxu0 0.0
    %3748 = vmatpush1.msra.mxu0 0.0
    %3749 = vmatprep.subr.mxu0 0.0
    %3750 = vmatpush1.msra.mxu0 0.0
    %3751 = vmatprep.subr.mxu0 0.0
    %3752 = vmatpush1.msra.mxu0 0.0
    %3753 = vmatprep.subr.mxu0 0.0
    %3754 = vmatpush1.msra.mxu0 0.0
    %3755 = vmatprep.subr.mxu0 0.0
    %3756 = vmatpush1.msra.mxu0 0.0
    %3757 = vmatprep.subr.mxu0 0.0
    %3758 = vmatpush1.msra.mxu0 0.0
    %3759 = vmatprep.mubr.f32.mxu0 0.0
    %3760 = vmatmul.mubr.f32.gmra.mrb[0].mxu0 %v3613
    %v3761 = vpop.f32.mrb[0].mxu0
    %v3762 = vadd.f32 %v3543, %v3761
    %v3763 = vpop.f32.mrb[0].mxu0
    %v3764 = vadd.f32 %v3547, %v3763
    %3765 = vmatprep.mubr.f32.mxu0 0.0
    %3766 = vmatmul.mubr.f32.gmra.mrb[0].mxu0 %v3616
    %v3767 = vpop.f32.mrb[0].mxu0
    %v3768 = vadd.f32 %v3543, %v3767
    %v3769 = vpop.f32.mrb[0].mxu0
    %v3770 = vadd.f32 %v3547, %v3769
    %3771 = vdwg.mxu0
    %3772 = vmatprep.subr.mxu0 %v3515
    %3773 = vmatpush1.msra.mxu0 %v3514
    %3774 = vmatprep.subr.mxu0 0.0
    %3775 = vmatpush1.msra.mxu0 0.0
    %3776 = vmatprep.subr.mxu0 0.0
    %3777 = vmatpush1.msra.mxu0 0.0
    %3778 = vmatprep.subr.mxu0 0.0
    %3779 = vmatpush1.msra.mxu0 0.0
    %3780 = vmatprep.subr.mxu0 0.0
    %3781 = vmatpush1.msra.mxu0 0.0
    %3782 = vmatprep.subr.mxu0 0.0
    %3783 = vmatpush1.msra.mxu0 0.0
    %3784 = vmatprep.subr.mxu0 0.0
    %3785 = vmatpush1.msra.mxu0 0.0
    %3786 = vmatprep.subr.mxu0 0.0
    %3787 = vmatpush1.msra.mxu0 0.0
    %3788 = vmatprep.subr.mxu0 0.0
    %3789 = vmatpush1.msra.mxu0 0.0
    %3790 = vmatprep.subr.mxu0 0.0
    %3791 = vmatpush1.msra.mxu0 0.0
    %3792 = vmatprep.subr.mxu0 0.0
    %3793 = vmatpush1.msra.mxu0 0.0
    %3794 = vmatprep.subr.mxu0 0.0
    %3795 = vmatpush1.msra.mxu0 0.0
    %3796 = vmatprep.subr.mxu0 0.0
    %3797 = vmatpush1.msra.mxu0 0.0
    %3798 = vmatprep.subr.mxu0 0.0
    %3799 = vmatpush1.msra.mxu0 0.0
    %3800 = vmatprep.subr.mxu0 0.0
    %3801 = vmatpush1.msra.mxu0 0.0
    %3802 = vmatprep.subr.mxu0 0.0
    %3803 = vmatpush1.msra.mxu0 0.0
    %3804 = vmatprep.subr.mxu0 0.0
    %3805 = vmatpush1.msra.mxu0 0.0
    %3806 = vmatprep.subr.mxu0 0.0
    %3807 = vmatpush1.msra.mxu0 0.0
    %3808 = vmatprep.subr.mxu0 0.0
    %3809 = vmatpush1.msra.mxu0 0.0
    %3810 = vmatprep.subr.mxu0 0.0
    %3811 = vmatpush1.msra.mxu0 0.0
    %3812 = vmatprep.subr.mxu0 0.0
    %3813 = vmatpush1.msra.mxu0 0.0
    %3814 = vmatprep.subr.mxu0 0.0
    %3815 = vmatpush1.msra.mxu0 0.0
    %3816 = vmatprep.subr.mxu0 0.0
    %3817 = vmatpush1.msra.mxu0 0.0
    %3818 = vmatprep.subr.mxu0 0.0
    %3819 = vmatpush1.msra.mxu0 0.0
    %3820 = vmatprep.subr.mxu0 0.0
    %3821 = vmatpush1.msra.mxu0 0.0
    %3822 = vmatprep.subr.mxu0 0.0
    %3823 = vmatpush1.msra.mxu0 0.0
    %3824 = vmatprep.subr.mxu0 0.0
    %3825 = vmatpush1.msra.mxu0 0.0
    %3826 = vmatprep.subr.mxu0 0.0
    %3827 = vmatpush1.msra.mxu0 0.0
    %3828 = vmatprep.subr.mxu0 0.0
    %3829 = vmatpush1.msra.mxu0 0.0
    %3830 = vmatprep.subr.mxu0 0.0
    %3831 = vmatpush1.msra.mxu0 0.0
    %3832 = vmatprep.subr.mxu0 0.0
    %3833 = vmatpush1.msra.mxu0 0.0
    %3834 = vmatprep.subr.mxu0 0.0
    %3835 = vmatpush1.msra.mxu0 0.0
    %3836 = vmatprep.mubr.f32.mxu0 0.0
    %3837 = vmatmul.mubr.f32.gmra.mrb[0].mxu0 %v3613
    %v3838 = vpop.f32.mrb[0].mxu0
    %v3839 = vadd.f32 %v3551, %v3838
    %v3840 = vpop.f32.mrb[0].mxu0
    %v3841 = vadd.f32 %v3555, %v3840
    %3842 = vmatprep.mubr.f32.mxu0 0.0
    %3843 = vmatmul.mubr.f32.gmra.mrb[0].mxu0 %v3616
    %v3844 = vpop.f32.mrb[0].mxu0
    %v3845 = vadd.f32 %v3551, %v3844
    %v3846 = vpop.f32.mrb[0].mxu0
    %v3847 = vadd.f32 %v3555, %v3846
    %3848 = vdwg.mxu0
    %3849 = vmatprep.subr.mxu0 %v3517
    %3850 = vmatpush1.msra.mxu0 %v3516
    %3851 = vmatprep.subr.mxu0 0.0
    %3852 = vmatpush1.msra.mxu0 0.0
    %3853 = vmatprep.subr.mxu0 0.0
    %3854 = vmatpush1.msra.mxu0 0.0
    %3855 = vmatprep.subr.mxu0 0.0
    %3856 = vmatpush1.msra.mxu0 0.0
    %3857 = vmatprep.subr.mxu0 0.0
    %3858 = vmatpush1.msra.mxu0 0.0
    %3859 = vmatprep.subr.mxu0 0.0
    %3860 = vmatpush1.msra.mxu0 0.0
    %3861 = vmatprep.subr.mxu0 0.0
    %3862 = vmatpush1.msra.mxu0 0.0
    %3863 = vmatprep.subr.mxu0 0.0
    %3864 = vmatpush1.msra.mxu0 0.0
    %3865 = vmatprep.subr.mxu0 0.0
    %3866 = vmatpush1.msra.mxu0 0.0
    %3867 = vmatprep.subr.mxu0 0.0
    %3868 = vmatpush1.msra.mxu0 0.0
    %3869 = vmatprep.subr.mxu0 0.0
    %3870 = vmatpush1.msra.mxu0 0.0
    %3871 = vmatprep.subr.mxu0 0.0
    %3872 = vmatpush1.msra.mxu0 0.0
    %3873 = vmatprep.subr.mxu0 0.0
    %3874 = vmatpush1.msra.mxu0 0.0
    %3875 = vmatprep.subr.mxu0 0.0
    %3876 = vmatpush1.msra.mxu0 0.0
    %3877 = vmatprep.subr.mxu0 0.0
    %3878 = vmatpush1.msra.mxu0 0.0
    %3879 = vmatprep.subr.mxu0 0.0
    %3880 = vmatpush1.msra.mxu0 0.0
    %3881 = vmatprep.subr.mxu0 0.0
    %3882 = vmatpush1.msra.mxu0 0.0
    %3883 = vmatprep.subr.mxu0 0.0
    %3884 = vmatpush1.msra.mxu0 0.0
    %3885 = vmatprep.subr.mxu0 0.0
    %3886 = vmatpush1.msra.mxu0 0.0
    %3887 = vmatprep.subr.mxu0 0.0
    %3888 = vmatpush1.msra.mxu0 0.0
    %3889 = vmatprep.subr.mxu0 0.0
    %3890 = vmatpush1.msra.mxu0 0.0
    %3891 = vmatprep.subr.mxu0 0.0
    %3892 = vmatpush1.msra.mxu0 0.0
    %3893 = vmatprep.subr.mxu0 0.0
    %3894 = vmatpush1.msra.mxu0 0.0
    %3895 = vmatprep.subr.mxu0 0.0
    %3896 = vmatpush1.msra.mxu0 0.0
    %3897 = vmatprep.subr.mxu0 0.0
    %3898 = vmatpush1.msra.mxu0 0.0
    %3899 = vmatprep.subr.mxu0 0.0
    %3900 = vmatpush1.msra.mxu0 0.0
    %3901 = vmatprep.subr.mxu0 0.0
    %3902 = vmatpush1.msra.mxu0 0.0
    %3903 = vmatprep.subr.mxu0 0.0
    %3904 = vmatpush1.msra.mxu0 0.0
    %3905 = vmatprep.subr.mxu0 0.0
    %3906 = vmatpush1.msra.mxu0 0.0
    %3907 = vmatprep.subr.mxu0 0.0
    %3908 = vmatpush1.msra.mxu0 0.0
    %3909 = vmatprep.subr.mxu0 0.0
    %3910 = vmatpush1.msra.mxu0 0.0
    %3911 = vmatprep.subr.mxu0 0.0
    %3912 = vmatpush1.msra.mxu0 0.0
    %3913 = vmatprep.mubr.f32.mxu0 0.0
    %3914 = vmatmul.mubr.f32.gmra.mrb[0].mxu0 %v3613
    %v3915 = vpop.f32.mrb[0].mxu0
    %v3916 = vadd.f32 %v3559, %v3915
    %v3917 = vpop.f32.mrb[0].mxu0
    %v3918 = vadd.f32 %v3563, %v3917
    %3919 = vmatprep.mubr.f32.mxu0 0.0
    %3920 = vmatmul.mubr.f32.gmra.mrb[0].mxu0 %v3616
    %v3921 = vpop.f32.mrb[0].mxu0
    %v3922 = vadd.f32 %v3559, %v3921
    %v3923 = vpop.f32.mrb[0].mxu0
    %v3924 = vadd.f32 %v3563, %v3923
    %3925 = vdwg.mxu0
    %3926 = vmatprep.subr.mxu0 %v3519
    %3927 = vmatpush1.msra.mxu0 %v3518
    %3928 = vmatprep.subr.mxu0 0.0
    %3929 = vmatpush1.msra.mxu0 0.0
    %3930 = vmatprep.subr.mxu0 0.0
    %3931 = vmatpush1.msra.mxu0 0.0
    %3932 = vmatprep.subr.mxu0 0.0
    %3933 = vmatpush1.msra.mxu0 0.0
    %3934 = vmatprep.subr.mxu0 0.0
    %3935 = vmatpush1.msra.mxu0 0.0
    %3936 = vmatprep.subr.mxu0 0.0
    %3937 = vmatpush1.msra.mxu0 0.0
    %3938 = vmatprep.subr.mxu0 0.0
    %3939 = vmatpush1.msra.mxu0 0.0
    %3940 = vmatprep.subr.mxu0 0.0
    %3941 = vmatpush1.msra.mxu0 0.0
    %3942 = vmatprep.subr.mxu0 0.0
    %3943 = vmatpush1.msra.mxu0 0.0
    %3944 = vmatprep.subr.mxu0 0.0
    %3945 = vmatpush1.msra.mxu0 0.0
    %3946 = vmatprep.subr.mxu0 0.0
    %3947 = vmatpush1.msra.mxu0 0.0
    %3948 = vmatprep.subr.mxu0 0.0
    %3949 = vmatpush1.msra.mxu0 0.0
    %3950 = vmatprep.subr.mxu0 0.0
    %3951 = vmatpush1.msra.mxu0 0.0
    %3952 = vmatprep.subr.mxu0 0.0
    %3953 = vmatpush1.msra.mxu0 0.0
    %3954 = vmatprep.subr.mxu0 0.0
    %3955 = vmatpush1.msra.mxu0 0.0
    %3956 = vmatprep.subr.mxu0 0.0
    %3957 = vmatpush1.msra.mxu0 0.0
    %3958 = vmatprep.subr.mxu0 0.0
    %3959 = vmatpush1.msra.mxu0 0.0
    %3960 = vmatprep.subr.mxu0 0.0
    %3961 = vmatpush1.msra.mxu0 0.0
    %3962 = vmatprep.subr.mxu0 0.0
    %3963 = vmatpush1.msra.mxu0 0.0
    %3964 = vmatprep.subr.mxu0 0.0
    %3965 = vmatpush1.msra.mxu0 0.0
    %3966 = vmatprep.subr.mxu0 0.0
    %3967 = vmatpush1.msra.mxu0 0.0
    %3968 = vmatprep.subr.mxu0 0.0
    %3969 = vmatpush1.msra.mxu0 0.0
    %3970 = vmatprep.subr.mxu0 0.0
    %3971 = vmatpush1.msra.mxu0 0.0
    %3972 = vmatprep.subr.mxu0 0.0
    %3973 = vmatpush1.msra.mxu0 0.0
    %3974 = vmatprep.subr.mxu0 0.0
    %3975 = vmatpush1.msra.mxu0 0.0
    %3976 = vmatprep.subr.mxu0 0.0
    %3977 = vmatpush1.msra.mxu0 0.0
    %3978 = vmatprep.subr.mxu0 0.0
    %3979 = vmatpush1.msra.mxu0 0.0
    %3980 = vmatprep.subr.mxu0 0.0
    %3981 = vmatpush1.msra.mxu0 0.0
    %3982 = vmatprep.subr.mxu0 0.0
    %3983 = vmatpush1.msra.mxu0 0.0
    %3984 = vmatprep.subr.mxu0 0.0
    %3985 = vmatpush1.msra.mxu0 0.0
    %3986 = vmatprep.subr.mxu0 0.0
    %3987 = vmatpush1.msra.mxu0 0.0
    %3988 = vmatprep.subr.mxu0 0.0
    %3989 = vmatpush1.msra.mxu0 0.0
    %3990 = vmatprep.mubr.f32.mxu0 0.0
    %3991 = vmatmul.mubr.f32.gmra.mrb[0].mxu0 %v3613
    %v3992 = vpop.f32.mrb[0].mxu0
    %v3993 = vadd.f32 %v3567, %v3992
    %v3994 = vpop.f32.mrb[0].mxu0
    %v3995 = vadd.f32 %v3571, %v3994
    %3996 = vmatprep.mubr.f32.mxu0 0.0
    %3997 = vmatmul.mubr.f32.gmra.mrb[0].mxu0 %v3616
    %v3998 = vpop.f32.mrb[0].mxu0
    %v3999 = vadd.f32 %v3567, %v3998
    %v4000 = vpop.f32.mrb[0].mxu0
    %v4001 = vadd.f32 %v3571, %v4000
    %4002 = vdwg.mxu0
    %4003 = vmatprep.subr.mxu0 %v3521
    %4004 = vmatpush1.msra.mxu0 %v3520
    %4005 = vmatprep.subr.mxu0 0.0
    %4006 = vmatpush1.msra.mxu0 0.0
    %4007 = vmatprep.subr.mxu0 0.0
    %4008 = vmatpush1.msra.mxu0 0.0
    %4009 = vmatprep.subr.mxu0 0.0
    %4010 = vmatpush1.msra.mxu0 0.0
    %4011 = vmatprep.subr.mxu0 0.0
    %4012 = vmatpush1.msra.mxu0 0.0
    %4013 = vmatprep.subr.mxu0 0.0
    %4014 = vmatpush1.msra.mxu0 0.0
    %4015 = vmatprep.subr.mxu0 0.0
    %4016 = vmatpush1.msra.mxu0 0.0
    %4017 = vmatprep.subr.mxu0 0.0
    %4018 = vmatpush1.msra.mxu0 0.0
    %4019 = vmatprep.subr.mxu0 0.0
    %4020 = vmatpush1.msra.mxu0 0.0
    %4021 = vmatprep.subr.mxu0 0.0
    %4022 = vmatpush1.msra.mxu0 0.0
    %4023 = vmatprep.subr.mxu0 0.0
    %4024 = vmatpush1.msra.mxu0 0.0
    %4025 = vmatprep.subr.mxu0 0.0
    %4026 = vmatpush1.msra.mxu0 0.0
    %4027 = vmatprep.subr.mxu0 0.0
    %4028 = vmatpush1.msra.mxu0 0.0
    %4029 = vmatprep.subr.mxu0 0.0
    %4030 = vmatpush1.msra.mxu0 0.0
    %4031 = vmatprep.subr.mxu0 0.0
    %4032 = vmatpush1.msra.mxu0 0.0
    %4033 = vmatprep.subr.mxu0 0.0
    %4034 = vmatpush1.msra.mxu0 0.0
    %4035 = vmatprep.subr.mxu0 0.0
    %4036 = vmatpush1.msra.mxu0 0.0
    %4037 = vmatprep.subr.mxu0 0.0
    %4038 = vmatpush1.msra.mxu0 0.0
    %4039 = vmatprep.subr.mxu0 0.0
    %4040 = vmatpush1.msra.mxu0 0.0
    %4041 = vmatprep.subr.mxu0 0.0
    %4042 = vmatpush1.msra.mxu0 0.0
    %4043 = vmatprep.subr.mxu0 0.0
    %4044 = vmatpush1.msra.mxu0 0.0
    %4045 = vmatprep.subr.mxu0 0.0
    %4046 = vmatpush1.msra.mxu0 0.0
    %4047 = vmatprep.subr.mxu0 0.0
    %4048 = vmatpush1.msra.mxu0 0.0
    %4049 = vmatprep.subr.mxu0 0.0
    %4050 = vmatpush1.msra.mxu0 0.0
    %4051 = vmatprep.subr.mxu0 0.0
    %4052 = vmatpush1.msra.mxu0 0.0
    %4053 = vmatprep.subr.mxu0 0.0
    %4054 = vmatpush1.msra.mxu0 0.0
    %4055 = vmatprep.subr.mxu0 0.0
    %4056 = vmatpush1.msra.mxu0 0.0
    %4057 = vmatprep.subr.mxu0 0.0
    %4058 = vmatpush1.msra.mxu0 0.0
    %4059 = vmatprep.subr.mxu0 0.0
    %4060 = vmatpush1.msra.mxu0 0.0
    %4061 = vmatprep.subr.mxu0 0.0
    %4062 = vmatpush1.msra.mxu0 0.0
    %4063 = vmatprep.subr.mxu0 0.0
    %4064 = vmatpush1.msra.mxu0 0.0
    %4065 = vmatprep.subr.mxu0 0.0
    %4066 = vmatpush1.msra.mxu0 0.0
    %4067 = vmatprep.mubr.f32.mxu0 0.0
    %4068 = vmatmul.mubr.f32.gmra.mrb[0].mxu0 %v3613
    %v4069 = vpop.f32.mrb[0].mxu0
    %v4070 = vadd.f32 %v3575, %v4069
    %v4071 = vpop.f32.mrb[0].mxu0
    %v4072 = vadd.f32 %v3579, %v4071
    %4073 = vmatprep.mubr.f32.mxu0 0.0
    %4074 = vmatmul.mubr.f32.gmra.mrb[0].mxu0 %v3616
    %v4075 = vpop.f32.mrb[0].mxu0
    %v4076 = vadd.f32 %v3575, %v4075
    %v4077 = vpop.f32.mrb[0].mxu0
    %v4078 = vadd.f32 %v3579, %v4077
    %4079 = vdwg.mxu0
    %4080 = vmatprep.subr.mxu0 %v3523
    %4081 = vmatpush1.msra.mxu0 %v3522
    %4082 = vmatprep.subr.mxu0 0.0
    %4083 = vmatpush1.msra.mxu0 0.0
    %4084 = vmatprep.subr.mxu0 0.0
    %4085 = vmatpush1.msra.mxu0 0.0
    %4086 = vmatprep.subr.mxu0 0.0
    %4087 = vmatpush1.msra.mxu0 0.0
    %4088 = vmatprep.subr.mxu0 0.0
    %4089 = vmatpush1.msra.mxu0 0.0
    %4090 = vmatprep.subr.mxu0 0.0
    %4091 = vmatpush1.msra.mxu0 0.0
    %4092 = vmatprep.subr.mxu0 0.0
    %4093 = vmatpush1.msra.mxu0 0.0
    %4094 = vmatprep.subr.mxu0 0.0
    %4095 = vmatpush1.msra.mxu0 0.0
    %4096 = vmatprep.subr.mxu0 0.0
    %4097 = vmatpush1.msra.mxu0 0.0
    %4098 = vmatprep.subr.mxu0 0.0
    %4099 = vmatpush1.msra.mxu0 0.0
    %4100 = vmatprep.subr.mxu0 0.0
    %4101 = vmatpush1.msra.mxu0 0.0
    %4102 = vmatprep.subr.mxu0 0.0
    %4103 = vmatpush1.msra.mxu0 0.0
    %4104 = vmatprep.subr.mxu0 0.0
    %4105 = vmatpush1.msra.mxu0 0.0
    %4106 = vmatprep.subr.mxu0 0.0
    %4107 = vmatpush1.msra.mxu0 0.0
    %4108 = vmatprep.subr.mxu0 0.0
    %4109 = vmatpush1.msra.mxu0 0.0
    %4110 = vmatprep.subr.mxu0 0.0
    %4111 = vmatpush1.msra.mxu0 0.0
    %4112 = vmatprep.subr.mxu0 0.0
    %4113 = vmatpush1.msra.mxu0 0.0
    %4114 = vmatprep.subr.mxu0 0.0
    %4115 = vmatpush1.msra.mxu0 0.0
    %4116 = vmatprep.subr.mxu0 0.0
    %4117 = vmatpush1.msra.mxu0 0.0
    %4118 = vmatprep.subr.mxu0 0.0
    %4119 = vmatpush1.msra.mxu0 0.0
    %4120 = vmatprep.subr.mxu0 0.0
    %4121 = vmatpush1.msra.mxu0 0.0
    %4122 = vmatprep.subr.mxu0 0.0
    %4123 = vmatpush1.msra.mxu0 0.0
    %4124 = vmatprep.subr.mxu0 0.0
    %4125 = vmatpush1.msra.mxu0 0.0
    %4126 = vmatprep.subr.mxu0 0.0
    %4127 = vmatpush1.msra.mxu0 0.0
    %4128 = vmatprep.subr.mxu0 0.0
    %4129 = vmatpush1.msra.mxu0 0.0
    %4130 = vmatprep.subr.mxu0 0.0
    %4131 = vmatpush1.msra.mxu0 0.0
    %4132 = vmatprep.subr.mxu0 0.0
    %4133 = vmatpush1.msra.mxu0 0.0
    %4134 = vmatprep.subr.mxu0 0.0
    %4135 = vmatpush1.msra.mxu0 0.0
    %4136 = vmatprep.subr.mxu0 0.0
    %4137 = vmatpush1.msra.mxu0 0.0
    %4138 = vmatprep.subr.mxu0 0.0
    %4139 = vmatpush1.msra.mxu0 0.0
    %4140 = vmatprep.subr.mxu0 0.0
    %4141 = vmatpush1.msra.mxu0 0.0
    %4142 = vmatprep.subr.mxu0 0.0
    %4143 = vmatpush1.msra.mxu0 0.0
    %4144 = vmatprep.mubr.f32.mxu0 0.0
    %4145 = vmatmul.mubr.f32.gmra.mrb[0].mxu0 %v3613
    %v4146 = vpop.f32.mrb[0].mxu0
    %v4147 = vadd.f32 %v3583, %v4146
    %v4148 = vpop.f32.mrb[0].mxu0
    %v4149 = vadd.f32 %v3587, %v4148
    %4150 = vmatprep.mubr.f32.mxu0 0.0
    %4151 = vmatmul.mubr.f32.gmra.mrb[0].mxu0 %v3616
    %v4152 = vpop.f32.mrb[0].mxu0
    %v4153 = vadd.f32 %v3583, %v4152
    %v4154 = vpop.f32.mrb[0].mxu0
    %v4155 = vadd.f32 %v3587, %v4154
    %4156 = vdwg.mxu0
    %4157 = vmatprep.subr.mxu0 %v3525
    %4158 = vmatpush1.msra.mxu0 %v3524
    %4159 = vmatprep.subr.mxu0 0.0
    %4160 = vmatpush1.msra.mxu0 0.0
    %4161 = vmatprep.subr.mxu0 0.0
    %4162 = vmatpush1.msra.mxu0 0.0
    %4163 = vmatprep.subr.mxu0 0.0
    %4164 = vmatpush1.msra.mxu0 0.0
    %4165 = vmatprep.subr.mxu0 0.0
    %4166 = vmatpush1.msra.mxu0 0.0
    %4167 = vmatprep.subr.mxu0 0.0
    %4168 = vmatpush1.msra.mxu0 0.0
    %4169 = vmatprep.subr.mxu0 0.0
    %4170 = vmatpush1.msra.mxu0 0.0
    %4171 = vmatprep.subr.mxu0 0.0
    %4172 = vmatpush1.msra.mxu0 0.0
    %4173 = vmatprep.subr.mxu0 0.0
    %4174 = vmatpush1.msra.mxu0 0.0
    %4175 = vmatprep.subr.mxu0 0.0
    %4176 = vmatpush1.msra.mxu0 0.0
    %4177 = vmatprep.subr.mxu0 0.0
    %4178 = vmatpush1.msra.mxu0 0.0
    %4179 = vmatprep.subr.mxu0 0.0
    %4180 = vmatpush1.msra.mxu0 0.0
    %4181 = vmatprep.subr.mxu0 0.0
    %4182 = vmatpush1.msra.mxu0 0.0
    %4183 = vmatprep.subr.mxu0 0.0
    %4184 = vmatpush1.msra.mxu0 0.0
    %4185 = vmatprep.subr.mxu0 0.0
    %4186 = vmatpush1.msra.mxu0 0.0
    %4187 = vmatprep.subr.mxu0 0.0
    %4188 = vmatpush1.msra.mxu0 0.0
    %4189 = vmatprep.subr.mxu0 0.0
    %4190 = vmatpush1.msra.mxu0 0.0
    %4191 = vmatprep.subr.mxu0 0.0
    %4192 = vmatpush1.msra.mxu0 0.0
    %4193 = vmatprep.subr.mxu0 0.0
    %4194 = vmatpush1.msra.mxu0 0.0
    %4195 = vmatprep.subr.mxu0 0.0
    %4196 = vmatpush1.msra.mxu0 0.0
    %4197 = vmatprep.subr.mxu0 0.0
    %4198 = vmatpush1.msra.mxu0 0.0
    %4199 = vmatprep.subr.mxu0 0.0
    %4200 = vmatpush1.msra.mxu0 0.0
    %4201 = vmatprep.subr.mxu0 0.0
    %4202 = vmatpush1.msra.mxu0 0.0
    %4203 = vmatprep.subr.mxu0 0.0
    %4204 = vmatpush1.msra.mxu0 0.0
    %4205 = vmatprep.subr.mxu0 0.0
    %4206 = vmatpush1.msra.mxu0 0.0
    %4207 = vmatprep.subr.mxu0 0.0
    %4208 = vmatpush1.msra.mxu0 0.0
    %4209 = vmatprep.subr.mxu0 0.0
    %4210 = vmatpush1.msra.mxu0 0.0
    %4211 = vmatprep.subr.mxu0 0.0
    %4212 = vmatpush1.msra.mxu0 0.0
    %4213 = vmatprep.subr.mxu0 0.0
    %4214 = vmatpush1.msra.mxu0 0.0
    %4215 = vmatprep.subr.mxu0 0.0
    %4216 = vmatpush1.msra.mxu0 0.0
    %4217 = vmatprep.subr.mxu0 0.0
    %4218 = vmatpush1.msra.mxu0 0.0
    %4219 = vmatprep.subr.mxu0 0.0
    %4220 = vmatpush1.msra.mxu0 0.0
    %4221 = vmatprep.mubr.f32.mxu0 0.0
    %4222 = vmatmul.mubr.f32.gmra.mrb[0].mxu0 %v3613
    %v4223 = vpop.f32.mrb[0].mxu0
    %v4224 = vadd.f32 %v3591, %v4223
    %v4225 = vpop.f32.mrb[0].mxu0
    %v4226 = vadd.f32 %v3595, %v4225
    %4227 = vmatprep.mubr.f32.mxu0 0.0
    %4228 = vmatmul.mubr.f32.gmra.mrb[0].mxu0 %v3616
    %v4229 = vpop.f32.mrb[0].mxu0
    %v4230 = vadd.f32 %v3591, %v4229
    %v4231 = vpop.f32.mrb[0].mxu0
    %v4232 = vadd.f32 %v3595, %v4231
    %4233 = vdwg.mxu0
    %v4234 = vmax.f32 %v3685, 0.0
    %v4235 = vmax.f32 %v3687, 0.0
    %v4236 = vmax.f32 %v3762, 0.0
    %v4237 = vmax.f32 %v3764, 0.0
    %v4238 = vmax.f32 %v3839, 0.0
    %v4239 = vmax.f32 %v3841, 0.0
    %v4240 = vmax.f32 %v3916, 0.0
    %v4241 = vmax.f32 %v3918, 0.0
    %v4242 = vmax.f32 %v3993, 0.0
    %v4243 = vmax.f32 %v3995, 0.0
    %v4244 = vmax.f32 %v4070, 0.0
    %v4245 = vmax.f32 %v4072, 0.0
    %v4246 = vmax.f32 %v4147, 0.0
    %v4247 = vmax.f32 %v4149, 0.0
    %v4248 = vmax.f32 %v4224, 0.0
    %v4249 = vmax.f32 %v4226, 0.0
    %v4250 = vmax.f32 %v3691, 0.0
    %v4251 = vmax.f32 %v3693, 0.0
    %v4252 = vmax.f32 %v3768, 0.0
    %v4253 = vmax.f32 %v3770, 0.0
    %v4254 = vmax.f32 %v3845, 0.0
    %v4255 = vmax.f32 %v3847, 0.0
    %v4256 = vmax.f32 %v3922, 0.0
    %v4257 = vmax.f32 %v3924, 0.0
    %v4258 = vmax.f32 %v3999, 0.0
    %v4259 = vmax.f32 %v4001, 0.0
    %v4260 = vmax.f32 %v4076, 0.0
    %v4261 = vmax.f32 %v4078, 0.0
    %v4262 = vmax.f32 %v4153, 0.0
    %v4263 = vmax.f32 %v4155, 0.0
    %v4264 = vmax.f32 %v4230, 0.0
    %v4265 = vmax.f32 %v4232, 0.0
    %s4266 = scalar_lea.vmem %s8, 2048
    %v4267 = vld [vmem:[%s4266] sm:$0xff]
    %v4268 = vld [vmem:[%s4266 + $0x8] sm:$0xff]
    %v4269 = vld [vmem:[%s4266 + $0x10] sm:$0xff]
    %v4270 = vld [vmem:[%s4266 + $0x18] sm:$0xff]
    %v4271 = vld [vmem:[%s4266 + $0x20] sm:$0xff]
    %v4272 = vld [vmem:[%s4266 + $0x28] sm:$0xff]
    %v4273 = vld [vmem:[%s4266 + $0x30] sm:$0xff]
    %v4274 = vld [vmem:[%s4266 + $0x38] sm:$0xff]
    %v4275 = vld [vmem:[%s4266 + $0x40] sm:$0xff]
    %v4276 = vld [vmem:[%s4266 + $0x48] sm:$0xff]
    %v4277 = vld [vmem:[%s4266 + $0x50] sm:$0xff]
    %v4278 = vld [vmem:[%s4266 + $0x58] sm:$0xff]
    %v4279 = vld [vmem:[%s4266 + $0x60] sm:$0xff]
    %v4280 = vld [vmem:[%s4266 + $0x68] sm:$0xff]
    %v4281 = vld [vmem:[%s4266 + $0x70] sm:$0xff]
    %v4282 = vld [vmem:[%s4266 + $0x78] sm:$0xff]
    %v4283 = vld [vmem:[%s4266 + $0x80] sm:$0xff]
    %v4284 = vld [vmem:[%s4266 + $0x88] sm:$0xff]
    %v4285 = vld [vmem:[%s4266 + $0x90] sm:$0xff]
    %v4286 = vld [vmem:[%s4266 + $0x98] sm:$0xff]
    %v4287 = vld [vmem:[%s4266 + $0xa0] sm:$0xff]
    %v4288 = vld [vmem:[%s4266 + $0xa8] sm:$0xff]
    %v4289 = vld [vmem:[%s4266 + $0xb0] sm:$0xff]
    %v4290 = vld [vmem:[%s4266 + $0xb8] sm:$0xff]
    %v4291 = vld [vmem:[%s4266 + $0xc0] sm:$0xff]
    %v4292 = vld [vmem:[%s4266 + $0xc8] sm:$0xff]
    %v4293 = vld [vmem:[%s4266 + $0xd0] sm:$0xff]
    %v4294 = vld [vmem:[%s4266 + $0xd8] sm:$0xff]
    %v4295 = vld [vmem:[%s4266 + $0xe0] sm:$0xff]
    %v4296 = vld [vmem:[%s4266 + $0xe8] sm:$0xff]
    %v4297 = vld [vmem:[%s4266 + $0xf0] sm:$0xff]
    %v4298 = vld [vmem:[%s4266 + $0xf8] sm:$0xff]
    %v4299 = vld [vmem:[%s4266 + $0x100] sm:$0xff]
    %v4300 = vld [vmem:[%s4266 + $0x108] sm:$0xff]
    %v4301 = vld [vmem:[%s4266 + $0x110] sm:$0xff]
    %v4302 = vld [vmem:[%s4266 + $0x118] sm:$0xff]
    %v4303 = vld [vmem:[%s4266 + $0x120] sm:$0xff]
    %v4304 = vld [vmem:[%s4266 + $0x128] sm:$0xff]
    %v4305 = vld [vmem:[%s4266 + $0x130] sm:$0xff]
    %v4306 = vld [vmem:[%s4266 + $0x138] sm:$0xff]
    %v4307 = vld [vmem:[%s4266 + $0x140] sm:$0xff]
    %v4308 = vld [vmem:[%s4266 + $0x148] sm:$0xff]
    %v4309 = vld [vmem:[%s4266 + $0x150] sm:$0xff]
    %v4310 = vld [vmem:[%s4266 + $0x158] sm:$0xff]
    %v4311 = vld [vmem:[%s4266 + $0x160] sm:$0xff]
    %v4312 = vld [vmem:[%s4266 + $0x168] sm:$0xff]
    %v4313 = vld [vmem:[%s4266 + $0x170] sm:$0xff]
    %v4314 = vld [vmem:[%s4266 + $0x178] sm:$0xff]
    %v4315 = vld [vmem:[%s4266 + $0x180] sm:$0xff]
    %v4316 = vld [vmem:[%s4266 + $0x188] sm:$0xff]
    %v4317 = vld [vmem:[%s4266 + $0x190] sm:$0xff]
    %v4318 = vld [vmem:[%s4266 + $0x198] sm:$0xff]
    %v4319 = vld [vmem:[%s4266 + $0x1a0] sm:$0xff]
    %v4320 = vld [vmem:[%s4266 + $0x1a8] sm:$0xff]
    %v4321 = vld [vmem:[%s4266 + $0x1b0] sm:$0xff]
    %v4322 = vld [vmem:[%s4266 + $0x1b8] sm:$0xff]
    %v4323 = vld [vmem:[%s4266 + $0x1c0] sm:$0xff]
    %v4324 = vld [vmem:[%s4266 + $0x1c8] sm:$0xff]
    %v4325 = vld [vmem:[%s4266 + $0x1d0] sm:$0xff]
    %v4326 = vld [vmem:[%s4266 + $0x1d8] sm:$0xff]
    %v4327 = vld [vmem:[%s4266 + $0x1e0] sm:$0xff]
    %v4328 = vld [vmem:[%s4266 + $0x1e8] sm:$0xff]
    %v4329 = vld [vmem:[%s4266 + $0x1f0] sm:$0xff]
    %v4330 = vld [vmem:[%s4266 + $0x1f8] sm:$0xff]
    %v4331 = vld [vmem:[%s4266 + $0x200] sm:$0xff]
    %v4332 = vld [vmem:[%s4266 + $0x208] sm:$0xff]
    %v4333 = vld [vmem:[%s4266 + $0x210] sm:$0xff]
    %v4334 = vld [vmem:[%s4266 + $0x218] sm:$0xff]
    %v4335 = vld [vmem:[%s4266 + $0x220] sm:$0xff]
    %v4336 = vld [vmem:[%s4266 + $0x228] sm:$0xff]
    %v4337 = vld [vmem:[%s4266 + $0x230] sm:$0xff]
    %v4338 = vld [vmem:[%s4266 + $0x238] sm:$0xff]
    %v4339 = vld [vmem:[%s4266 + $0x240] sm:$0xff]
    %v4340 = vld [vmem:[%s4266 + $0x248] sm:$0xff]
    %v4341 = vld [vmem:[%s4266 + $0x250] sm:$0xff]
    %v4342 = vld [vmem:[%s4266 + $0x258] sm:$0xff]
    %v4343 = vld [vmem:[%s4266 + $0x260] sm:$0xff]
    %v4344 = vld [vmem:[%s4266 + $0x268] sm:$0xff]
    %v4345 = vld [vmem:[%s4266 + $0x270] sm:$0xff]
    %v4346 = vld [vmem:[%s4266 + $0x278] sm:$0xff]
    %v4347 = vld [vmem:[%s4266 + $0x280] sm:$0xff]
    %v4348 = vld [vmem:[%s4266 + $0x288] sm:$0xff]
    %v4349 = vld [vmem:[%s4266 + $0x290] sm:$0xff]
    %v4350 = vld [vmem:[%s4266 + $0x298] sm:$0xff]
    %v4351 = vld [vmem:[%s4266 + $0x2a0] sm:$0xff]
    %v4352 = vld [vmem:[%s4266 + $0x2a8] sm:$0xff]
    %v4353 = vld [vmem:[%s4266 + $0x2b0] sm:$0xff]
    %v4354 = vld [vmem:[%s4266 + $0x2b8] sm:$0xff]
    %v4355 = vld [vmem:[%s4266 + $0x2c0] sm:$0xff]
    %v4356 = vld [vmem:[%s4266 + $0x2c8] sm:$0xff]
    %v4357 = vld [vmem:[%s4266 + $0x2d0] sm:$0xff]
    %v4358 = vld [vmem:[%s4266 + $0x2d8] sm:$0xff]
    %v4359 = vld [vmem:[%s4266 + $0x2e0] sm:$0xff]
    %v4360 = vld [vmem:[%s4266 + $0x2e8] sm:$0xff]
    %v4361 = vld [vmem:[%s4266 + $0x2f0] sm:$0xff]
    %v4362 = vld [vmem:[%s4266 + $0x2f8] sm:$0xff]
    %v4363 = vld [vmem:[%s4266 + $0x300] sm:$0xff]
    %v4364 = vld [vmem:[%s4266 + $0x308] sm:$0xff]
    %v4365 = vld [vmem:[%s4266 + $0x310] sm:$0xff]
    %v4366 = vld [vmem:[%s4266 + $0x318] sm:$0xff]
    %v4367 = vld [vmem:[%s4266 + $0x320] sm:$0xff]
    %v4368 = vld [vmem:[%s4266 + $0x328] sm:$0xff]
    %v4369 = vld [vmem:[%s4266 + $0x330] sm:$0xff]
    %v4370 = vld [vmem:[%s4266 + $0x338] sm:$0xff]
    %v4371 = vld [vmem:[%s4266 + $0x340] sm:$0xff]
    %v4372 = vld [vmem:[%s4266 + $0x348] sm:$0xff]
    %v4373 = vld [vmem:[%s4266 + $0x350] sm:$0xff]
    %v4374 = vld [vmem:[%s4266 + $0x358] sm:$0xff]
    %v4375 = vld [vmem:[%s4266 + $0x360] sm:$0xff]
    %v4376 = vld [vmem:[%s4266 + $0x368] sm:$0xff]
    %v4377 = vld [vmem:[%s4266 + $0x370] sm:$0xff]
    %v4378 = vld [vmem:[%s4266 + $0x378] sm:$0xff]
    %v4379 = vld [vmem:[%s4266 + $0x380] sm:$0xff]
    %v4380 = vld [vmem:[%s4266 + $0x388] sm:$0xff]
    %v4381 = vld [vmem:[%s4266 + $0x390] sm:$0xff]
    %v4382 = vld [vmem:[%s4266 + $0x398] sm:$0xff]
    %v4383 = vld [vmem:[%s4266 + $0x3a0] sm:$0xff]
    %v4384 = vld [vmem:[%s4266 + $0x3a8] sm:$0xff]
    %v4385 = vld [vmem:[%s4266 + $0x3b0] sm:$0xff]
    %v4386 = vld [vmem:[%s4266 + $0x3b8] sm:$0xff]
    %v4387 = vld [vmem:[%s4266 + $0x3c0] sm:$0xff]
    %v4388 = vld [vmem:[%s4266 + $0x3c8] sm:$0xff]
    %v4389 = vld [vmem:[%s4266 + $0x3d0] sm:$0xff]
    %v4390 = vld [vmem:[%s4266 + $0x3d8] sm:$0xff]
    %v4391 = vld [vmem:[%s4266 + $0x3e0] sm:$0xff]
    %v4392 = vld [vmem:[%s4266 + $0x3e8] sm:$0xff]
    %v4393 = vld [vmem:[%s4266 + $0x3f0] sm:$0xff]
    %v4394 = vld [vmem:[%s4266 + $0x3f8] sm:$0xff]
    %v4395 = vld [vmem:[%s4266 + $0x400] sm:$0xff]
    %v4396 = vld [vmem:[%s4266 + $0x408] sm:$0xff]
    %v4397 = vld [vmem:[%s4266 + $0x410] sm:$0xff]
    %v4398 = vld [vmem:[%s4266 + $0x418] sm:$0xff]
    %v4399 = vld [vmem:[%s4266 + $0x420] sm:$0xff]
    %v4400 = vld [vmem:[%s4266 + $0x428] sm:$0xff]
    %v4401 = vld [vmem:[%s4266 + $0x430] sm:$0xff]
    %v4402 = vld [vmem:[%s4266 + $0x438] sm:$0xff]
    %v4403 = vld [vmem:[%s4266 + $0x440] sm:$0xff]
    %v4404 = vld [vmem:[%s4266 + $0x448] sm:$0xff]
    %v4405 = vld [vmem:[%s4266 + $0x450] sm:$0xff]
    %v4406 = vld [vmem:[%s4266 + $0x458] sm:$0xff]
    %v4407 = vld [vmem:[%s4266 + $0x460] sm:$0xff]
    %v4408 = vld [vmem:[%s4266 + $0x468] sm:$0xff]
    %v4409 = vld [vmem:[%s4266 + $0x470] sm:$0xff]
    %v4410 = vld [vmem:[%s4266 + $0x478] sm:$0xff]
    %v4411 = vld [vmem:[%s4266 + $0x480] sm:$0xff]
    %v4412 = vld [vmem:[%s4266 + $0x488] sm:$0xff]
    %v4413 = vld [vmem:[%s4266 + $0x490] sm:$0xff]
    %v4414 = vld [vmem:[%s4266 + $0x498] sm:$0xff]
    %v4415 = vld [vmem:[%s4266 + $0x4a0] sm:$0xff]
    %v4416 = vld [vmem:[%s4266 + $0x4a8] sm:$0xff]
    %v4417 = vld [vmem:[%s4266 + $0x4b0] sm:$0xff]
    %v4418 = vld [vmem:[%s4266 + $0x4b8] sm:$0xff]
    %v4419 = vld [vmem:[%s4266 + $0x4c0] sm:$0xff]
    %v4420 = vld [vmem:[%s4266 + $0x4c8] sm:$0xff]
    %v4421 = vld [vmem:[%s4266 + $0x4d0] sm:$0xff]
    %v4422 = vld [vmem:[%s4266 + $0x4d8] sm:$0xff]
    %v4423 = vld [vmem:[%s4266 + $0x4e0] sm:$0xff]
    %v4424 = vld [vmem:[%s4266 + $0x4e8] sm:$0xff]
    %v4425 = vld [vmem:[%s4266 + $0x4f0] sm:$0xff]
    %v4426 = vld [vmem:[%s4266 + $0x4f8] sm:$0xff]
    %v4427 = vld [vmem:[%s4266 + $0x500] sm:$0xff]
    %v4428 = vld [vmem:[%s4266 + $0x508] sm:$0xff]
    %v4429 = vld [vmem:[%s4266 + $0x510] sm:$0xff]
    %v4430 = vld [vmem:[%s4266 + $0x518] sm:$0xff]
    %v4431 = vld [vmem:[%s4266 + $0x520] sm:$0xff]
    %v4432 = vld [vmem:[%s4266 + $0x528] sm:$0xff]
    %v4433 = vld [vmem:[%s4266 + $0x530] sm:$0xff]
    %v4434 = vld [vmem:[%s4266 + $0x538] sm:$0xff]
    %v4435 = vld [vmem:[%s4266 + $0x540] sm:$0xff]
    %v4436 = vld [vmem:[%s4266 + $0x548] sm:$0xff]
    %v4437 = vld [vmem:[%s4266 + $0x550] sm:$0xff]
    %v4438 = vld [vmem:[%s4266 + $0x558] sm:$0xff]
    %v4439 = vld [vmem:[%s4266 + $0x560] sm:$0xff]
    %v4440 = vld [vmem:[%s4266 + $0x568] sm:$0xff]
    %v4441 = vld [vmem:[%s4266 + $0x570] sm:$0xff]
    %v4442 = vld [vmem:[%s4266 + $0x578] sm:$0xff]
    %v4443 = vld [vmem:[%s4266 + $0x580] sm:$0xff]
    %v4444 = vld [vmem:[%s4266 + $0x588] sm:$0xff]
    %v4445 = vld [vmem:[%s4266 + $0x590] sm:$0xff]
    %v4446 = vld [vmem:[%s4266 + $0x598] sm:$0xff]
    %v4447 = vld [vmem:[%s4266 + $0x5a0] sm:$0xff]
    %v4448 = vld [vmem:[%s4266 + $0x5a8] sm:$0xff]
    %v4449 = vld [vmem:[%s4266 + $0x5b0] sm:$0xff]
    %v4450 = vld [vmem:[%s4266 + $0x5b8] sm:$0xff]
    %v4451 = vld [vmem:[%s4266 + $0x5c0] sm:$0xff]
    %v4452 = vld [vmem:[%s4266 + $0x5c8] sm:$0xff]
    %v4453 = vld [vmem:[%s4266 + $0x5d0] sm:$0xff]
    %v4454 = vld [vmem:[%s4266 + $0x5d8] sm:$0xff]
    %v4455 = vld [vmem:[%s4266 + $0x5e0] sm:$0xff]
    %v4456 = vld [vmem:[%s4266 + $0x5e8] sm:$0xff]
    %v4457 = vld [vmem:[%s4266 + $0x5f0] sm:$0xff]
    %v4458 = vld [vmem:[%s4266 + $0x5f8] sm:$0xff]
    %v4459 = vld [vmem:[%s4266 + $0x600] sm:$0xff]
    %v4460 = vld [vmem:[%s4266 + $0x608] sm:$0xff]
    %v4461 = vld [vmem:[%s4266 + $0x610] sm:$0xff]
    %v4462 = vld [vmem:[%s4266 + $0x618] sm:$0xff]
    %v4463 = vld [vmem:[%s4266 + $0x620] sm:$0xff]
    %v4464 = vld [vmem:[%s4266 + $0x628] sm:$0xff]
    %v4465 = vld [vmem:[%s4266 + $0x630] sm:$0xff]
    %v4466 = vld [vmem:[%s4266 + $0x638] sm:$0xff]
    %v4467 = vld [vmem:[%s4266 + $0x640] sm:$0xff]
    %v4468 = vld [vmem:[%s4266 + $0x648] sm:$0xff]
    %v4469 = vld [vmem:[%s4266 + $0x650] sm:$0xff]
    %v4470 = vld [vmem:[%s4266 + $0x658] sm:$0xff]
    %v4471 = vld [vmem:[%s4266 + $0x660] sm:$0xff]
    %v4472 = vld [vmem:[%s4266 + $0x668] sm:$0xff]
    %v4473 = vld [vmem:[%s4266 + $0x670] sm:$0xff]
    %v4474 = vld [vmem:[%s4266 + $0x678] sm:$0xff]
    %v4475 = vld [vmem:[%s4266 + $0x680] sm:$0xff]
    %v4476 = vld [vmem:[%s4266 + $0x688] sm:$0xff]
    %v4477 = vld [vmem:[%s4266 + $0x690] sm:$0xff]
    %v4478 = vld [vmem:[%s4266 + $0x698] sm:$0xff]
    %v4479 = vld [vmem:[%s4266 + $0x6a0] sm:$0xff]
    %v4480 = vld [vmem:[%s4266 + $0x6a8] sm:$0xff]
    %v4481 = vld [vmem:[%s4266 + $0x6b0] sm:$0xff]
    %v4482 = vld [vmem:[%s4266 + $0x6b8] sm:$0xff]
    %v4483 = vld [vmem:[%s4266 + $0x6c0] sm:$0xff]
    %v4484 = vld [vmem:[%s4266 + $0x6c8] sm:$0xff]
    %v4485 = vld [vmem:[%s4266 + $0x6d0] sm:$0xff]
    %v4486 = vld [vmem:[%s4266 + $0x6d8] sm:$0xff]
    %v4487 = vld [vmem:[%s4266 + $0x6e0] sm:$0xff]
    %v4488 = vld [vmem:[%s4266 + $0x6e8] sm:$0xff]
    %v4489 = vld [vmem:[%s4266 + $0x6f0] sm:$0xff]
    %v4490 = vld [vmem:[%s4266 + $0x6f8] sm:$0xff]
    %v4491 = vld [vmem:[%s4266 + $0x700] sm:$0xff]
    %v4492 = vld [vmem:[%s4266 + $0x708] sm:$0xff]
    %v4493 = vld [vmem:[%s4266 + $0x710] sm:$0xff]
    %v4494 = vld [vmem:[%s4266 + $0x718] sm:$0xff]
    %v4495 = vld [vmem:[%s4266 + $0x720] sm:$0xff]
    %v4496 = vld [vmem:[%s4266 + $0x728] sm:$0xff]
    %v4497 = vld [vmem:[%s4266 + $0x730] sm:$0xff]
    %v4498 = vld [vmem:[%s4266 + $0x738] sm:$0xff]
    %v4499 = vld [vmem:[%s4266 + $0x740] sm:$0xff]
    %v4500 = vld [vmem:[%s4266 + $0x748] sm:$0xff]
    %v4501 = vld [vmem:[%s4266 + $0x750] sm:$0xff]
    %v4502 = vld [vmem:[%s4266 + $0x758] sm:$0xff]
    %v4503 = vld [vmem:[%s4266 + $0x760] sm:$0xff]
    %v4504 = vld [vmem:[%s4266 + $0x768] sm:$0xff]
    %v4505 = vld [vmem:[%s4266 + $0x770] sm:$0xff]
    %v4506 = vld [vmem:[%s4266 + $0x778] sm:$0xff]
    %v4507 = vld [vmem:[%s4266 + $0x780] sm:$0xff]
    %v4508 = vld [vmem:[%s4266 + $0x788] sm:$0xff]
    %v4509 = vld [vmem:[%s4266 + $0x790] sm:$0xff]
    %v4510 = vld [vmem:[%s4266 + $0x798] sm:$0xff]
    %v4511 = vld [vmem:[%s4266 + $0x7a0] sm:$0xff]
    %v4512 = vld [vmem:[%s4266 + $0x7a8] sm:$0xff]
    %v4513 = vld [vmem:[%s4266 + $0x7b0] sm:$0xff]
    %v4514 = vld [vmem:[%s4266 + $0x7b8] sm:$0xff]
    %v4515 = vld [vmem:[%s4266 + $0x7c0] sm:$0xff]
    %v4516 = vld [vmem:[%s4266 + $0x7c8] sm:$0xff]
    %v4517 = vld [vmem:[%s4266 + $0x7d0] sm:$0xff]
    %v4518 = vld [vmem:[%s4266 + $0x7d8] sm:$0xff]
    %v4519 = vld [vmem:[%s4266 + $0x7e0] sm:$0xff]
    %v4520 = vld [vmem:[%s4266 + $0x7e8] sm:$0xff]
    %v4521 = vld [vmem:[%s4266 + $0x7f0] sm:$0xff]
    %v4522 = vld [vmem:[%s4266 + $0x7f8] sm:$0xff]
    %v4523 = vld [vmem:[%s9 + $0x1] sm:$0x1]
    %v4524 = vlaneseq
    %v4525 = vshrl.u32 %v4524, 7
    %v4526 = vsub.s32 0, %v4525
    %v4527 = vrot.slane %v4523, %v4526
    %4528 = vmatprep.subr.mxu0 0.0
    %4529 = vmatpush1.msra.mxu0 %v4267
    %4530 = vmatprep.subr.mxu0 0.0
    %4531 = vmatpush1.msra.mxu0 %v4268
    %4532 = vmatprep.subr.mxu0 0.0
    %4533 = vmatpush1.msra.mxu0 %v4269
    %4534 = vmatprep.subr.mxu0 0.0
    %4535 = vmatpush1.msra.mxu0 %v4270
    %4536 = vmatprep.subr.mxu0 0.0
    %4537 = vmatpush1.msra.mxu0 %v4271
    %4538 = vmatprep.subr.mxu0 0.0
    %4539 = vmatpush1.msra.mxu0 %v4272
    %4540 = vmatprep.subr.mxu0 0.0
    %4541 = vmatpush1.msra.mxu0 %v4273
    %4542 = vmatprep.subr.mxu0 0.0
    %4543 = vmatpush1.msra.mxu0 %v4274
    %4544 = vmatprep.subr.mxu0 0.0
    %4545 = vmatpush1.msra.mxu0 %v4275
    %4546 = vmatprep.subr.mxu0 0.0
    %4547 = vmatpush1.msra.mxu0 %v4276
    %4548 = vmatprep.subr.mxu0 0.0
    %4549 = vmatpush1.msra.mxu0 %v4277
    %4550 = vmatprep.subr.mxu0 0.0
    %4551 = vmatpush1.msra.mxu0 %v4278
    %4552 = vmatprep.subr.mxu0 0.0
    %4553 = vmatpush1.msra.mxu0 %v4279
    %4554 = vmatprep.subr.mxu0 0.0
    %4555 = vmatpush1.msra.mxu0 %v4280
    %4556 = vmatprep.subr.mxu0 0.0
    %4557 = vmatpush1.msra.mxu0 %v4281
    %4558 = vmatprep.subr.mxu0 0.0
    %4559 = vmatpush1.msra.mxu0 %v4282
    %4560 = vmatprep.subr.mxu0 0.0
    %4561 = vmatpush1.msra.mxu0 %v4283
    %4562 = vmatprep.subr.mxu0 0.0
    %4563 = vmatpush1.msra.mxu0 %v4284
    %4564 = vmatprep.subr.mxu0 0.0
    %4565 = vmatpush1.msra.mxu0 %v4285
    %4566 = vmatprep.subr.mxu0 0.0
    %4567 = vmatpush1.msra.mxu0 %v4286
    %4568 = vmatprep.subr.mxu0 0.0
    %4569 = vmatpush1.msra.mxu0 %v4287
    %4570 = vmatprep.subr.mxu0 0.0
    %4571 = vmatpush1.msra.mxu0 %v4288
    %4572 = vmatprep.subr.mxu0 0.0
    %4573 = vmatpush1.msra.mxu0 %v4289
    %4574 = vmatprep.subr.mxu0 0.0
    %4575 = vmatpush1.msra.mxu0 %v4290
    %4576 = vmatprep.subr.mxu0 0.0
    %4577 = vmatpush1.msra.mxu0 %v4291
    %4578 = vmatprep.subr.mxu0 0.0
    %4579 = vmatpush1.msra.mxu0 %v4292
    %4580 = vmatprep.subr.mxu0 0.0
    %4581 = vmatpush1.msra.mxu0 %v4293
    %4582 = vmatprep.subr.mxu0 0.0
    %4583 = vmatpush1.msra.mxu0 %v4294
    %4584 = vmatprep.subr.mxu0 0.0
    %4585 = vmatpush1.msra.mxu0 %v4295
    %4586 = vmatprep.subr.mxu0 0.0
    %4587 = vmatpush1.msra.mxu0 %v4296
    %4588 = vmatprep.subr.mxu0 0.0
    %4589 = vmatpush1.msra.mxu0 %v4297
    %4590 = vmatprep.subr.mxu0 0.0
    %4591 = vmatpush1.msra.mxu0 %v4298
    %4592 = vmatprep.mubr.f32.mxu0 %v4235
    %4593 = vmatmul.mubr.f32.gmra.mrb[0].mxu0 %v4234
    %v4594 = vpop.f32.mrb[0].mxu0
    %v4595 = vadd.f32 %v4527, %v4594
    %v4596 = vpop.f32.mrb[0].mxu0
    %4597 = vmatprep.mubr.f32.mxu0 %v4251
    %4598 = vmatmul.mubr.f32.gmra.mrb[0].mxu0 %v4250
    %v4599 = vpop.f32.mrb[0].mxu0
    %v4600 = vadd.f32 %v4527, %v4599
    %v4601 = vpop.f32.mrb[0].mxu0
    %4602 = vdwg.mxu0
    %4603 = vmatprep.subr.mxu0 0.0
    %4604 = vmatpush1.msra.mxu0 %v4299
    %4605 = vmatprep.subr.mxu0 0.0
    %4606 = vmatpush1.msra.mxu0 %v4300
    %4607 = vmatprep.subr.mxu0 0.0
    %4608 = vmatpush1.msra.mxu0 %v4301
    %4609 = vmatprep.subr.mxu0 0.0
    %4610 = vmatpush1.msra.mxu0 %v4302
    %4611 = vmatprep.subr.mxu0 0.0
    %4612 = vmatpush1.msra.mxu0 %v4303
    %4613 = vmatprep.subr.mxu0 0.0
    %4614 = vmatpush1.msra.mxu0 %v4304
    %4615 = vmatprep.subr.mxu0 0.0
    %4616 = vmatpush1.msra.mxu0 %v4305
    %4617 = vmatprep.subr.mxu0 0.0
    %4618 = vmatpush1.msra.mxu0 %v4306
    %4619 = vmatprep.subr.mxu0 0.0
    %4620 = vmatpush1.msra.mxu0 %v4307
    %4621 = vmatprep.subr.mxu0 0.0
    %4622 = vmatpush1.msra.mxu0 %v4308
    %4623 = vmatprep.subr.mxu0 0.0
    %4624 = vmatpush1.msra.mxu0 %v4309
    %4625 = vmatprep.subr.mxu0 0.0
    %4626 = vmatpush1.msra.mxu0 %v4310
    %4627 = vmatprep.subr.mxu0 0.0
    %4628 = vmatpush1.msra.mxu0 %v4311
    %4629 = vmatprep.subr.mxu0 0.0
    %4630 = vmatpush1.msra.mxu0 %v4312
    %4631 = vmatprep.subr.mxu0 0.0
    %4632 = vmatpush1.msra.mxu0 %v4313
    %4633 = vmatprep.subr.mxu0 0.0
    %4634 = vmatpush1.msra.mxu0 %v4314
    %4635 = vmatprep.subr.mxu0 0.0
    %4636 = vmatpush1.msra.mxu0 %v4315
    %4637 = vmatprep.subr.mxu0 0.0
    %4638 = vmatpush1.msra.mxu0 %v4316
    %4639 = vmatprep.subr.mxu0 0.0
    %4640 = vmatpush1.msra.mxu0 %v4317
    %4641 = vmatprep.subr.mxu0 0.0
    %4642 = vmatpush1.msra.mxu0 %v4318
    %4643 = vmatprep.subr.mxu0 0.0
    %4644 = vmatpush1.msra.mxu0 %v4319
    %4645 = vmatprep.subr.mxu0 0.0
    %4646 = vmatpush1.msra.mxu0 %v4320
    %4647 = vmatprep.subr.mxu0 0.0
    %4648 = vmatpush1.msra.mxu0 %v4321
    %4649 = vmatprep.subr.mxu0 0.0
    %4650 = vmatpush1.msra.mxu0 %v4322
    %4651 = vmatprep.subr.mxu0 0.0
    %4652 = vmatpush1.msra.mxu0 %v4323
    %4653 = vmatprep.subr.mxu0 0.0
    %4654 = vmatpush1.msra.mxu0 %v4324
    %4655 = vmatprep.subr.mxu0 0.0
    %4656 = vmatpush1.msra.mxu0 %v4325
    %4657 = vmatprep.subr.mxu0 0.0
    %4658 = vmatpush1.msra.mxu0 %v4326
    %4659 = vmatprep.subr.mxu0 0.0
    %4660 = vmatpush1.msra.mxu0 %v4327
    %4661 = vmatprep.subr.mxu0 0.0
    %4662 = vmatpush1.msra.mxu0 %v4328
    %4663 = vmatprep.subr.mxu0 0.0
    %4664 = vmatpush1.msra.mxu0 %v4329
    %4665 = vmatprep.subr.mxu0 0.0
    %4666 = vmatpush1.msra.mxu0 %v4330
    %4667 = vmatprep.mubr.f32.mxu0 %v4237
    %4668 = vmatmul.mubr.f32.gmra.mrb[0].mxu0 %v4236
    %v4669 = vpop.f32.mrb[0].mxu0
    %v4670 = vadd.f32 %v4595, %v4669
    %v4671 = vpop.f32.mrb[0].mxu0
    %4672 = vmatprep.mubr.f32.mxu0 %v4253
    %4673 = vmatmul.mubr.f32.gmra.mrb[0].mxu0 %v4252
    %v4674 = vpop.f32.mrb[0].mxu0
    %v4675 = vadd.f32 %v4600, %v4674
    %v4676 = vpop.f32.mrb[0].mxu0
    %4677 = vdwg.mxu0
    %4678 = vmatprep.subr.mxu0 0.0
    %4679 = vmatpush1.msra.mxu0 %v4331
    %4680 = vmatprep.subr.mxu0 0.0
    %4681 = vmatpush1.msra.mxu0 %v4332
    %4682 = vmatprep.subr.mxu0 0.0
    %4683 = vmatpush1.msra.mxu0 %v4333
    %4684 = vmatprep.subr.mxu0 0.0
    %4685 = vmatpush1.msra.mxu0 %v4334
    %4686 = vmatprep.subr.mxu0 0.0
    %4687 = vmatpush1.msra.mxu0 %v4335
    %4688 = vmatprep.subr.mxu0 0.0
    %4689 = vmatpush1.msra.mxu0 %v4336
    %4690 = vmatprep.subr.mxu0 0.0
    %4691 = vmatpush1.msra.mxu0 %v4337
    %4692 = vmatprep.subr.mxu0 0.0
    %4693 = vmatpush1.msra.mxu0 %v4338
    %4694 = vmatprep.subr.mxu0 0.0
    %4695 = vmatpush1.msra.mxu0 %v4339
    %4696 = vmatprep.subr.mxu0 0.0
    %4697 = vmatpush1.msra.mxu0 %v4340
    %4698 = vmatprep.subr.mxu0 0.0
    %4699 = vmatpush1.msra.mxu0 %v4341
    %4700 = vmatprep.subr.mxu0 0.0
    %4701 = vmatpush1.msra.mxu0 %v4342
    %4702 = vmatprep.subr.mxu0 0.0
    %4703 = vmatpush1.msra.mxu0 %v4343
    %4704 = vmatprep.subr.mxu0 0.0
    %4705 = vmatpush1.msra.mxu0 %v4344
    %4706 = vmatprep.subr.mxu0 0.0
    %4707 = vmatpush1.msra.mxu0 %v4345
    %4708 = vmatprep.subr.mxu0 0.0
    %4709 = vmatpush1.msra.mxu0 %v4346
    %4710 = vmatprep.subr.mxu0 0.0
    %4711 = vmatpush1.msra.mxu0 %v4347
    %4712 = vmatprep.subr.mxu0 0.0
    %4713 = vmatpush1.msra.mxu0 %v4348
    %4714 = vmatprep.subr.mxu0 0.0
    %4715 = vmatpush1.msra.mxu0 %v4349
    %4716 = vmatprep.subr.mxu0 0.0
    %4717 = vmatpush1.msra.mxu0 %v4350
    %4718 = vmatprep.subr.mxu0 0.0
    %4719 = vmatpush1.msra.mxu0 %v4351
    %4720 = vmatprep.subr.mxu0 0.0
    %4721 = vmatpush1.msra.mxu0 %v4352
    %4722 = vmatprep.subr.mxu0 0.0
    %4723 = vmatpush1.msra.mxu0 %v4353
    %4724 = vmatprep.subr.mxu0 0.0
    %4725 = vmatpush1.msra.mxu0 %v4354
    %4726 = vmatprep.subr.mxu0 0.0
    %4727 = vmatpush1.msra.mxu0 %v4355
    %4728 = vmatprep.subr.mxu0 0.0
    %4729 = vmatpush1.msra.mxu0 %v4356
    %4730 = vmatprep.subr.mxu0 0.0
    %4731 = vmatpush1.msra.mxu0 %v4357
    %4732 = vmatprep.subr.mxu0 0.0
    %4733 = vmatpush1.msra.mxu0 %v4358
    %4734 = vmatprep.subr.mxu0 0.0
    %4735 = vmatpush1.msra.mxu0 %v4359
    %4736 = vmatprep.subr.mxu0 0.0
    %4737 = vmatpush1.msra.mxu0 %v4360
    %4738 = vmatprep.subr.mxu0 0.0
    %4739 = vmatpush1.msra.mxu0 %v4361
    %4740 = vmatprep.subr.mxu0 0.0
    %4741 = vmatpush1.msra.mxu0 %v4362
    %4742 = vmatprep.mubr.f32.mxu0 %v4239
    %4743 = vmatmul.mubr.f32.gmra.mrb[0].mxu0 %v4238
    %v4744 = vpop.f32.mrb[0].mxu0
    %v4745 = vadd.f32 %v4670, %v4744
    %v4746 = vpop.f32.mrb[0].mxu0
    %4747 = vmatprep.mubr.f32.mxu0 %v4255
    %4748 = vmatmul.mubr.f32.gmra.mrb[0].mxu0 %v4254
    %v4749 = vpop.f32.mrb[0].mxu0
    %v4750 = vadd.f32 %v4675, %v4749
    %v4751 = vpop.f32.mrb[0].mxu0
    %4752 = vdwg.mxu0
    %4753 = vmatprep.subr.mxu0 0.0
    %4754 = vmatpush1.msra.mxu0 %v4363
    %4755 = vmatprep.subr.mxu0 0.0
    %4756 = vmatpush1.msra.mxu0 %v4364
    %4757 = vmatprep.subr.mxu0 0.0
    %4758 = vmatpush1.msra.mxu0 %v4365
    %4759 = vmatprep.subr.mxu0 0.0
    %4760 = vmatpush1.msra.mxu0 %v4366
    %4761 = vmatprep.subr.mxu0 0.0
    %4762 = vmatpush1.msra.mxu0 %v4367
    %4763 = vmatprep.subr.mxu0 0.0
    %4764 = vmatpush1.msra.mxu0 %v4368
    %4765 = vmatprep.subr.mxu0 0.0
    %4766 = vmatpush1.msra.mxu0 %v4369
    %4767 = vmatprep.subr.mxu0 0.0
    %4768 = vmatpush1.msra.mxu0 %v4370
    %4769 = vmatprep.subr.mxu0 0.0
    %4770 = vmatpush1.msra.mxu0 %v4371
    %4771 = vmatprep.subr.mxu0 0.0
    %4772 = vmatpush1.msra.mxu0 %v4372
    %4773 = vmatprep.subr.mxu0 0.0
    %4774 = vmatpush1.msra.mxu0 %v4373
    %4775 = vmatprep.subr.mxu0 0.0
    %4776 = vmatpush1.msra.mxu0 %v4374
    %4777 = vmatprep.subr.mxu0 0.0
    %4778 = vmatpush1.msra.mxu0 %v4375
    %4779 = vmatprep.subr.mxu0 0.0
    %4780 = vmatpush1.msra.mxu0 %v4376
    %4781 = vmatprep.subr.mxu0 0.0
    %4782 = vmatpush1.msra.mxu0 %v4377
    %4783 = vmatprep.subr.mxu0 0.0
    %4784 = vmatpush1.msra.mxu0 %v4378
    %4785 = vmatprep.subr.mxu0 0.0
    %4786 = vmatpush1.msra.mxu0 %v4379
    %4787 = vmatprep.subr.mxu0 0.0
    %4788 = vmatpush1.msra.mxu0 %v4380
    %4789 = vmatprep.subr.mxu0 0.0
    %4790 = vmatpush1.msra.mxu0 %v4381
    %4791 = vmatprep.subr.mxu0 0.0
    %4792 = vmatpush1.msra.mxu0 %v4382
    %4793 = vmatprep.subr.mxu0 0.0
    %4794 = vmatpush1.msra.mxu0 %v4383
    %4795 = vmatprep.subr.mxu0 0.0
    %4796 = vmatpush1.msra.mxu0 %v4384
    %4797 = vmatprep.subr.mxu0 0.0
    %4798 = vmatpush1.msra.mxu0 %v4385
    %4799 = vmatprep.subr.mxu0 0.0
    %4800 = vmatpush1.msra.mxu0 %v4386
    %4801 = vmatprep.subr.mxu0 0.0
    %4802 = vmatpush1.msra.mxu0 %v4387
    %4803 = vmatprep.subr.mxu0 0.0
    %4804 = vmatpush1.msra.mxu0 %v4388
    %4805 = vmatprep.subr.mxu0 0.0
    %4806 = vmatpush1.msra.mxu0 %v4389
    %4807 = vmatprep.subr.mxu0 0.0
    %4808 = vmatpush1.msra.mxu0 %v4390
    %4809 = vmatprep.subr.mxu0 0.0
    %4810 = vmatpush1.msra.mxu0 %v4391
    %4811 = vmatprep.subr.mxu0 0.0
    %4812 = vmatpush1.msra.mxu0 %v4392
    %4813 = vmatprep.subr.mxu0 0.0
    %4814 = vmatpush1.msra.mxu0 %v4393
    %4815 = vmatprep.subr.mxu0 0.0
    %4816 = vmatpush1.msra.mxu0 %v4394
    %4817 = vmatprep.mubr.f32.mxu0 %v4241
    %4818 = vmatmul.mubr.f32.gmra.mrb[0].mxu0 %v4240
    %v4819 = vpop.f32.mrb[0].mxu0
    %v4820 = vadd.f32 %v4745, %v4819
    %v4821 = vpop.f32.mrb[0].mxu0
    %4822 = vmatprep.mubr.f32.mxu0 %v4257
    %4823 = vmatmul.mubr.f32.gmra.mrb[0].mxu0 %v4256
    %v4824 = vpop.f32.mrb[0].mxu0
    %v4825 = vadd.f32 %v4750, %v4824
    %v4826 = vpop.f32.mrb[0].mxu0
    %4827 = vdwg.mxu0
    %4828 = vmatprep.subr.mxu0 0.0
    %4829 = vmatpush1.msra.mxu0 %v4395
    %4830 = vmatprep.subr.mxu0 0.0
    %4831 = vmatpush1.msra.mxu0 %v4396
    %4832 = vmatprep.subr.mxu0 0.0
    %4833 = vmatpush1.msra.mxu0 %v4397
    %4834 = vmatprep.subr.mxu0 0.0
    %4835 = vmatpush1.msra.mxu0 %v4398
    %4836 = vmatprep.subr.mxu0 0.0
    %4837 = vmatpush1.msra.mxu0 %v4399
    %4838 = vmatprep.subr.mxu0 0.0
    %4839 = vmatpush1.msra.mxu0 %v4400
    %4840 = vmatprep.subr.mxu0 0.0
    %4841 = vmatpush1.msra.mxu0 %v4401
    %4842 = vmatprep.subr.mxu0 0.0
    %4843 = vmatpush1.msra.mxu0 %v4402
    %4844 = vmatprep.subr.mxu0 0.0
    %4845 = vmatpush1.msra.mxu0 %v4403
    %4846 = vmatprep.subr.mxu0 0.0
    %4847 = vmatpush1.msra.mxu0 %v4404
    %4848 = vmatprep.subr.mxu0 0.0
    %4849 = vmatpush1.msra.mxu0 %v4405
    %4850 = vmatprep.subr.mxu0 0.0
    %4851 = vmatpush1.msra.mxu0 %v4406
    %4852 = vmatprep.subr.mxu0 0.0
    %4853 = vmatpush1.msra.mxu0 %v4407
    %4854 = vmatprep.subr.mxu0 0.0
    %4855 = vmatpush1.msra.mxu0 %v4408
    %4856 = vmatprep.subr.mxu0 0.0
    %4857 = vmatpush1.msra.mxu0 %v4409
    %4858 = vmatprep.subr.mxu0 0.0
    %4859 = vmatpush1.msra.mxu0 %v4410
    %4860 = vmatprep.subr.mxu0 0.0
    %4861 = vmatpush1.msra.mxu0 %v4411
    %4862 = vmatprep.subr.mxu0 0.0
    %4863 = vmatpush1.msra.mxu0 %v4412
    %4864 = vmatprep.subr.mxu0 0.0
    %4865 = vmatpush1.msra.mxu0 %v4413
    %4866 = vmatprep.subr.mxu0 0.0
    %4867 = vmatpush1.msra.mxu0 %v4414
    %4868 = vmatprep.subr.mxu0 0.0
    %4869 = vmatpush1.msra.mxu0 %v4415
    %4870 = vmatprep.subr.mxu0 0.0
    %4871 = vmatpush1.msra.mxu0 %v4416
    %4872 = vmatprep.subr.mxu0 0.0
    %4873 = vmatpush1.msra.mxu0 %v4417
    %4874 = vmatprep.subr.mxu0 0.0
    %4875 = vmatpush1.msra.mxu0 %v4418
    %4876 = vmatprep.subr.mxu0 0.0
    %4877 = vmatpush1.msra.mxu0 %v4419
    %4878 = vmatprep.subr.mxu0 0.0
    %4879 = vmatpush1.msra.mxu0 %v4420
    %4880 = vmatprep.subr.mxu0 0.0
    %4881 = vmatpush1.msra.mxu0 %v4421
    %4882 = vmatprep.subr.mxu0 0.0
    %4883 = vmatpush1.msra.mxu0 %v4422
    %4884 = vmatprep.subr.mxu0 0.0
    %4885 = vmatpush1.msra.mxu0 %v4423
    %4886 = vmatprep.subr.mxu0 0.0
    %4887 = vmatpush1.msra.mxu0 %v4424
    %4888 = vmatprep.subr.mxu0 0.0
    %4889 = vmatpush1.msra.mxu0 %v4425
    %4890 = vmatprep.subr.mxu0 0.0
    %4891 = vmatpush1.msra.mxu0 %v4426
    %4892 = vmatprep.mubr.f32.mxu0 %v4243
    %4893 = vmatmul.mubr.f32.gmra.mrb[0].mxu0 %v4242
    %v4894 = vpop.f32.mrb[0].mxu0
    %v4895 = vadd.f32 %v4820, %v4894
    %v4896 = vpop.f32.mrb[0].mxu0
    %4897 = vmatprep.mubr.f32.mxu0 %v4259
    %4898 = vmatmul.mubr.f32.gmra.mrb[0].mxu0 %v4258
    %v4899 = vpop.f32.mrb[0].mxu0
    %v4900 = vadd.f32 %v4825, %v4899
    %v4901 = vpop.f32.mrb[0].mxu0
    %4902 = vdwg.mxu0
    %4903 = vmatprep.subr.mxu0 0.0
    %4904 = vmatpush1.msra.mxu0 %v4427
    %4905 = vmatprep.subr.mxu0 0.0
    %4906 = vmatpush1.msra.mxu0 %v4428
    %4907 = vmatprep.subr.mxu0 0.0
    %4908 = vmatpush1.msra.mxu0 %v4429
    %4909 = vmatprep.subr.mxu0 0.0
    %4910 = vmatpush1.msra.mxu0 %v4430
    %4911 = vmatprep.subr.mxu0 0.0
    %4912 = vmatpush1.msra.mxu0 %v4431
    %4913 = vmatprep.subr.mxu0 0.0
    %4914 = vmatpush1.msra.mxu0 %v4432
    %4915 = vmatprep.subr.mxu0 0.0
    %4916 = vmatpush1.msra.mxu0 %v4433
    %4917 = vmatprep.subr.mxu0 0.0
    %4918 = vmatpush1.msra.mxu0 %v4434
    %4919 = vmatprep.subr.mxu0 0.0
    %4920 = vmatpush1.msra.mxu0 %v4435
    %4921 = vmatprep.subr.mxu0 0.0
    %4922 = vmatpush1.msra.mxu0 %v4436
    %4923 = vmatprep.subr.mxu0 0.0
    %4924 = vmatpush1.msra.mxu0 %v4437
    %4925 = vmatprep.subr.mxu0 0.0
    %4926 = vmatpush1.msra.mxu0 %v4438
    %4927 = vmatprep.subr.mxu0 0.0
    %4928 = vmatpush1.msra.mxu0 %v4439
    %4929 = vmatprep.subr.mxu0 0.0
    %4930 = vmatpush1.msra.mxu0 %v4440
    %4931 = vmatprep.subr.mxu0 0.0
    %4932 = vmatpush1.msra.mxu0 %v4441
    %4933 = vmatprep.subr.mxu0 0.0
    %4934 = vmatpush1.msra.mxu0 %v4442
    %4935 = vmatprep.subr.mxu0 0.0
    %4936 = vmatpush1.msra.mxu0 %v4443
    %4937 = vmatprep.subr.mxu0 0.0
    %4938 = vmatpush1.msra.mxu0 %v4444
    %4939 = vmatprep.subr.mxu0 0.0
    %4940 = vmatpush1.msra.mxu0 %v4445
    %4941 = vmatprep.subr.mxu0 0.0
    %4942 = vmatpush1.msra.mxu0 %v4446
    %4943 = vmatprep.subr.mxu0 0.0
    %4944 = vmatpush1.msra.mxu0 %v4447
    %4945 = vmatprep.subr.mxu0 0.0
    %4946 = vmatpush1.msra.mxu0 %v4448
    %4947 = vmatprep.subr.mxu0 0.0
    %4948 = vmatpush1.msra.mxu0 %v4449
    %4949 = vmatprep.subr.mxu0 0.0
    %4950 = vmatpush1.msra.mxu0 %v4450
    %4951 = vmatprep.subr.mxu0 0.0
    %4952 = vmatpush1.msra.mxu0 %v4451
    %4953 = vmatprep.subr.mxu0 0.0
    %4954 = vmatpush1.msra.mxu0 %v4452
    %4955 = vmatprep.subr.mxu0 0.0
    %4956 = vmatpush1.msra.mxu0 %v4453
    %4957 = vmatprep.subr.mxu0 0.0
    %4958 = vmatpush1.msra.mxu0 %v4454
    %4959 = vmatprep.subr.mxu0 0.0
    %4960 = vmatpush1.msra.mxu0 %v4455
    %4961 = vmatprep.subr.mxu0 0.0
    %4962 = vmatpush1.msra.mxu0 %v4456
    %4963 = vmatprep.subr.mxu0 0.0
    %4964 = vmatpush1.msra.mxu0 %v4457
    %4965 = vmatprep.subr.mxu0 0.0
    %4966 = vmatpush1.msra.mxu0 %v4458
    %4967 = vmatprep.mubr.f32.mxu0 %v4245
    %4968 = vmatmul.mubr.f32.gmra.mrb[0].mxu0 %v4244
    %v4969 = vpop.f32.mrb[0].mxu0
    %v4970 = vadd.f32 %v4895, %v4969
    %v4971 = vpop.f32.mrb[0].mxu0
    %4972 = vmatprep.mubr.f32.mxu0 %v4261
    %4973 = vmatmul.mubr.f32.gmra.mrb[0].mxu0 %v4260
    %v4974 = vpop.f32.mrb[0].mxu0
    %v4975 = vadd.f32 %v4900, %v4974
    %v4976 = vpop.f32.mrb[0].mxu0
    %4977 = vdwg.mxu0
    %4978 = vmatprep.subr.mxu0 0.0
    %4979 = vmatpush1.msra.mxu0 %v4459
    %4980 = vmatprep.subr.mxu0 0.0
    %4981 = vmatpush1.msra.mxu0 %v4460
    %4982 = vmatprep.subr.mxu0 0.0
    %4983 = vmatpush1.msra.mxu0 %v4461
    %4984 = vmatprep.subr.mxu0 0.0
    %4985 = vmatpush1.msra.mxu0 %v4462
    %4986 = vmatprep.subr.mxu0 0.0
    %4987 = vmatpush1.msra.mxu0 %v4463
    %4988 = vmatprep.subr.mxu0 0.0
    %4989 = vmatpush1.msra.mxu0 %v4464
    %4990 = vmatprep.subr.mxu0 0.0
    %4991 = vmatpush1.msra.mxu0 %v4465
    %4992 = vmatprep.subr.mxu0 0.0
    %4993 = vmatpush1.msra.mxu0 %v4466
    %4994 = vmatprep.subr.mxu0 0.0
    %4995 = vmatpush1.msra.mxu0 %v4467
    %4996 = vmatprep.subr.mxu0 0.0
    %4997 = vmatpush1.msra.mxu0 %v4468
    %4998 = vmatprep.subr.mxu0 0.0
    %4999 = vmatpush1.msra.mxu0 %v4469
    %5000 = vmatprep.subr.mxu0 0.0
    %5001 = vmatpush1.msra.mxu0 %v4470
    %5002 = vmatprep.subr.mxu0 0.0
    %5003 = vmatpush1.msra.mxu0 %v4471
    %5004 = vmatprep.subr.mxu0 0.0
    %5005 = vmatpush1.msra.mxu0 %v4472
    %5006 = vmatprep.subr.mxu0 0.0
    %5007 = vmatpush1.msra.mxu0 %v4473
    %5008 = vmatprep.subr.mxu0 0.0
    %5009 = vmatpush1.msra.mxu0 %v4474
    %5010 = vmatprep.subr.mxu0 0.0
    %5011 = vmatpush1.msra.mxu0 %v4475
    %5012 = vmatprep.subr.mxu0 0.0
    %5013 = vmatpush1.msra.mxu0 %v4476
    %5014 = vmatprep.subr.mxu0 0.0
    %5015 = vmatpush1.msra.mxu0 %v4477
    %5016 = vmatprep.subr.mxu0 0.0
    %5017 = vmatpush1.msra.mxu0 %v4478
    %5018 = vmatprep.subr.mxu0 0.0
    %5019 = vmatpush1.msra.mxu0 %v4479
    %5020 = vmatprep.subr.mxu0 0.0
    %5021 = vmatpush1.msra.mxu0 %v4480
    %5022 = vmatprep.subr.mxu0 0.0
    %5023 = vmatpush1.msra.mxu0 %v4481
    %5024 = vmatprep.subr.mxu0 0.0
    %5025 = vmatpush1.msra.mxu0 %v4482
    %5026 = vmatprep.subr.mxu0 0.0
    %5027 = vmatpush1.msra.mxu0 %v4483
    %5028 = vmatprep.subr.mxu0 0.0
    %5029 = vmatpush1.msra.mxu0 %v4484
    %5030 = vmatprep.subr.mxu0 0.0
    %5031 = vmatpush1.msra.mxu0 %v4485
    %5032 = vmatprep.subr.mxu0 0.0
    %5033 = vmatpush1.msra.mxu0 %v4486
    %5034 = vmatprep.subr.mxu0 0.0
    %5035 = vmatpush1.msra.mxu0 %v4487
    %5036 = vmatprep.subr.mxu0 0.0
    %5037 = vmatpush1.msra.mxu0 %v4488
    %5038 = vmatprep.subr.mxu0 0.0
    %5039 = vmatpush1.msra.mxu0 %v4489
    %5040 = vmatprep.subr.mxu0 0.0
    %5041 = vmatpush1.msra.mxu0 %v4490
    %5042 = vmatprep.mubr.f32.mxu0 %v4247
    %5043 = vmatmul.mubr.f32.gmra.mrb[0].mxu0 %v4246
    %v5044 = vpop.f32.mrb[0].mxu0
    %v5045 = vadd.f32 %v4970, %v5044
    %v5046 = vpop.f32.mrb[0].mxu0
    %5047 = vmatprep.mubr.f32.mxu0 %v4263
    %5048 = vmatmul.mubr.f32.gmra.mrb[0].mxu0 %v4262
    %v5049 = vpop.f32.mrb[0].mxu0
    %v5050 = vadd.f32 %v4975, %v5049
    %v5051 = vpop.f32.mrb[0].mxu0
    %5052 = vdwg.mxu0
    %5053 = vmatprep.subr.mxu0 0.0
    %5054 = vmatpush1.msra.mxu0 %v4491
    %5055 = vmatprep.subr.mxu0 0.0
    %5056 = vmatpush1.msra.mxu0 %v4492
    %5057 = vmatprep.subr.mxu0 0.0
    %5058 = vmatpush1.msra.mxu0 %v4493
    %5059 = vmatprep.subr.mxu0 0.0
    %5060 = vmatpush1.msra.mxu0 %v4494
    %5061 = vmatprep.subr.mxu0 0.0
    %5062 = vmatpush1.msra.mxu0 %v4495
    %5063 = vmatprep.subr.mxu0 0.0
    %5064 = vmatpush1.msra.mxu0 %v4496
    %5065 = vmatprep.subr.mxu0 0.0
    %5066 = vmatpush1.msra.mxu0 %v4497
    %5067 = vmatprep.subr.mxu0 0.0
    %5068 = vmatpush1.msra.mxu0 %v4498
    %5069 = vmatprep.subr.mxu0 0.0
    %5070 = vmatpush1.msra.mxu0 %v4499
    %5071 = vmatprep.subr.mxu0 0.0
    %5072 = vmatpush1.msra.mxu0 %v4500
    %5073 = vmatprep.subr.mxu0 0.0
    %5074 = vmatpush1.msra.mxu0 %v4501
    %5075 = vmatprep.subr.mxu0 0.0
    %5076 = vmatpush1.msra.mxu0 %v4502
    %5077 = vmatprep.subr.mxu0 0.0
    %5078 = vmatpush1.msra.mxu0 %v4503
    %5079 = vmatprep.subr.mxu0 0.0
    %5080 = vmatpush1.msra.mxu0 %v4504
    %5081 = vmatprep.subr.mxu0 0.0
    %5082 = vmatpush1.msra.mxu0 %v4505
    %5083 = vmatprep.subr.mxu0 0.0
    %5084 = vmatpush1.msra.mxu0 %v4506
    %5085 = vmatprep.subr.mxu0 0.0
    %5086 = vmatpush1.msra.mxu0 %v4507
    %5087 = vmatprep.subr.mxu0 0.0
    %5088 = vmatpush1.msra.mxu0 %v4508
    %5089 = vmatprep.subr.mxu0 0.0
    %5090 = vmatpush1.msra.mxu0 %v4509
    %5091 = vmatprep.subr.mxu0 0.0
    %5092 = vmatpush1.msra.mxu0 %v4510
    %5093 = vmatprep.subr.mxu0 0.0
    %5094 = vmatpush1.msra.mxu0 %v4511
    %5095 = vmatprep.subr.mxu0 0.0
    %5096 = vmatpush1.msra.mxu0 %v4512
    %5097 = vmatprep.subr.mxu0 0.0
    %5098 = vmatpush1.msra.mxu0 %v4513
    %5099 = vmatprep.subr.mxu0 0.0
    %5100 = vmatpush1.msra.mxu0 %v4514
    %5101 = vmatprep.subr.mxu0 0.0
    %5102 = vmatpush1.msra.mxu0 %v4515
    %5103 = vmatprep.subr.mxu0 0.0
    %5104 = vmatpush1.msra.mxu0 %v4516
    %5105 = vmatprep.subr.mxu0 0.0
    %5106 = vmatpush1.msra.mxu0 %v4517
    %5107 = vmatprep.subr.mxu0 0.0
    %5108 = vmatpush1.msra.mxu0 %v4518
    %5109 = vmatprep.subr.mxu0 0.0
    %5110 = vmatpush1.msra.mxu0 %v4519
    %5111 = vmatprep.subr.mxu0 0.0
    %5112 = vmatpush1.msra.mxu0 %v4520
    %5113 = vmatprep.subr.mxu0 0.0
    %5114 = vmatpush1.msra.mxu0 %v4521
    %5115 = vmatprep.subr.mxu0 0.0
    %5116 = vmatpush1.msra.mxu0 %v4522
    %5117 = vmatprep.mubr.f32.mxu0 %v4249
    %5118 = vmatmul.mubr.f32.gmra.mrb[0].mxu0 %v4248
    %v5119 = vpop.f32.mrb[0].mxu0
    %v5120 = vadd.f32 %v5045, %v5119
    %v5121 = vpop.f32.mrb[0].mxu0
    %5122 = vmatprep.mubr.f32.mxu0 %v4265
    %5123 = vmatmul.mubr.f32.gmra.mrb[0].mxu0 %v4264
    %v5124 = vpop.f32.mrb[0].mxu0
    %v5125 = vadd.f32 %v5050, %v5124
    %v5126 = vpop.f32.mrb[0].mxu0
    %5127 = vdwg.mxu0
    %v5128 = vadd.f32 %v3507, %v5120
    %v5129 = vadd.f32 %v3508, %v5125
    %v5130 = vld [vmem:[%s12 + $0x1] sm:$0x1]
    %v5131 = vld [vmem:[%s13 + $0x1] sm:$0x1]
    %v5132 = vsel %vm78, %v5128, 0.0
    %5133 = vadd.xlane.f32.xlu0 %v5132
    %v5134 = vpop.xlane.xlu0 %5133
    %v5135 = vsel %vm78, %v5129, 0.0
    %5136 = vadd.xlane.f32.xlu0 %v5135
    %v5137 = vpop.xlane.xlu0 %5136
    %v5138 = vmul.f32 %v5134, %v932
    %v5139 = vmul.f32 %v5137, %v932
    %v5140 = vsub.f32 %v5128, %v5138
    %v5141 = vsub.f32 %v5129, %v5139
    %v5142 = vmul.f32 %v5140, %v5140
    %v5143 = vmul.f32 %v5141, %v5141
    %v5144 = vsel %vm78, %v5142, 0.0
    %5145 = vadd.xlane.f32.xlu0 %v5144
    %v5146 = vpop.xlane.xlu0 %5145
    %v5147 = vsel %vm78, %v5143, 0.0
    %5148 = vadd.xlane.f32.xlu0 %v5147
    %v5149 = vpop.xlane.xlu0 %5148
    %v5150 = vmul.f32 %v5146, %v932
    %v5151 = vmul.f32 %v5149, %v932
    %v5152 = vadd.f32 %v5150, 1e-05
    %v5153 = vadd.f32 %v5151, 1e-05
    %v5154 = vrsqrt.pop %v5152
    %v5155 = vrsqrt.pop %v5153
    %v5156 = vmul.f32 %v5140, %v5154
    %v5157 = vmul.f32 %v5141, %v5155
    %v5158 = vlaneseq
    %v5159 = vshrl.u32 %v5158, 7
    %v5160 = vsub.s32 0, %v5159
    %v5161 = vrot.slane %v5130, %v5160
    %v5162 = vmul.f32 %v5156, %v5161
    %v5163 = vmul.f32 %v5157, %v5161
    %v5164 = vlaneseq
    %v5165 = vshrl.u32 %v5164, 7
    %v5166 = vsub.s32 0, %v5165
    %v5167 = vrot.slane %v5131, %v5166
    %v5168 = vadd.f32 %v5162, %v5167
    %v5169 = vadd.f32 %v5163, %v5167
    %v5170 = vld [vmem:[%s14] sm:$0xff]
    %v5171 = vld [vmem:[%s15] sm:$0x1]
    %v5173 = vlaneseq
    %v5174 = vshrl.u32 %v5173, 7
    %v5175 = vsub.s32 0, %v5174
    %v5176 = vrot.slane %v5171, %v5175
    %v5179 = vsel %vm78, %v5168, 0
    %v5182 = vsel %vm78, %v5169, 0
    %5184 = vmatprep.subr.mxu0 0.0
    %5185 = vmatpush1.msra.mxu0 %v5170
    %5186 = vmatprep.subr.mxu0 0.0
    %5187 = vmatpush1.msra.mxu0 0.0
    %5188 = vmatprep.subr.mxu0 0.0
    %5189 = vmatpush1.msra.mxu0 0.0
    %5190 = vmatprep.subr.mxu0 0.0
    %5191 = vmatpush1.msra.mxu0 0.0
    %5192 = vmatprep.subr.mxu0 0.0
    %5193 = vmatpush1.msra.mxu0 0.0
    %5194 = vmatprep.subr.mxu0 0.0
    %5195 = vmatpush1.msra.mxu0 0.0
    %5196 = vmatprep.subr.mxu0 0.0
    %5197 = vmatpush1.msra.mxu0 0.0
    %5198 = vmatprep.subr.mxu0 0.0
    %5199 = vmatpush1.msra.mxu0 0.0
    %5200 = vmatprep.subr.mxu0 0.0
    %5201 = vmatpush1.msra.mxu0 0.0
    %5202 = vmatprep.subr.mxu0 0.0
    %5203 = vmatpush1.msra.mxu0 0.0
    %5204 = vmatprep.subr.mxu0 0.0
    %5205 = vmatpush1.msra.mxu0 0.0
    %5206 = vmatprep.subr.mxu0 0.0
    %5207 = vmatpush1.msra.mxu0 0.0
    %5208 = vmatprep.subr.mxu0 0.0
    %5209 = vmatpush1.msra.mxu0 0.0
    %5210 = vmatprep.subr.mxu0 0.0
    %5211 = vmatpush1.msra.mxu0 0.0
    %5212 = vmatprep.subr.mxu0 0.0
    %5213 = vmatpush1.msra.mxu0 0.0
    %5214 = vmatprep.subr.mxu0 0.0
    %5215 = vmatpush1.msra.mxu0 0.0
    %5216 = vmatprep.subr.mxu0 0.0
    %5217 = vmatpush1.msra.mxu0 0.0
    %5218 = vmatprep.subr.mxu0 0.0
    %5219 = vmatpush1.msra.mxu0 0.0
    %5220 = vmatprep.subr.mxu0 0.0
    %5221 = vmatpush1.msra.mxu0 0.0
    %5222 = vmatprep.subr.mxu0 0.0
    %5223 = vmatpush1.msra.mxu0 0.0
    %5224 = vmatprep.subr.mxu0 0.0
    %5225 = vmatpush1.msra.mxu0 0.0
    %5226 = vmatprep.subr.mxu0 0.0
    %5227 = vmatpush1.msra.mxu0 0.0
    %5228 = vmatprep.subr.mxu0 0.0
    %5229 = vmatpush1.msra.mxu0 0.0
    %5230 = vmatprep.subr.mxu0 0.0
    %5231 = vmatpush1.msra.mxu0 0.0
    %5232 = vmatprep.subr.mxu0 0.0
    %5233 = vmatpush1.msra.mxu0 0.0
    %5234 = vmatprep.subr.mxu0 0.0
    %5235 = vmatpush1.msra.mxu0 0.0
    %5236 = vmatprep.subr.mxu0 0.0
    %5237 = vmatpush1.msra.mxu0 0.0
    %5238 = vmatprep.subr.mxu0 0.0
    %5239 = vmatpush1.msra.mxu0 0.0
    %5240 = vmatprep.subr.mxu0 0.0
    %5241 = vmatpush1.msra.mxu0 0.0
    %5242 = vmatprep.subr.mxu0 0.0
    %5243 = vmatpush1.msra.mxu0 0.0
    %5244 = vmatprep.subr.mxu0 0.0
    %5245 = vmatpush1.msra.mxu0 0.0
    %5246 = vmatprep.subr.mxu0 0.0
    %5247 = vmatpush1.msra.mxu0 0.0
    %5248 = vmatprep.mubr.f32.mxu0 0.0
    %5249 = vmatmul.mubr.f32.gmra.mrb[0].mxu0 %v5179
    %v5250 = vpop.f32.mrb[0].mxu0
    %v5251 = vadd.f32 %v5176, %v5250
    %v5252 = vpop.f32.mrb[0].mxu0
    %5253 = vmatprep.mubr.f32.mxu0 0.0
    %5254 = vmatmul.mubr.f32.gmra.mrb[0].mxu0 %v5182
    %v5255 = vpop.f32.mrb[0].mxu0
    %v5256 = vadd.f32 %v5176, %v5255
    %v5257 = vpop.f32.mrb[0].mxu0
    %5258 = vdwg.mxu0
    %vm5259 = vcmask 523264
    %5260 = vst.msk [vmem:[#allocation2] sm:$0xff] %vm5259, %v5251
    %5261 = vst.msk [vmem:[#allocation2 + $0x8] sm:$0xff] %vm5259, %v5256
    // Predicated region
    $region66: #{tpu_custom_call.1} parent=1 // pred_check
      _
    $region67: #{tpu_custom_call.1} parent=1 // pred_check_branch
      %5263 = sbr.rel (0) target = $region69
    $region68: #{tpu_custom_call.1} parent=1 // pred_region
      %s5265 = ssub.s32 256, 256
      %5266 = vsyncadd [#allocation3], %s5265
      %s5267 = sshll.u32 [#allocation2], 4
      %s5268 = int_to_ptr.vmem [resolvable:$true] %s5267
      %5273 = dma.vmem_to_hbm [thread:$0]  %s5268, 256, %s16, [#allocation3], 128, 128, 8
    $region69: #{tpu_custom_call.1} parent=1 // pred_fallthru
      _
    // Predicated region
    $region70: #{tpu_custom_call.1} parent=1 // pred_check
      _
    $region71: #{tpu_custom_call.1} parent=1 // pred_check_branch
      %5275 = sbr.rel (0) target = $region73
    $region72: #{tpu_custom_call.1} parent=1 // pred_region
      %5276 = dma.done [#allocation3], 256
    $region73: #{tpu_custom_call.1} parent=1 // pred_fallthru
      _
    %5277 = vsyncpa [#allocation3], 1

</llo_original>
